<compile_context>
chip_gen: v6e
topology: v6e:2x2x1
jax: 0.10.0
libtpu: 0.0.40
codegen_flags: <defaults>
</compile_context>

<pallas_src>
import math
import functools

import jax
import jax.numpy as jnp
from jax import lax
from jax.experimental import pallas as pl
from jax.experimental.pallas import tpu as pltpu


_GELU_C = math.sqrt(2.0 / math.pi)


def _gelu_new(x):
    # GPT-2 "gelu_new": 0.5*x*(1+tanh(sqrt(2/pi)*(x+0.044715*x^3)))
    # x*x*x instead of x**3 (plain VALU muls, no pow lowering).
    return 0.5 * x * (1.0 + jnp.tanh(_GELU_C * (x + 0.044715 * (x * x * x))))


def _layer_norm(x, w, b, eps=1e-5):
    # One-pass variance: E[x^2] - mu^2 (single pair of lane reductions).
    mu = jnp.mean(x, axis=-1, keepdims=True)
    ms = jnp.mean(x * x, axis=-1, keepdims=True)
    var = ms - mu * mu
    return (x - mu) * lax.rsqrt(var + eps) * w + b


def block_kernel(n_head, tq,
                 x_ref,
                 ln1_w_ref, ln1_b_ref,
                 attn_w_ref, attn_b_ref,
                 proj_w_ref, proj_b_ref,
                 ln2_w_ref, ln2_b_ref,
                 fc_w_ref, fc_b_ref,
                 fc2_w_ref, fc2_b_ref,
                 o_ref,
                 q_scr, k_scr, v_scr, ctx_scr):
    T, D = x_ref.shape[1], x_ref.shape[2]
    hd = D // n_head
    scale = 1.0 / math.sqrt(hd)
    qi = pl.program_id(1)

    # ---- once per batch element: LN1 + fused QKV for the full sequence ----
    @pl.when(qi == 0)
    def _():
        x = x_ref[0]                                             # (T, D) f32
        h = _layer_norm(x, ln1_w_ref[...], ln1_b_ref[...]).astype(jnp.bfloat16)
        qkv = jnp.dot(h, attn_w_ref[...],
                      preferred_element_type=jnp.float32) + attn_b_ref[...]
        q_scaled = qkv[:, 0:D] * scale                 # fold 1/sqrt(hd) once
        # Head-major bf16 caches; the per-head relayout happens once per
        # batch element, never in the per-tile hot path.
        for hix in range(n_head):
            lo, hi = hix * hd, (hix + 1) * hd
            q_scr[hix] = q_scaled[:, lo:hi].astype(jnp.bfloat16)
            k_scr[hix] = qkv[:, D + lo:D + hi].astype(jnp.bfloat16)
            v_scr[hix] = qkv[:, 2 * D + lo:2 * D + hi].astype(jnp.bfloat16)

    q_start = pl.multiple_of(qi * tq, tq)

    # ---- causal attention for this query tile, all heads batched ----
    qh = q_scr[:, pl.ds(q_start, tq), :]                     # (H, tq, hd) bf16
    s = jnp.einsum('hqd,hkd->hqk', qh, k_scr[...],
                   preferred_element_type=jnp.float32)       # (H, tq, T) f32
    row = lax.broadcasted_iota(jnp.int32, (tq, T), 0) + q_start
    col = lax.broadcasted_iota(jnp.int32, (tq, T), 1)
    causal = row >= col                                      # (tq, T)
    s = jnp.where(causal[None, :, :], s, jnp.float32(-10000.0))
    s = s - jnp.max(s, axis=-1, keepdims=True)
    e = jnp.exp(s)
    p = e * pl.reciprocal(jnp.sum(e, axis=-1, keepdims=True), approx=True)
    ctx = jnp.einsum('hqk,hkd->hqd', p.astype(jnp.bfloat16), v_scr[...],
                     preferred_element_type=jnp.float32)     # (H, tq, hd) f32

    # merge_heads: write each head into its column slice of a (tq, D) scratch
    # so the output projection stays one full-contraction MXU matmul.
    for hix in range(n_head):
        ctx_scr[:, hix * hd:(hix + 1) * hd] = ctx[hix].astype(jnp.bfloat16)

    attn = jnp.dot(ctx_scr[...], proj_w_ref[...],
                   preferred_element_type=jnp.float32) + proj_b_ref[...]

    xq = x_ref[0, pl.ds(q_start, tq), :]                     # residual rows
    x1 = xq + attn                                           # (tq, D) f32

    # ---- LN2 + MLP (gelu_new) for this tile ----
    h2 = _layer_norm(x1, ln2_w_ref[...], ln2_b_ref[...]).astype(jnp.bfloat16)
    ff = jnp.dot(h2, fc_w_ref[...],
                 preferred_element_type=jnp.float32) + fc_b_ref[...]
    ff = _gelu_new(ff).astype(jnp.bfloat16)
    ff = jnp.dot(ff, fc2_w_ref[...],
                 preferred_element_type=jnp.float32) + fc2_b_ref[...]

    o_ref[0] = (x1 + ff).astype(o_ref.dtype)


def block_forward(x, params, n_head, tq=None):
    B, T, D = x.shape
    assert D % n_head == 0
    hd = D // n_head
    if tq is None:
        tq = min(T, 128)
    assert T % tq == 0 and tq % 8 == 0, (T, tq)

    # bf16 weights for MXU-native matmuls (accumulation stays f32 in-kernel);
    # LayerNorm params and biases stay f32.
    attn_w = params["attn_w"].astype(jnp.bfloat16)
    proj_w = params["proj_w"].astype(jnp.bfloat16)
    fc_w = params["fc_w"].astype(jnp.bfloat16)
    fc2_w = params["fc2_w"].astype(jnp.bfloat16)

    operands = (
        x,
        params["ln1_w"], params["ln1_b"],
        attn_w, params["attn_b"],
        proj_w, params["proj_b"],
        params["ln2_w"], params["ln2_b"],
        fc_w, params["fc_b"],
        fc2_w, params["fc2_b"],
    )

    def full_spec(arr):
        shape = arr.shape
        return pl.BlockSpec(shape, lambda b, q: (0,) * len(shape))

    in_specs = [pl.BlockSpec((1, T, D), lambda b, q: (b, 0, 0))]
    in_specs += [full_spec(op) for op in operands[1:]]

    # Scoped-VMEM budget: double-buffered weights + tile activations + QKV
    # scratch, ~2x headroom, kept well under v7x's 64 MiB physical VMEM.
    nbytes = lambda a: a.size * a.dtype.itemsize
    weight_bytes = sum(nbytes(op) for op in operands[1:])
    act_bytes = (2 * T * D * 4                 # x block (double-buffered)
                 + 2 * tq * D * 4              # output tile (double-buffered)
                 + 3 * n_head * T * hd * 2     # bf16 q/k/v scratch
                 + tq * D * 2                  # bf16 merged-context scratch
                 + 3 * T * D * 4               # qkv temporary at qi == 0
                 + 3 * n_head * tq * T * 4     # scores / exp / probs
                 + 2 * tq * 4 * D * 4)         # MLP hidden temporaries
    vmem_limit = int(min(48 * 2 ** 20,
                         max(8 * 2 ** 20, 2 * (2 * weight_bytes + act_bytes))))

    kernel = functools.partial(block_kernel, n_head, tq)

    return pl.pallas_call(
        kernel,
        out_shape=jax.ShapeDtypeStruct((B, T, D), jnp.float32),
        grid=(B, T // tq),
        in_specs=in_specs,
        out_specs=pl.BlockSpec((1, tq, D), lambda b, q: (b, q, 0)),
        scratch_shapes=[pltpu.VMEM((n_head, T, hd), jnp.bfloat16)] * 3
                       + [pltpu.VMEM((tq, D), jnp.bfloat16)],
        compiler_params=pltpu.CompilerParams(
            dimension_semantics=("parallel", "arbitrary"),
            vmem_limit_bytes=vmem_limit),
    )(*operands)


def init_params(key, n_embed):
    D = n_embed
    ks = jax.random.split(key, 4)
    std = 0.02
    return {
        # LayerNorm params kept as (1, D) for TPU-friendly 2D layouts.
        "ln1_w": jnp.ones((1, D), jnp.float32),
        "ln1_b": jnp.zeros((1, D), jnp.float32),
        "attn_w": (std * jax.random.normal(ks[0], (D, 3 * D))).astype(jnp.float32),
        "attn_b": jnp.zeros((1, 3 * D), jnp.float32),
        "proj_w": (std * jax.random.normal(ks[1], (D, D))).astype(jnp.float32),
        "proj_b": jnp.zeros((1, D), jnp.float32),
        "ln2_w": jnp.ones((1, D), jnp.float32),
        "ln2_b": jnp.zeros((1, D), jnp.float32),
        "fc_w": (std * jax.random.normal(ks[2], (D, 4 * D))).astype(jnp.float32),
        "fc_b": jnp.zeros((1, 4 * D), jnp.float32),
        "fc2_w": (std * jax.random.normal(ks[3], (4 * D, D))).astype(jnp.float32),
        "fc2_b": jnp.zeros((1, D), jnp.float32),
    }


def block_reference(x, params, n_head):
    """Pure-JAX f32 reference mirroring the PyTorch Block.forward (dropout=0)."""
    B, T, D = x.shape
    hd = D // n_head

    h = _layer_norm(x, params["ln1_w"], params["ln1_b"])
    qkv = h @ params["attn_w"] + params["attn_b"]
    q, k, v = jnp.split(qkv, 3, axis=-1)
    q = q.reshape(B, T, n_head, hd).transpose(0, 2, 1, 3)
    k = k.reshape(B, T, n_head, hd).transpose(0, 2, 3, 1)
    v = v.reshape(B, T, n_head, hd).transpose(0, 2, 1, 3)
    w = jnp.matmul(q, k) / math.sqrt(hd)
    causal = jnp.tril(jnp.ones((T, T), bool))
    w = jnp.where(causal[None, None], w, jnp.float32(-10000.0))
    w = jax.nn.softmax(w, axis=-1)
    a = jnp.matmul(w, v).transpose(0, 2, 1, 3).reshape(B, T, D)
    a = a @ params["proj_w"] + params["proj_b"]
    x = x + a
    h2 = _layer_norm(x, params["ln2_w"], params["ln2_b"])
    ff = _gelu_new(h2 @ params["fc_w"] + params["fc_b"])
    ff = ff @ params["fc2_w"] + params["fc2_b"]
    return x + ff


if __name__ == "__main__":
    # Small but lane-/sublane-aligned config (D multiple of 128, T multiple
    # of 8) so all matmul operands are unmasked full vregs; two query tiles
    # per batch element exercise the cached-QKV path (qi > 0).
    B, T, D, H = 2, 128, 128, 4       # batch, seq (= n_context), n_embed, n_head
    key = jax.random.PRNGKey(0)
    k_x, k_p = jax.random.split(key)
    x = jax.random.normal(k_x, (B, T, D), dtype=jnp.float32)
    params = init_params(k_p, D)

    out = jax.block_until_ready(block_forward(x, params, H, tq=64))
    ref = block_reference(x, params, H)

    assert out.shape == (B, T, D)
    err = float(jnp.max(jnp.abs(out - ref)))
    # bf16 matmul operands (f32 accumulation) -> looser tolerance than pure f32.
    assert jnp.allclose(out, ref, atol=2e-2, rtol=2e-2), err
    print("KERNEL_OK")
</pallas_src>

<mosaic_0001>
module attributes {stable_mosaic.version = 11 : i64} {
  func.func @block_kernel(%arg0: i32, %arg1: i32, %arg2: memref<1x128x128xf32, #tpu.memory_space<vmem>>, %arg3: memref<1x128xf32, #tpu.memory_space<vmem>>, %arg4: memref<1x128xf32, #tpu.memory_space<vmem>>, %arg5: memref<128x384xbf16, #tpu.memory_space<vmem>>, %arg6: memref<1x384xf32, #tpu.memory_space<vmem>>, %arg7: memref<128x128xbf16, #tpu.memory_space<vmem>>, %arg8: memref<1x128xf32, #tpu.memory_space<vmem>>, %arg9: memref<1x128xf32, #tpu.memory_space<vmem>>, %arg10: memref<1x128xf32, #tpu.memory_space<vmem>>, %arg11: memref<128x512xbf16, #tpu.memory_space<vmem>>, %arg12: memref<1x512xf32, #tpu.memory_space<vmem>>, %arg13: memref<512x128xbf16, #tpu.memory_space<vmem>>, %arg14: memref<1x128xf32, #tpu.memory_space<vmem>>, %arg15: memref<1x64x128xf32, #tpu.memory_space<vmem>>, %arg16: memref<4x128x32xbf16, #tpu.memory_space<vmem>>, %arg17: memref<4x128x32xbf16, #tpu.memory_space<vmem>>, %arg18: memref<4x128x32xbf16, #tpu.memory_space<vmem>>, %arg19: memref<64x128xbf16, #tpu.memory_space<vmem>>) attributes {dimension_semantics = [#tpu.dimension_semantics<parallel>, #tpu.dimension_semantics<arbitrary>], iteration_bounds = array<i64: 2, 2>, scalar_prefetch = 0 : i64, scratch_operands = 4 : i64, tpu.core_type = #tpu.core_type<tc>, window_params = [{transform_indices = @transform_0, window_bounds = array<i64: 1, 128, 128>}, {pipeline_mode = #tpu.pipeline_mode<synchronous>, transform_indices = @transform_1, window_bounds = array<i64: 1, 128>}, {pipeline_mode = #tpu.pipeline_mode<synchronous>, transform_indices = @transform_2, window_bounds = array<i64: 1, 128>}, {pipeline_mode = #tpu.pipeline_mode<synchronous>, transform_indices = @transform_3, window_bounds = array<i64: 128, 384>}, {pipeline_mode = #tpu.pipeline_mode<synchronous>, transform_indices = @transform_4, window_bounds = array<i64: 1, 384>}, {pipeline_mode = #tpu.pipeline_mode<synchronous>, transform_indices = @transform_5, window_bounds = array<i64: 128, 128>}, {pipeline_mode = #tpu.pipeline_mode<synchronous>, transform_indices = @transform_6, window_bounds = array<i64: 1, 128>}, {pipeline_mode = #tpu.pipeline_mode<synchronous>, transform_indices = @transform_7, window_bounds = array<i64: 1, 128>}, {pipeline_mode = #tpu.pipeline_mode<synchronous>, transform_indices = @transform_8, window_bounds = array<i64: 1, 128>}, {pipeline_mode = #tpu.pipeline_mode<synchronous>, transform_indices = @transform_9, window_bounds = array<i64: 128, 512>}, {pipeline_mode = #tpu.pipeline_mode<synchronous>, transform_indices = @transform_10, window_bounds = array<i64: 1, 512>}, {pipeline_mode = #tpu.pipeline_mode<synchronous>, transform_indices = @transform_11, window_bounds = array<i64: 512, 128>}, {pipeline_mode = #tpu.pipeline_mode<synchronous>, transform_indices = @transform_12, window_bounds = array<i64: 1, 128>}, {transform_indices = @transform_13, window_bounds = array<i64: 1, 64, 128>}]} {
    %c0_i32 = arith.constant 0 : i32
    %0 = arith.cmpi eq, %arg1, %c0_i32 : i32
    %1 = arith.extui %0 : i1 to i32
    %c0_i32_0 = arith.constant 0 : i32
    %2 = arith.cmpi ne, %1, %c0_i32_0 : i32
    scf.if %2 {
      %c0_52 = arith.constant 0 : index
      %c0_53 = arith.constant 0 : index
      %c0_54 = arith.constant 0 : index
      %111 = vector.load %arg2[%c0_52, %c0_53, %c0_54] : memref<1x128x128xf32, #tpu.memory_space<vmem>>, vector<1x128x128xf32>
      %112 = vector.shape_cast %111 : vector<1x128x128xf32> to vector<128x128xf32>
      %c0_55 = arith.constant 0 : index
      %c0_56 = arith.constant 0 : index
      %113 = vector.load %arg3[%c0_55, %c0_56] : memref<1x128xf32, #tpu.memory_space<vmem>>, vector<1x128xf32>
      %c0_57 = arith.constant 0 : index
      %c0_58 = arith.constant 0 : index
      %114 = vector.load %arg4[%c0_57, %c0_58] : memref<1x128xf32, #tpu.memory_space<vmem>>, vector<1x128xf32>
      %cst_59 = arith.constant dense<0.000000e+00> : vector<128xf32>
      %115 = vector.multi_reduction <add>, %112, %cst_59 [1] : vector<128x128xf32> to vector<128xf32>
      %116 = vector.shape_cast %115 : vector<128xf32> to vector<128x1xf32>
      %cst_60 = arith.constant 1.280000e+02 : f32
      %117 = vector.broadcast %cst_60 : f32 to vector<128x1xf32>
      %118 = arith.divf %116, %117 : vector<128x1xf32>
      %119 = arith.mulf %112, %112 : vector<128x128xf32>
      %cst_61 = arith.constant dense<0.000000e+00> : vector<128xf32>
      %120 = vector.multi_reduction <add>, %119, %cst_61 [1] : vector<128x128xf32> to vector<128xf32>
      %121 = vector.shape_cast %120 : vector<128xf32> to vector<128x1xf32>
      %cst_62 = arith.constant 1.280000e+02 : f32
      %122 = vector.broadcast %cst_62 : f32 to vector<128x1xf32>
      %123 = arith.divf %121, %122 : vector<128x1xf32>
      %124 = arith.mulf %118, %118 : vector<128x1xf32>
      %125 = arith.subf %123, %124 : vector<128x1xf32>
      %126 = vector.broadcast %118 : vector<128x1xf32> to vector<128x128xf32>
      %127 = arith.subf %112, %126 : vector<128x128xf32>
      %cst_63 = arith.constant 9.99999974E-6 : f32
      %128 = vector.broadcast %cst_63 : f32 to vector<128x1xf32>
      %129 = arith.addf %125, %128 : vector<128x1xf32>
      %130 = math.rsqrt %129 : vector<128x1xf32>
      %131 = vector.broadcast %130 : vector<128x1xf32> to vector<128x128xf32>
      %132 = arith.mulf %127, %131 : vector<128x128xf32>
      %133 = vector.broadcast %113 : vector<1x128xf32> to vector<128x128xf32>
      %134 = arith.mulf %132, %133 : vector<128x128xf32>
      %135 = vector.broadcast %114 : vector<1x128xf32> to vector<128x128xf32>
      %136 = arith.addf %134, %135 : vector<128x128xf32>
      %137 = arith.truncf %136 : vector<128x128xf32> to vector<128x128xbf16>
      %c0_64 = arith.constant 0 : index
      %c0_65 = arith.constant 0 : index
      %138 = vector.load %arg5[%c0_64, %c0_65] : memref<128x384xbf16, #tpu.memory_space<vmem>>, vector<128x384xbf16>
      %cst_66 = arith.constant dense<0.000000e+00> : vector<128x384xf32>
      %139 = tpu.matmul %137, %138, %cst_66 {dimension_numbers = #tpu.dot_dimension_numbers<[1], [0], [0], [1], [0, 0, 1, 1], [], []>} : vector<128x128xbf16>, vector<128x384xbf16>, vector<128x384xf32> -> vector<128x384xf32>
      %c0_67 = arith.constant 0 : index
      %c0_68 = arith.constant 0 : index
      %140 = vector.load %arg6[%c0_67, %c0_68] : memref<1x384xf32, #tpu.memory_space<vmem>>, vector<1x384xf32>
      %141 = vector.broadcast %140 : vector<1x384xf32> to vector<128x384xf32>
      %142 = arith.addf %139, %141 : vector<128x384xf32>
      %143 = vector.extract_strided_slice %142 {offsets = [0, 0], sizes = [128, 128], strides = [1, 1]} : vector<128x384xf32> to vector<128x128xf32>
      %cst_69 = arith.constant 0.176776692 : f32
      %144 = vector.broadcast %cst_69 : f32 to vector<128x128xf32>
      %145 = arith.mulf %143, %144 : vector<128x128xf32>
      %146 = vector.extract_strided_slice %145 {offsets = [0, 0], sizes = [128, 32], strides = [1, 1]} : vector<128x128xf32> to vector<128x32xf32>
      %147 = arith.truncf %146 : vector<128x32xf32> to vector<128x32xbf16>
      %c0_70 = arith.constant 0 : index
      %c0_71 = arith.constant 0 : index
      %c0_72 = arith.constant 0 : index
      %148 = vector.load %arg16[%c0_70, %c0_71, %c0_72] : memref<4x128x32xbf16, #tpu.memory_space<vmem>>, vector<1x128x32xbf16>
      %149 = vector.shape_cast %148 : vector<1x128x32xbf16> to vector<128x32xbf16>
      %150 = vector.shape_cast %147 : vector<128x32xbf16> to vector<1x128x32xbf16>
      tpu.vector_store %arg16[%c0_70, %c0_71, %c0_72], %150 {strides = array<i32>} : memref<4x128x32xbf16, #tpu.memory_space<vmem>>, vector<1x128x32xbf16>,
      %151 = vector.extract_strided_slice %142 {offsets = [0, 128], sizes = [128, 32], strides = [1, 1]} : vector<128x384xf32> to vector<128x32xf32>
      %152 = arith.truncf %151 : vector<128x32xf32> to vector<128x32xbf16>
      %c0_73 = arith.constant 0 : index
      %c0_74 = arith.constant 0 : index
      %c0_75 = arith.constant 0 : index
      %153 = vector.load %arg17[%c0_73, %c0_74, %c0_75] : memref<4x128x32xbf16, #tpu.memory_space<vmem>>, vector<1x128x32xbf16>
      %154 = vector.shape_cast %153 : vector<1x128x32xbf16> to vector<128x32xbf16>
      %155 = vector.shape_cast %152 : vector<128x32xbf16> to vector<1x128x32xbf16>
      tpu.vector_store %arg17[%c0_73, %c0_74, %c0_75], %155 {strides = array<i32>} : memref<4x128x32xbf16, #tpu.memory_space<vmem>>, vector<1x128x32xbf16>,
      %156 = vector.extract_strided_slice %142 {offsets = [0, 256], sizes = [128, 32], strides = [1, 1]} : vector<128x384xf32> to vector<128x32xf32>
      %157 = arith.truncf %156 : vector<128x32xf32> to vector<128x32xbf16>
      %c0_76 = arith.constant 0 : index
      %c0_77 = arith.constant 0 : index
      %c0_78 = arith.constant 0 : index
      %158 = vector.load %arg18[%c0_76, %c0_77, %c0_78] : memref<4x128x32xbf16, #tpu.memory_space<vmem>>, vector<1x128x32xbf16>
      %159 = vector.shape_cast %158 : vector<1x128x32xbf16> to vector<128x32xbf16>
      %160 = vector.shape_cast %157 : vector<128x32xbf16> to vector<1x128x32xbf16>
      tpu.vector_store %arg18[%c0_76, %c0_77, %c0_78], %160 {strides = array<i32>} : memref<4x128x32xbf16, #tpu.memory_space<vmem>>, vector<1x128x32xbf16>,
      %161 = vector.extract_strided_slice %145 {offsets = [0, 32], sizes = [128, 32], strides = [1, 1]} : vector<128x128xf32> to vector<128x32xf32>
      %162 = arith.truncf %161 : vector<128x32xf32> to vector<128x32xbf16>
      %c1 = arith.constant 1 : index
      %c0_79 = arith.constant 0 : index
      %c0_80 = arith.constant 0 : index
      %163 = vector.load %arg16[%c1, %c0_79, %c0_80] : memref<4x128x32xbf16, #tpu.memory_space<vmem>>, vector<1x128x32xbf16>
      %164 = vector.shape_cast %163 : vector<1x128x32xbf16> to vector<128x32xbf16>
      %165 = vector.shape_cast %162 : vector<128x32xbf16> to vector<1x128x32xbf16>
      tpu.vector_store %arg16[%c1, %c0_79, %c0_80], %165 {strides = array<i32>} : memref<4x128x32xbf16, #tpu.memory_space<vmem>>, vector<1x128x32xbf16>,
      %166 = vector.extract_strided_slice %142 {offsets = [0, 160], sizes = [128, 32], strides = [1, 1]} : vector<128x384xf32> to vector<128x32xf32>
      %167 = arith.truncf %166 : vector<128x32xf32> to vector<128x32xbf16>
      %c1_81 = arith.constant 1 : index
      %c0_82 = arith.constant 0 : index
      %c0_83 = arith.constant 0 : index
      %168 = vector.load %arg17[%c1_81, %c0_82, %c0_83] : memref<4x128x32xbf16, #tpu.memory_space<vmem>>, vector<1x128x32xbf16>
      %169 = vector.shape_cast %168 : vector<1x128x32xbf16> to vector<128x32xbf16>
      %170 = vector.shape_cast %167 : vector<128x32xbf16> to vector<1x128x32xbf16>
      tpu.vector_store %arg17[%c1_81, %c0_82, %c0_83], %170 {strides = array<i32>} : memref<4x128x32xbf16, #tpu.memory_space<vmem>>, vector<1x128x32xbf16>,
      %171 = vector.extract_strided_slice %142 {offsets = [0, 288], sizes = [128, 32], strides = [1, 1]} : vector<128x384xf32> to vector<128x32xf32>
      %172 = arith.truncf %171 : vector<128x32xf32> to vector<128x32xbf16>
      %c1_84 = arith.constant 1 : index
      %c0_85 = arith.constant 0 : index
      %c0_86 = arith.constant 0 : index
      %173 = vector.load %arg18[%c1_84, %c0_85, %c0_86] : memref<4x128x32xbf16, #tpu.memory_space<vmem>>, vector<1x128x32xbf16>
      %174 = vector.shape_cast %173 : vector<1x128x32xbf16> to vector<128x32xbf16>
      %175 = vector.shape_cast %172 : vector<128x32xbf16> to vector<1x128x32xbf16>
      tpu.vector_store %arg18[%c1_84, %c0_85, %c0_86], %175 {strides = array<i32>} : memref<4x128x32xbf16, #tpu.memory_space<vmem>>, vector<1x128x32xbf16>,
      %176 = vector.extract_strided_slice %145 {offsets = [0, 64], sizes = [128, 32], strides = [1, 1]} : vector<128x128xf32> to vector<128x32xf32>
      %177 = arith.truncf %176 : vector<128x32xf32> to vector<128x32xbf16>
      %c2 = arith.constant 2 : index
      %c0_87 = arith.constant 0 : index
      %c0_88 = arith.constant 0 : index
      %178 = vector.load %arg16[%c2, %c0_87, %c0_88] : memref<4x128x32xbf16, #tpu.memory_space<vmem>>, vector<1x128x32xbf16>
      %179 = vector.shape_cast %178 : vector<1x128x32xbf16> to vector<128x32xbf16>
      %180 = vector.shape_cast %177 : vector<128x32xbf16> to vector<1x128x32xbf16>
      tpu.vector_store %arg16[%c2, %c0_87, %c0_88], %180 {strides = array<i32>} : memref<4x128x32xbf16, #tpu.memory_space<vmem>>, vector<1x128x32xbf16>,
      %181 = vector.extract_strided_slice %142 {offsets = [0, 192], sizes = [128, 32], strides = [1, 1]} : vector<128x384xf32> to vector<128x32xf32>
      %182 = arith.truncf %181 : vector<128x32xf32> to vector<128x32xbf16>
      %c2_89 = arith.constant 2 : index
      %c0_90 = arith.constant 0 : index
      %c0_91 = arith.constant 0 : index
      %183 = vector.load %arg17[%c2_89, %c0_90, %c0_91] : memref<4x128x32xbf16, #tpu.memory_space<vmem>>, vector<1x128x32xbf16>
      %184 = vector.shape_cast %183 : vector<1x128x32xbf16> to vector<128x32xbf16>
      %185 = vector.shape_cast %182 : vector<128x32xbf16> to vector<1x128x32xbf16>
      tpu.vector_store %arg17[%c2_89, %c0_90, %c0_91], %185 {strides = array<i32>} : memref<4x128x32xbf16, #tpu.memory_space<vmem>>, vector<1x128x32xbf16>,
      %186 = vector.extract_strided_slice %142 {offsets = [0, 320], sizes = [128, 32], strides = [1, 1]} : vector<128x384xf32> to vector<128x32xf32>
      %187 = arith.truncf %186 : vector<128x32xf32> to vector<128x32xbf16>
      %c2_92 = arith.constant 2 : index
      %c0_93 = arith.constant 0 : index
      %c0_94 = arith.constant 0 : index
      %188 = vector.load %arg18[%c2_92, %c0_93, %c0_94] : memref<4x128x32xbf16, #tpu.memory_space<vmem>>, vector<1x128x32xbf16>
      %189 = vector.shape_cast %188 : vector<1x128x32xbf16> to vector<128x32xbf16>
      %190 = vector.shape_cast %187 : vector<128x32xbf16> to vector<1x128x32xbf16>
      tpu.vector_store %arg18[%c2_92, %c0_93, %c0_94], %190 {strides = array<i32>} : memref<4x128x32xbf16, #tpu.memory_space<vmem>>, vector<1x128x32xbf16>,
      %191 = vector.extract_strided_slice %145 {offsets = [0, 96], sizes = [128, 32], strides = [1, 1]} : vector<128x128xf32> to vector<128x32xf32>
      %192 = arith.truncf %191 : vector<128x32xf32> to vector<128x32xbf16>
      %c3 = arith.constant 3 : index
      %c0_95 = arith.constant 0 : index
      %c0_96 = arith.constant 0 : index
      %193 = vector.load %arg16[%c3, %c0_95, %c0_96] : memref<4x128x32xbf16, #tpu.memory_space<vmem>>, vector<1x128x32xbf16>
      %194 = vector.shape_cast %193 : vector<1x128x32xbf16> to vector<128x32xbf16>
      %195 = vector.shape_cast %192 : vector<128x32xbf16> to vector<1x128x32xbf16>
      tpu.vector_store %arg16[%c3, %c0_95, %c0_96], %195 {strides = array<i32>} : memref<4x128x32xbf16, #tpu.memory_space<vmem>>, vector<1x128x32xbf16>,
      %196 = vector.extract_strided_slice %142 {offsets = [0, 224], sizes = [128, 32], strides = [1, 1]} : vector<128x384xf32> to vector<128x32xf32>
      %197 = arith.truncf %196 : vector<128x32xf32> to vector<128x32xbf16>
      %c3_97 = arith.constant 3 : index
      %c0_98 = arith.constant 0 : index
      %c0_99 = arith.constant 0 : index
      %198 = vector.load %arg17[%c3_97, %c0_98, %c0_99] : memref<4x128x32xbf16, #tpu.memory_space<vmem>>, vector<1x128x32xbf16>
      %199 = vector.shape_cast %198 : vector<1x128x32xbf16> to vector<128x32xbf16>
      %200 = vector.shape_cast %197 : vector<128x32xbf16> to vector<1x128x32xbf16>
      tpu.vector_store %arg17[%c3_97, %c0_98, %c0_99], %200 {strides = array<i32>} : memref<4x128x32xbf16, #tpu.memory_space<vmem>>, vector<1x128x32xbf16>,
      %201 = vector.extract_strided_slice %142 {offsets = [0, 352], sizes = [128, 32], strides = [1, 1]} : vector<128x384xf32> to vector<128x32xf32>
      %202 = arith.truncf %201 : vector<128x32xf32> to vector<128x32xbf16>
      %c3_100 = arith.constant 3 : index
      %c0_101 = arith.constant 0 : index
      %c0_102 = arith.constant 0 : index
      %203 = vector.load %arg18[%c3_100, %c0_101, %c0_102] : memref<4x128x32xbf16, #tpu.memory_space<vmem>>, vector<1x128x32xbf16>
      %204 = vector.shape_cast %203 : vector<1x128x32xbf16> to vector<128x32xbf16>
      %205 = vector.shape_cast %202 : vector<128x32xbf16> to vector<1x128x32xbf16>
      tpu.vector_store %arg18[%c3_100, %c0_101, %c0_102], %205 {strides = array<i32>} : memref<4x128x32xbf16, #tpu.memory_space<vmem>>, vector<1x128x32xbf16>,
    } else {
    }
    %c64_i32 = arith.constant 64 : i32
    %3 = arith.muli %arg1, %c64_i32 : i32
    %4 = tpu.assume_multiple %3, 64 : i32
    %c0 = arith.constant 0 : index
    %5 = arith.index_cast %4 : i32 to index
    %c0_1 = arith.constant 0 : index
    %6 = vector.load %arg16[%c0, %5, %c0_1] : memref<4x128x32xbf16, #tpu.memory_space<vmem>>, vector<4x64x32xbf16>
    %c0_2 = arith.constant 0 : index
    %c0_3 = arith.constant 0 : index
    %c0_4 = arith.constant 0 : index
    %7 = vector.load %arg17[%c0_2, %c0_3, %c0_4] : memref<4x128x32xbf16, #tpu.memory_space<vmem>>, vector<4x128x32xbf16>
    "tpu.trace_start"() <{level = 10 : i32, message = "hqd,hkd->hqk"}> : () -> ()
    %cst = arith.constant dense<0.000000e+00> : vector<4x64x128xf32>
    %8 = tpu.matmul %6, %7, %cst {dimension_numbers = #tpu.dot_dimension_numbers<[2], [2], [1], [1], [0, 0, 0, 1, 1, 1], [0], [0]>} : vector<4x64x32xbf16>, vector<4x128x32xbf16>, vector<4x64x128xf32> -> vector<4x64x128xf32>
    "tpu.trace_stop"() : () -> ()
    %9 = tpu.iota {dimensions = array<i32: 0>} : vector<64x128xi32>
    %10 = vector.broadcast %4 : i32 to vector<64x128xi32>
    %11 = arith.addi %9, %10 : vector<64x128xi32>
    %12 = tpu.iota {dimensions = array<i32: 1>} : vector<64x128xi32>
    %13 = arith.cmpi sge, %11, %12 : vector<64x128xi32>
    %14 = vector.shape_cast %13 : vector<64x128xi1> to vector<1x64x128xi1>
    %cst_5 = arith.constant -1.000000e+04 : f32
    %15 = vector.shape_cast %14 : vector<1x64x128xi1> to vector<1x64x128xi1>
    %16 = vector.broadcast %15 : vector<1x64x128xi1> to vector<4x64x128xi1>
    %17 = vector.broadcast %cst_5 : f32 to vector<4x64x128xf32>
    %18 = arith.select %16, %8, %17 : vector<4x64x128xi1>, vector<4x64x128xf32>
    %cst_6 = arith.constant dense<0xFF800000> : vector<4x64xf32>
    %19 = vector.multi_reduction <maximumf>, %18, %cst_6 [2] : vector<4x64x128xf32> to vector<4x64xf32>
    %20 = vector.shape_cast %19 : vector<4x64xf32> to vector<4x64x1xf32>
    %21 = vector.broadcast %20 : vector<4x64x1xf32> to vector<4x64x128xf32>
    %22 = arith.subf %18, %21 : vector<4x64x128xf32>
    %23 = math.exp %22 : vector<4x64x128xf32>
    %cst_7 = arith.constant dense<0.000000e+00> : vector<4x64xf32>
    %24 = vector.multi_reduction <add>, %23, %cst_7 [2] : vector<4x64x128xf32> to vector<4x64xf32>
    %25 = vector.shape_cast %24 : vector<4x64xf32> to vector<4x64x1xf32>
    %26 = tpu.reciprocal %25 {approx = true} : vector<4x64x1xf32> -> vector<4x64x1xf32>
    %27 = vector.broadcast %26 : vector<4x64x1xf32> to vector<4x64x128xf32>
    %28 = arith.mulf %23, %27 : vector<4x64x128xf32>
    %29 = arith.truncf %28 : vector<4x64x128xf32> to vector<4x64x128xbf16>
    %c0_8 = arith.constant 0 : index
    %c0_9 = arith.constant 0 : index
    %c0_10 = arith.constant 0 : index
    %30 = vector.load %arg18[%c0_8, %c0_9, %c0_10] : memref<4x128x32xbf16, #tpu.memory_space<vmem>>, vector<4x128x32xbf16>
    "tpu.trace_start"() <{level = 10 : i32, message = "hqk,hkd->hqd"}> : () -> ()
    %cst_11 = arith.constant dense<0.000000e+00> : vector<4x64x32xf32>
    %31 = tpu.matmul %29, %30, %cst_11 {dimension_numbers = #tpu.dot_dimension_numbers<[2], [1], [1], [2], [0, 0, 0, 1, 1, 2], [0], [0]>} : vector<4x64x128xbf16>, vector<4x128x32xbf16>, vector<4x64x32xf32> -> vector<4x64x32xf32>
    "tpu.trace_stop"() : () -> ()
    %32 = vector.extract_strided_slice %31 {offsets = [0, 0, 0], sizes = [1, 64, 32], strides = [1, 1, 1]} : vector<4x64x32xf32> to vector<1x64x32xf32>
    %33 = vector.shape_cast %32 : vector<1x64x32xf32> to vector<64x32xf32>
    %34 = arith.truncf %33 : vector<64x32xf32> to vector<64x32xbf16>
    %c0_12 = arith.constant 0 : index
    %c0_13 = arith.constant 0 : index
    %35 = vector.load %arg19[%c0_12, %c0_13] : memref<64x128xbf16, #tpu.memory_space<vmem>>, vector<64x32xbf16>
    tpu.vector_store %arg19[%c0_12, %c0_13], %34 {strides = array<i32>} : memref<64x128xbf16, #tpu.memory_space<vmem>>, vector<64x32xbf16>,
    %36 = vector.extract_strided_slice %31 {offsets = [1, 0, 0], sizes = [1, 64, 32], strides = [1, 1, 1]} : vector<4x64x32xf32> to vector<1x64x32xf32>
    %37 = vector.shape_cast %36 : vector<1x64x32xf32> to vector<64x32xf32>
    %38 = arith.truncf %37 : vector<64x32xf32> to vector<64x32xbf16>
    %c0_14 = arith.constant 0 : index
    %c32 = arith.constant 32 : index
    %39 = vector.load %arg19[%c0_14, %c32] : memref<64x128xbf16, #tpu.memory_space<vmem>>, vector<64x32xbf16>
    tpu.vector_store %arg19[%c0_14, %c32], %38 {strides = array<i32>} : memref<64x128xbf16, #tpu.memory_space<vmem>>, vector<64x32xbf16>,
    %40 = vector.extract_strided_slice %31 {offsets = [2, 0, 0], sizes = [1, 64, 32], strides = [1, 1, 1]} : vector<4x64x32xf32> to vector<1x64x32xf32>
    %41 = vector.shape_cast %40 : vector<1x64x32xf32> to vector<64x32xf32>
    %42 = arith.truncf %41 : vector<64x32xf32> to vector<64x32xbf16>
    %c0_15 = arith.constant 0 : index
    %c64 = arith.constant 64 : index
    %43 = vector.load %arg19[%c0_15, %c64] : memref<64x128xbf16, #tpu.memory_space<vmem>>, vector<64x32xbf16>
    tpu.vector_store %arg19[%c0_15, %c64], %42 {strides = array<i32>} : memref<64x128xbf16, #tpu.memory_space<vmem>>, vector<64x32xbf16>,
    %44 = vector.extract_strided_slice %31 {offsets = [3, 0, 0], sizes = [1, 64, 32], strides = [1, 1, 1]} : vector<4x64x32xf32> to vector<1x64x32xf32>
    %45 = vector.shape_cast %44 : vector<1x64x32xf32> to vector<64x32xf32>
    %46 = arith.truncf %45 : vector<64x32xf32> to vector<64x32xbf16>
    %c0_16 = arith.constant 0 : index
    %c96 = arith.constant 96 : index
    %47 = vector.load %arg19[%c0_16, %c96] : memref<64x128xbf16, #tpu.memory_space<vmem>>, vector<64x32xbf16>
    tpu.vector_store %arg19[%c0_16, %c96], %46 {strides = array<i32>} : memref<64x128xbf16, #tpu.memory_space<vmem>>, vector<64x32xbf16>,
    %c0_17 = arith.constant 0 : index
    %c0_18 = arith.constant 0 : index
    %48 = vector.load %arg19[%c0_17, %c0_18] : memref<64x128xbf16, #tpu.memory_space<vmem>>, vector<64x128xbf16>
    %c0_19 = arith.constant 0 : index
    %c0_20 = arith.constant 0 : index
    %49 = vector.load %arg7[%c0_19, %c0_20] : memref<128x128xbf16, #tpu.memory_space<vmem>>, vector<128x128xbf16>
    %cst_21 = arith.constant dense<0.000000e+00> : vector<64x128xf32>
    %50 = tpu.matmul %48, %49, %cst_21 {dimension_numbers = #tpu.dot_dimension_numbers<[1], [0], [0], [1], [0, 0, 1, 1], [], []>} : vector<64x128xbf16>, vector<128x128xbf16>, vector<64x128xf32> -> vector<64x128xf32>
    %c0_22 = arith.constant 0 : index
    %c0_23 = arith.constant 0 : index
    %51 = vector.load %arg8[%c0_22, %c0_23] : memref<1x128xf32, #tpu.memory_space<vmem>>, vector<1x128xf32>
    %52 = vector.broadcast %51 : vector<1x128xf32> to vector<64x128xf32>
    %53 = arith.addf %50, %52 : vector<64x128xf32>
    %c0_24 = arith.constant 0 : index
    %54 = arith.index_cast %4 : i32 to index
    %c0_25 = arith.constant 0 : index
    %55 = vector.load %arg2[%c0_24, %54, %c0_25] : memref<1x128x128xf32, #tpu.memory_space<vmem>>, vector<1x64x128xf32>
    %56 = vector.shape_cast %55 : vector<1x64x128xf32> to vector<64x128xf32>
    %57 = arith.addf %56, %53 : vector<64x128xf32>
    %c0_26 = arith.constant 0 : index
    %c0_27 = arith.constant 0 : index
    %58 = vector.load %arg9[%c0_26, %c0_27] : memref<1x128xf32, #tpu.memory_space<vmem>>, vector<1x128xf32>
    %c0_28 = arith.constant 0 : index
    %c0_29 = arith.constant 0 : index
    %59 = vector.load %arg10[%c0_28, %c0_29] : memref<1x128xf32, #tpu.memory_space<vmem>>, vector<1x128xf32>
    %cst_30 = arith.constant dense<0.000000e+00> : vector<64xf32>
    %60 = vector.multi_reduction <add>, %57, %cst_30 [1] : vector<64x128xf32> to vector<64xf32>
    %61 = vector.shape_cast %60 : vector<64xf32> to vector<64x1xf32>
    %cst_31 = arith.constant 1.280000e+02 : f32
    %62 = vector.broadcast %cst_31 : f32 to vector<64x1xf32>
    %63 = arith.divf %61, %62 : vector<64x1xf32>
    %64 = arith.mulf %57, %57 : vector<64x128xf32>
    %cst_32 = arith.constant dense<0.000000e+00> : vector<64xf32>
    %65 = vector.multi_reduction <add>, %64, %cst_32 [1] : vector<64x128xf32> to vector<64xf32>
    %66 = vector.shape_cast %65 : vector<64xf32> to vector<64x1xf32>
    %cst_33 = arith.constant 1.280000e+02 : f32
    %67 = vector.broadcast %cst_33 : f32 to vector<64x1xf32>
    %68 = arith.divf %66, %67 : vector<64x1xf32>
    %69 = arith.mulf %63, %63 : vector<64x1xf32>
    %70 = arith.subf %68, %69 : vector<64x1xf32>
    %71 = vector.broadcast %63 : vector<64x1xf32> to vector<64x128xf32>
    %72 = arith.subf %57, %71 : vector<64x128xf32>
    %cst_34 = arith.constant 9.99999974E-6 : f32
    %73 = vector.broadcast %cst_34 : f32 to vector<64x1xf32>
    %74 = arith.addf %70, %73 : vector<64x1xf32>
    %75 = math.rsqrt %74 : vector<64x1xf32>
    %76 = vector.broadcast %75 : vector<64x1xf32> to vector<64x128xf32>
    %77 = arith.mulf %72, %76 : vector<64x128xf32>
    %78 = vector.broadcast %58 : vector<1x128xf32> to vector<64x128xf32>
    %79 = arith.mulf %77, %78 : vector<64x128xf32>
    %80 = vector.broadcast %59 : vector<1x128xf32> to vector<64x128xf32>
    %81 = arith.addf %79, %80 : vector<64x128xf32>
    %82 = arith.truncf %81 : vector<64x128xf32> to vector<64x128xbf16>
    %c0_35 = arith.constant 0 : index
    %c0_36 = arith.constant 0 : index
    %83 = vector.load %arg11[%c0_35, %c0_36] : memref<128x512xbf16, #tpu.memory_space<vmem>>, vector<128x512xbf16>
    %cst_37 = arith.constant dense<0.000000e+00> : vector<64x512xf32>
    %84 = tpu.matmul %82, %83, %cst_37 {dimension_numbers = #tpu.dot_dimension_numbers<[1], [0], [0], [1], [0, 0, 1, 1], [], []>} : vector<64x128xbf16>, vector<128x512xbf16>, vector<64x512xf32> -> vector<64x512xf32>
    %c0_38 = arith.constant 0 : index
    %c0_39 = arith.constant 0 : index
    %85 = vector.load %arg12[%c0_38, %c0_39] : memref<1x512xf32, #tpu.memory_space<vmem>>, vector<1x512xf32>
    %86 = vector.broadcast %85 : vector<1x512xf32> to vector<64x512xf32>
    %87 = arith.addf %84, %86 : vector<64x512xf32>
    %cst_40 = arith.constant 5.000000e-01 : f32
    %88 = vector.broadcast %cst_40 : f32 to vector<64x512xf32>
    %89 = arith.mulf %88, %87 : vector<64x512xf32>
    %90 = arith.mulf %87, %87 : vector<64x512xf32>
    %91 = arith.mulf %90, %87 : vector<64x512xf32>
    %cst_41 = arith.constant 4.471500e-02 : f32
    %92 = vector.broadcast %cst_41 : f32 to vector<64x512xf32>
    %93 = arith.mulf %92, %91 : vector<64x512xf32>
    %94 = arith.addf %87, %93 : vector<64x512xf32>
    %cst_42 = arith.constant 0.797884583 : f32
    %95 = vector.broadcast %cst_42 : f32 to vector<64x512xf32>
    %96 = arith.mulf %95, %94 : vector<64x512xf32>
    %97 = math.tanh %96 : vector<64x512xf32>
    %cst_43 = arith.constant 1.000000e+00 : f32
    %98 = vector.broadcast %cst_43 : f32 to vector<64x512xf32>
    %99 = arith.addf %98, %97 : vector<64x512xf32>
    %100 = arith.mulf %89, %99 : vector<64x512xf32>
    %101 = arith.truncf %100 : vector<64x512xf32> to vector<64x512xbf16>
    %c0_44 = arith.constant 0 : index
    %c0_45 = arith.constant 0 : index
    %102 = vector.load %arg13[%c0_44, %c0_45] : memref<512x128xbf16, #tpu.memory_space<vmem>>, vector<512x128xbf16>
    %cst_46 = arith.constant dense<0.000000e+00> : vector<64x128xf32>
    %103 = tpu.matmul %101, %102, %cst_46 {dimension_numbers = #tpu.dot_dimension_numbers<[1], [0], [0], [1], [0, 0, 1, 1], [], []>} : vector<64x512xbf16>, vector<512x128xbf16>, vector<64x128xf32> -> vector<64x128xf32>
    %c0_47 = arith.constant 0 : index
    %c0_48 = arith.constant 0 : index
    %104 = vector.load %arg14[%c0_47, %c0_48] : memref<1x128xf32, #tpu.memory_space<vmem>>, vector<1x128xf32>
    %105 = vector.broadcast %104 : vector<1x128xf32> to vector<64x128xf32>
    %106 = arith.addf %103, %105 : vector<64x128xf32>
    %107 = arith.addf %57, %106 : vector<64x128xf32>
    %c0_49 = arith.constant 0 : index
    %c0_50 = arith.constant 0 : index
    %c0_51 = arith.constant 0 : index
    %108 = vector.load %arg15[%c0_49, %c0_50, %c0_51] : memref<1x64x128xf32, #tpu.memory_space<vmem>>, vector<1x64x128xf32>
    %109 = vector.shape_cast %108 : vector<1x64x128xf32> to vector<64x128xf32>
    %110 = vector.shape_cast %107 : vector<64x128xf32> to vector<1x64x128xf32>
    tpu.vector_store %arg15[%c0_49, %c0_50, %c0_51], %110 {strides = array<i32>} : memref<1x64x128xf32, #tpu.memory_space<vmem>>, vector<1x64x128xf32>,
    return
  }
  func.func @transform_0(%arg0: i32, %arg1: i32) -> (i32, i32, i32) {
    %c0_i32 = arith.constant 0 : i32
    %c0_i32_0 = arith.constant 0 : i32
    %c0_i32_1 = arith.constant 0 : i32
    return %arg0, %c0_i32, %c0_i32_0 : i32, i32, i32
  }
  func.func @transform_1(%arg0: i32, %arg1: i32) -> (i32, i32) {
    %c0_i32 = arith.constant 0 : i32
    %c0_i32_0 = arith.constant 0 : i32
    %c0_i32_1 = arith.constant 0 : i32
    return %c0_i32, %c0_i32_0 : i32, i32
  }
  func.func @transform_2(%arg0: i32, %arg1: i32) -> (i32, i32) {
    %c0_i32 = arith.constant 0 : i32
    %c0_i32_0 = arith.constant 0 : i32
    %c0_i32_1 = arith.constant 0 : i32
    return %c0_i32, %c0_i32_0 : i32, i32
  }
  func.func @transform_3(%arg0: i32, %arg1: i32) -> (i32, i32) {
    %c0_i32 = arith.constant 0 : i32
    %c0_i32_0 = arith.constant 0 : i32
    %c0_i32_1 = arith.constant 0 : i32
    return %c0_i32, %c0_i32_0 : i32, i32
  }
  func.func @transform_4(%arg0: i32, %arg1: i32) -> (i32, i32) {
    %c0_i32 = arith.constant 0 : i32
    %c0_i32_0 = arith.constant 0 : i32
    %c0_i32_1 = arith.constant 0 : i32
    return %c0_i32, %c0_i32_0 : i32, i32
  }
  func.func @transform_5(%arg0: i32, %arg1: i32) -> (i32, i32) {
    %c0_i32 = arith.constant 0 : i32
    %c0_i32_0 = arith.constant 0 : i32
    %c0_i32_1 = arith.constant 0 : i32
    return %c0_i32, %c0_i32_0 : i32, i32
  }
  func.func @transform_6(%arg0: i32, %arg1: i32) -> (i32, i32) {
    %c0_i32 = arith.constant 0 : i32
    %c0_i32_0 = arith.constant 0 : i32
    %c0_i32_1 = arith.constant 0 : i32
    return %c0_i32, %c0_i32_0 : i32, i32
  }
  func.func @transform_7(%arg0: i32, %arg1: i32) -> (i32, i32) {
    %c0_i32 = arith.constant 0 : i32
    %c0_i32_0 = arith.constant 0 : i32
    %c0_i32_1 = arith.constant 0 : i32
    return %c0_i32, %c0_i32_0 : i32, i32
  }
  func.func @transform_8(%arg0: i32, %arg1: i32) -> (i32, i32) {
    %c0_i32 = arith.constant 0 : i32
    %c0_i32_0 = arith.constant 0 : i32
    %c0_i32_1 = arith.constant 0 : i32
    return %c0_i32, %c0_i32_0 : i32, i32
  }
  func.func @transform_9(%arg0: i32, %arg1: i32) -> (i32, i32) {
    %c0_i32 = arith.constant 0 : i32
    %c0_i32_0 = arith.constant 0 : i32
    %c0_i32_1 = arith.constant 0 : i32
    return %c0_i32, %c0_i32_0 : i32, i32
  }
  func.func @transform_10(%arg0: i32, %arg1: i32) -> (i32, i32) {
    %c0_i32 = arith.constant 0 : i32
    %c0_i32_0 = arith.constant 0 : i32
    %c0_i32_1 = arith.constant 0 : i32
    return %c0_i32, %c0_i32_0 : i32, i32
  }
  func.func @transform_11(%arg0: i32, %arg1: i32) -> (i32, i32) {
    %c0_i32 = arith.constant 0 : i32
    %c0_i32_0 = arith.constant 0 : i32
    %c0_i32_1 = arith.constant 0 : i32
    return %c0_i32, %c0_i32_0 : i32, i32
  }
  func.func @transform_12(%arg0: i32, %arg1: i32) -> (i32, i32) {
    %c0_i32 = arith.constant 0 : i32
    %c0_i32_0 = arith.constant 0 : i32
    %c0_i32_1 = arith.constant 0 : i32
    return %c0_i32, %c0_i32_0 : i32, i32
  }
  func.func @transform_13(%arg0: i32, %arg1: i32) -> (i32, i32, i32) {
    %c0_i32 = arith.constant 0 : i32
    %c0_i32_0 = arith.constant 0 : i32
    return %arg0, %arg1, %c0_i32 : i32, i32, i32
  }
}

</mosaic_0001>

<llo_original>
// kernel: tpu_custom_call.1
$region0: #{tpu_custom_call.1}
  #allocation0 [shape = 'u32[]', space=smem, size = 0x4, offset = 0x4, fixed_abs, tag = 'smem constant byte address 0x4 - core index']
  #allocation1 [shape = 'u32[144,128]{1,0:T(1,128)}', space=vmem, size = 0x12000, scoped, tag = 'internal scratch']
  #allocation2 [shape = 'bf16[4,128,32]{2,1,0:T(8,128)(2,1)}', space=vmem, size = 0x20000, scoped, tag = 'scratch operand']
  #allocation3 [shape = 'bf16[4,128,32]{2,1,0:T(8,128)(2,1)}', space=vmem, size = 0x20000, scoped, tag = 'scratch operand']
  #allocation4 [shape = 'bf16[4,128,32]{2,1,0:T(8,128)(2,1)}', space=vmem, size = 0x20000, scoped, tag = 'scratch operand']
  #allocation5 [shape = 'bf16[64,128]{1,0:T(8,128)(2,1)}', space=vmem, size = 0x4000, scoped, tag = 'scratch operand']
  %s0 = inlined_call_operand.hbm [shape: f32[2,128,128], index: 0, kind: input, shape index: {}]
  %s1 = inlined_call_operand.hbm [shape: f32[1,128], index: 1, kind: input, shape index: {}]
  %s2 = inlined_call_operand.hbm [shape: f32[1,128], index: 2, kind: input, shape index: {}]
  %s3 = inlined_call_operand.hbm [shape: bf16[128,384], index: 3, kind: input, shape index: {}]
  %s4 = inlined_call_operand.vmem [shape: f32[1,384], index: 4, kind: input, shape index: {}]
  %s5 = inlined_call_operand.hbm [shape: bf16[128,128], index: 5, kind: input, shape index: {}]
  %s6 = inlined_call_operand.vmem [shape: f32[1,128], index: 6, kind: input, shape index: {}]
  %s7 = inlined_call_operand.vmem [shape: f32[1,128], index: 7, kind: input, shape index: {}]
  %s8 = inlined_call_operand.vmem [shape: f32[1,128], index: 8, kind: input, shape index: {}]
  %s9 = inlined_call_operand.hbm [shape: bf16[128,512], index: 9, kind: input, shape index: {}]
  %s10 = inlined_call_operand.vmem [shape: f32[1,512], index: 10, kind: input, shape index: {}]
  %s11 = inlined_call_operand.hbm [shape: bf16[512,128], index: 11, kind: input, shape index: {}]
  %s12 = inlined_call_operand.vmem [shape: f32[1,128], index: 12, kind: input, shape index: {}]
  %s13 = inlined_call_operand.hbm [shape: f32[2,128,128], index: 13, kind: output, shape index: {}]
  %s14 = sld [smem:[#allocation0]]
  $region117: #{tpu_custom_call.1} parent=0
    _
  %s16 = ssub.s32 1, %s14
  %s17 = scalar_select 0, %s16, %s14
  $region1: #{tpu_custom_call.1} parent=0
    #allocation6 [shape = 'u8[131072]{0}', space=vmem, size = 0x20000, scoped, tag = 'input window, operand 0']
    #allocation7 [shape = 's32[2]{0}', space=sflag, size = 0x8, scoped, tag = 'scoped memory for tpu_custom_call.1']
    #allocation8 [shape = 's32[2]{0}', space=sflag, size = 0x8, scoped, tag = 'scoped memory for tpu_custom_call.1']
    #allocation9 [shape = 'u8[512]{0}', space=vmem, size = 0x400, scoped, tag = 'input window, operand 1, single buffered']
    #allocation10 [shape = 's32[1]{0}', space=sflag, size = 0x4, scoped, tag = 'scoped memory for tpu_custom_call.1']
    #allocation11 [shape = 'u8[512]{0}', space=vmem, size = 0x400, scoped, tag = 'input window, operand 2, single buffered']
    #allocation12 [shape = 'u8[98304]{0}', space=vmem, size = 0x18000, scoped, tag = 'input window, operand 3, single buffered']
    #allocation13 [shape = 's32[1]{0}', space=sflag, size = 0x4, scoped, tag = 'scoped memory for tpu_custom_call.1']
    #allocation14 [shape = 'u8[32768]{0}', space=vmem, size = 0x8000, scoped, tag = 'input window, operand 5, single buffered']
    #allocation15 [shape = 'u8[131072]{0}', space=vmem, size = 0x20000, scoped, tag = 'input window, operand 9, single buffered']
    #allocation16 [shape = 's32[1]{0}', space=sflag, size = 0x4, scoped, tag = 'scoped memory for tpu_custom_call.1']
    #allocation17 [shape = 'u8[131072]{0}', space=vmem, size = 0x20000, scoped, tag = 'input window, operand 11, single buffered']
    #allocation18 [shape = 'u8[65536]{0}', space=vmem, size = 0x10000, scoped, tag = 'output window, operand 0']
    %18 = vsyncpa [#allocation7], 0
    %s19 = scalar_lea.sflag [#allocation7], 1
    %20 = vsyncpa %s19, 0
    %21 = vsyncpa [#allocation10], 0
    %22 = vsyncpa [#allocation13], 0
    %23 = vsyncpa [#allocation16], 0
    %24 = vsyncpa [#allocation8], 0
    %s25 = scalar_lea.sflag [#allocation8], 1
    %26 = vsyncpa %s25, 0
    loop: start=0, step=1, limit=6
    $region2: #{tpu_custom_call.1} parent=1 // loop_pre_header
      _
    $region3: #{tpu_custom_call.1} parent=1 // loop_header
      %s28 = sphi 0, %s32
      %p29 = scmp.ge.s32.totalorder %s28, 6
      %s35 = sphi 0, %s47
      %s36 = sphi 0, %s43
      %s37 = sphi 0, %s35
      %s38 = sphi 0, %s36
      %s39 = sphi 0, %s37
      %s40 = sphi 0, %s38
      %s50 = sphi 0, %s52
      %s53 = sphi 0, %s50
      %s54 = sphi 0, %s53
      %s70 = sphi 0, %s54
      %s74 = sphi 0, %s74
      %s76 = sphi 0, %s74
      %s77 = sphi 0, %s76
      %s91 = sphi 0, %s77
      %s95 = sphi 0, %s95
      %s97 = sphi 0, %s95
      %s98 = sphi 0, %s97
      %s112 = sphi 0, %s98
      %s116 = sphi 0, %s116
      %s118 = sphi 0, %s116
      %s119 = sphi 0, %s118
      %s133 = sphi 0, %s119
      %s137 = sphi 0, %s137
      %s139 = sphi 0, %s137
      %s140 = sphi 0, %s139
      %s154 = sphi 0, %s140
      %s158 = sphi 0, %s158
      %s160 = sphi 0, %s158
      %s161 = sphi 0, %s160
      %s175 = sphi 0, %s161
      %s179 = sphi 0, %s179
      %s181 = sphi 0, %s179
      %s182 = sphi 0, %s181
      %s196 = sphi 0, %s182
      %s200 = sphi 0, %s200
      %s202 = sphi 0, %s200
      %s203 = sphi 0, %s202
      %s217 = sphi 0, %s203
      %s221 = sphi 0, %s221
      %s223 = sphi 0, %s221
      %s224 = sphi 0, %s223
      %s238 = sphi 0, %s224
      %s242 = sphi 0, %s242
      %s244 = sphi 0, %s242
      %s245 = sphi 0, %s244
      %s259 = sphi 0, %s245
      %s263 = sphi 0, %s263
      %s265 = sphi 0, %s263
      %s266 = sphi 0, %s265
      %s280 = sphi 0, %s266
      %s284 = sphi 0, %s284
      %s286 = sphi 0, %s284
      %s287 = sphi 0, %s286
      %s301 = sphi 0, %s287
      %s305 = sphi 0, %s305
      %s307 = sphi 0, %s305
      %s308 = sphi 0, %s307
      %s322 = sphi 0, %s308
      %s330 = sphi 0, %s332
      %s333 = sphi 0, %s330
      %s334 = sphi 0, %s333
      %s350 = sphi 0, %s334
    $region4: #{tpu_custom_call.1} parent=1 // loop_header_branch
      %31 = sbr.rel (%p29) target = $region8
    $region5: #{tpu_custom_call.1} parent=1 // loop_body
      %s33 = ssub.s32 %s28, 1
      %s34 = ssub.s32 %s28, 2
      %s41 = sadd.s32 1, %s36
      %p42 = scmp.ge.s32.totalorder %s41, 2
      %s43 = scalar_select %p42, 0, %s41
      %s44 = sadd.s32 1, %s35
      %s45 = scalar_select %p42, %s44, %s35
      %p46 = scmp.ge.s32.totalorder %s45, 2
      %s47 = scalar_select %p46, 0, %s45
      %s48 = ssub.s32 %s35, %s47
      %p49 = scmp.eq.s32.totalorder %s48, 0
      %s51 = sadd.s32 %s50, 1
      %s52 = scalar_select %p49, %s50, %s51
      %p55 = pneg %p49
      %p56 = scmp.eq.s32.totalorder %s28, 3
      %p57 = por %p55, %p56
      %p58 = scmp.ne.s32.totalorder %s50, %s53
      %p59 = scmp.eq.s32.totalorder %s28, 0
      %p60 = por %p58, %p59
      %p61 = scmp.ne.s32.totalorder %s50, %s53
      %p62 = scmp.eq.s32.totalorder %s33, 3
      %p63 = por %p61, %p62
      %p64 = scmp.ne.s32.totalorder %s53, %s54
      %p65 = scmp.eq.s32.totalorder %s33, 0
      %p66 = por %p64, %p65
      %p67 = scmp.ne.s32.totalorder %s53, %s54
      %p68 = scmp.eq.s32.totalorder %s34, 3
      %p69 = por %p67, %p68
      %p71 = scmp.ne.s32.totalorder %s54, %s70
      %p72 = scmp.eq.s32.totalorder %s34, 0
      %p73 = por %p71, %p72
      %s75 = sadd.s32 %s74, 1
      %p78 = scmp.eq.s32.totalorder %s28, 3
      %p79 = scmp.ne.s32.totalorder %s74, %s76
      %p80 = scmp.eq.s32.totalorder %s28, 0
      %p81 = por %p79, %p80
      %p82 = scmp.ne.s32.totalorder %s74, %s76
      %p83 = scmp.eq.s32.totalorder %s33, 3
      %p84 = por %p82, %p83
      %p85 = scmp.ne.s32.totalorder %s76, %s77
      %p86 = scmp.eq.s32.totalorder %s33, 0
      %p87 = por %p85, %p86
      %p88 = scmp.ne.s32.totalorder %s76, %s77
      %p89 = scmp.eq.s32.totalorder %s34, 3
      %p90 = por %p88, %p89
      %p92 = scmp.ne.s32.totalorder %s77, %s91
      %p93 = scmp.eq.s32.totalorder %s34, 0
      %p94 = por %p92, %p93
      %s96 = sadd.s32 %s95, 1
      %p99 = scmp.eq.s32.totalorder %s28, 3
      %p100 = scmp.ne.s32.totalorder %s95, %s97
      %p101 = scmp.eq.s32.totalorder %s28, 0
      %p102 = por %p100, %p101
      %p103 = scmp.ne.s32.totalorder %s95, %s97
      %p104 = scmp.eq.s32.totalorder %s33, 3
      %p105 = por %p103, %p104
      %p106 = scmp.ne.s32.totalorder %s97, %s98
      %p107 = scmp.eq.s32.totalorder %s33, 0
      %p108 = por %p106, %p107
      %p109 = scmp.ne.s32.totalorder %s97, %s98
      %p110 = scmp.eq.s32.totalorder %s34, 3
      %p111 = por %p109, %p110
      %p113 = scmp.ne.s32.totalorder %s98, %s112
      %p114 = scmp.eq.s32.totalorder %s34, 0
      %p115 = por %p113, %p114
      %s117 = sadd.s32 %s116, 1
      %p120 = scmp.eq.s32.totalorder %s28, 3
      %p121 = scmp.ne.s32.totalorder %s116, %s118
      %p122 = scmp.eq.s32.totalorder %s28, 0
      %p123 = por %p121, %p122
      %p124 = scmp.ne.s32.totalorder %s116, %s118
      %p125 = scmp.eq.s32.totalorder %s33, 3
      %p126 = por %p124, %p125
      %p127 = scmp.ne.s32.totalorder %s118, %s119
      %p128 = scmp.eq.s32.totalorder %s33, 0
      %p129 = por %p127, %p128
      %p130 = scmp.ne.s32.totalorder %s118, %s119
      %p131 = scmp.eq.s32.totalorder %s34, 3
      %p132 = por %p130, %p131
      %p134 = scmp.ne.s32.totalorder %s119, %s133
      %p135 = scmp.eq.s32.totalorder %s34, 0
      %p136 = por %p134, %p135
      %s138 = sadd.s32 %s137, 1
      %p141 = scmp.eq.s32.totalorder %s28, 3
      %p142 = scmp.ne.s32.totalorder %s137, %s139
      %p143 = scmp.eq.s32.totalorder %s28, 0
      %p144 = por %p142, %p143
      %p145 = scmp.ne.s32.totalorder %s137, %s139
      %p146 = scmp.eq.s32.totalorder %s33, 3
      %p147 = por %p145, %p146
      %p148 = scmp.ne.s32.totalorder %s139, %s140
      %p149 = scmp.eq.s32.totalorder %s33, 0
      %p150 = por %p148, %p149
      %p151 = scmp.ne.s32.totalorder %s139, %s140
      %p152 = scmp.eq.s32.totalorder %s34, 3
      %p153 = por %p151, %p152
      %p155 = scmp.ne.s32.totalorder %s140, %s154
      %p156 = scmp.eq.s32.totalorder %s34, 0
      %p157 = por %p155, %p156
      %s159 = sadd.s32 %s158, 1
      %p162 = scmp.eq.s32.totalorder %s28, 3
      %p163 = scmp.ne.s32.totalorder %s158, %s160
      %p164 = scmp.eq.s32.totalorder %s28, 0
      %p165 = por %p163, %p164
      %p166 = scmp.ne.s32.totalorder %s158, %s160
      %p167 = scmp.eq.s32.totalorder %s33, 3
      %p168 = por %p166, %p167
      %p169 = scmp.ne.s32.totalorder %s160, %s161
      %p170 = scmp.eq.s32.totalorder %s33, 0
      %p171 = por %p169, %p170
      %p172 = scmp.ne.s32.totalorder %s160, %s161
      %p173 = scmp.eq.s32.totalorder %s34, 3
      %p174 = por %p172, %p173
      %p176 = scmp.ne.s32.totalorder %s161, %s175
      %p177 = scmp.eq.s32.totalorder %s34, 0
      %p178 = por %p176, %p177
      %s180 = sadd.s32 %s179, 1
      %p183 = scmp.eq.s32.totalorder %s28, 3
      %p184 = scmp.ne.s32.totalorder %s179, %s181
      %p185 = scmp.eq.s32.totalorder %s28, 0
      %p186 = por %p184, %p185
      %p187 = scmp.ne.s32.totalorder %s179, %s181
      %p188 = scmp.eq.s32.totalorder %s33, 3
      %p189 = por %p187, %p188
      %p190 = scmp.ne.s32.totalorder %s181, %s182
      %p191 = scmp.eq.s32.totalorder %s33, 0
      %p192 = por %p190, %p191
      %p193 = scmp.ne.s32.totalorder %s181, %s182
      %p194 = scmp.eq.s32.totalorder %s34, 3
      %p195 = por %p193, %p194
      %p197 = scmp.ne.s32.totalorder %s182, %s196
      %p198 = scmp.eq.s32.totalorder %s34, 0
      %p199 = por %p197, %p198
      %s201 = sadd.s32 %s200, 1
      %p204 = scmp.eq.s32.totalorder %s28, 3
      %p205 = scmp.ne.s32.totalorder %s200, %s202
      %p206 = scmp.eq.s32.totalorder %s28, 0
      %p207 = por %p205, %p206
      %p208 = scmp.ne.s32.totalorder %s200, %s202
      %p209 = scmp.eq.s32.totalorder %s33, 3
      %p210 = por %p208, %p209
      %p211 = scmp.ne.s32.totalorder %s202, %s203
      %p212 = scmp.eq.s32.totalorder %s33, 0
      %p213 = por %p211, %p212
      %p214 = scmp.ne.s32.totalorder %s202, %s203
      %p215 = scmp.eq.s32.totalorder %s34, 3
      %p216 = por %p214, %p215
      %p218 = scmp.ne.s32.totalorder %s203, %s217
      %p219 = scmp.eq.s32.totalorder %s34, 0
      %p220 = por %p218, %p219
      %s222 = sadd.s32 %s221, 1
      %p225 = scmp.eq.s32.totalorder %s28, 3
      %p226 = scmp.ne.s32.totalorder %s221, %s223
      %p227 = scmp.eq.s32.totalorder %s28, 0
      %p228 = por %p226, %p227
      %p229 = scmp.ne.s32.totalorder %s221, %s223
      %p230 = scmp.eq.s32.totalorder %s33, 3
      %p231 = por %p229, %p230
      %p232 = scmp.ne.s32.totalorder %s223, %s224
      %p233 = scmp.eq.s32.totalorder %s33, 0
      %p234 = por %p232, %p233
      %p235 = scmp.ne.s32.totalorder %s223, %s224
      %p236 = scmp.eq.s32.totalorder %s34, 3
      %p237 = por %p235, %p236
      %p239 = scmp.ne.s32.totalorder %s224, %s238
      %p240 = scmp.eq.s32.totalorder %s34, 0
      %p241 = por %p239, %p240
      %s243 = sadd.s32 %s242, 1
      %p246 = scmp.eq.s32.totalorder %s28, 3
      %p247 = scmp.ne.s32.totalorder %s242, %s244
      %p248 = scmp.eq.s32.totalorder %s28, 0
      %p249 = por %p247, %p248
      %p250 = scmp.ne.s32.totalorder %s242, %s244
      %p251 = scmp.eq.s32.totalorder %s33, 3
      %p252 = por %p250, %p251
      %p253 = scmp.ne.s32.totalorder %s244, %s245
      %p254 = scmp.eq.s32.totalorder %s33, 0
      %p255 = por %p253, %p254
      %p256 = scmp.ne.s32.totalorder %s244, %s245
      %p257 = scmp.eq.s32.totalorder %s34, 3
      %p258 = por %p256, %p257
      %p260 = scmp.ne.s32.totalorder %s245, %s259
      %p261 = scmp.eq.s32.totalorder %s34, 0
      %p262 = por %p260, %p261
      %s264 = sadd.s32 %s263, 1
      %p267 = scmp.eq.s32.totalorder %s28, 3
      %p268 = scmp.ne.s32.totalorder %s263, %s265
      %p269 = scmp.eq.s32.totalorder %s28, 0
      %p270 = por %p268, %p269
      %p271 = scmp.ne.s32.totalorder %s263, %s265
      %p272 = scmp.eq.s32.totalorder %s33, 3
      %p273 = por %p271, %p272
      %p274 = scmp.ne.s32.totalorder %s265, %s266
      %p275 = scmp.eq.s32.totalorder %s33, 0
      %p276 = por %p274, %p275
      %p277 = scmp.ne.s32.totalorder %s265, %s266
      %p278 = scmp.eq.s32.totalorder %s34, 3
      %p279 = por %p277, %p278
      %p281 = scmp.ne.s32.totalorder %s266, %s280
      %p282 = scmp.eq.s32.totalorder %s34, 0
      %p283 = por %p281, %p282
      %s285 = sadd.s32 %s284, 1
      %p288 = scmp.eq.s32.totalorder %s28, 3
      %p289 = scmp.ne.s32.totalorder %s284, %s286
      %p290 = scmp.eq.s32.totalorder %s28, 0
      %p291 = por %p289, %p290
      %p292 = scmp.ne.s32.totalorder %s284, %s286
      %p293 = scmp.eq.s32.totalorder %s33, 3
      %p294 = por %p292, %p293
      %p295 = scmp.ne.s32.totalorder %s286, %s287
      %p296 = scmp.eq.s32.totalorder %s33, 0
      %p297 = por %p295, %p296
      %p298 = scmp.ne.s32.totalorder %s286, %s287
      %p299 = scmp.eq.s32.totalorder %s34, 3
      %p300 = por %p298, %p299
      %p302 = scmp.ne.s32.totalorder %s287, %s301
      %p303 = scmp.eq.s32.totalorder %s34, 0
      %p304 = por %p302, %p303
      %s306 = sadd.s32 %s305, 1
      %p309 = scmp.eq.s32.totalorder %s28, 3
      %p310 = scmp.ne.s32.totalorder %s305, %s307
      %p311 = scmp.eq.s32.totalorder %s28, 0
      %p312 = por %p310, %p311
      %p313 = scmp.ne.s32.totalorder %s305, %s307
      %p314 = scmp.eq.s32.totalorder %s33, 3
      %p315 = por %p313, %p314
      %p316 = scmp.ne.s32.totalorder %s307, %s308
      %p317 = scmp.eq.s32.totalorder %s33, 0
      %p318 = por %p316, %p317
      %p319 = scmp.ne.s32.totalorder %s307, %s308
      %p320 = scmp.eq.s32.totalorder %s34, 3
      %p321 = por %p319, %p320
      %p323 = scmp.ne.s32.totalorder %s308, %s322
      %p324 = scmp.eq.s32.totalorder %s34, 0
      %p325 = por %p323, %p324
      %s326 = ssub.s32 %s35, %s47
      %s327 = ssub.s32 %s36, %s43
      %s328 = sor.u32 %s326, %s327
      %p329 = scmp.eq.s32.totalorder %s328, 0
      %s331 = sadd.s32 %s330, 1
      %s332 = scalar_select %p329, %s330, %s331
      %p335 = pneg %p329
      %p336 = scmp.eq.s32.totalorder %s28, 3
      %p337 = por %p335, %p336
      %p338 = scmp.ne.s32.totalorder %s330, %s333
      %p339 = scmp.eq.s32.totalorder %s28, 0
      %p340 = por %p338, %p339
      %p341 = scmp.ne.s32.totalorder %s330, %s333
      %p342 = scmp.eq.s32.totalorder %s33, 3
      %p343 = por %p341, %p342
      %p344 = scmp.ne.s32.totalorder %s333, %s334
      %p345 = scmp.eq.s32.totalorder %s33, 0
      %p346 = por %p344, %p345
      %p347 = scmp.ne.s32.totalorder %s333, %s334
      %p348 = scmp.eq.s32.totalorder %s34, 3
      %p349 = por %p347, %p348
      %p351 = scmp.ne.s32.totalorder %s334, %s350
      %p352 = scmp.eq.s32.totalorder %s34, 0
      %p353 = por %p351, %p352
      %p354 = scmp.le.s32.totalorder 1, %s28
      %p355 = scmp.lt.s32.totalorder %s28, 5
      %p356 = pnand %p354, %p355
      %p357 = pneg %p356
      // Predicated region
      $region9: #{tpu_custom_call.1} parent=5 // pred_check
        _
      $region10: #{tpu_custom_call.1} parent=5 // pred_check_branch
        %359 = sbr.rel (%p356) target = $region12
      $region11: #{tpu_custom_call.1} parent=5 // pred_region
        %s360 = ssub.s32 %s28, 1
        // Predicated region
        $region13: #{tpu_custom_call.1} parent=11 // pred_check
          %p361 = pneg %p87
        $region14: #{tpu_custom_call.1} parent=11 // pred_check_branch
          %363 = sbr.rel (%p361) target = $region16
        $region15: #{tpu_custom_call.1} parent=11 // pred_region
          %s365 = ssub.s32 16, 16
          %366 = vsyncadd [#allocation10], %s365
          %s368 = sshll.u32 [#allocation9], 4
          %s369 = int_to_ptr.vmem [resolvable:$true] %s368
          %371 = dma.hbm_to_vmem [thread:$0]  %s1, 16, %s369, [#allocation10]
        $region16: #{tpu_custom_call.1} parent=11 // pred_fallthru
          _
        // Predicated region
        $region17: #{tpu_custom_call.1} parent=11 // pred_check
          %p372 = pneg %p108
        $region18: #{tpu_custom_call.1} parent=11 // pred_check_branch
          %374 = sbr.rel (%p372) target = $region20
        $region19: #{tpu_custom_call.1} parent=11 // pred_region
          %s376 = ssub.s32 16, 16
          %377 = vsyncadd [#allocation10], %s376
          %s379 = sshll.u32 [#allocation11], 4
          %s380 = int_to_ptr.vmem [resolvable:$true] %s379
          %382 = dma.hbm_to_vmem [thread:$0]  %s2, 16, %s380, [#allocation10]
        $region20: #{tpu_custom_call.1} parent=11 // pred_fallthru
          _
        // Predicated region
        $region21: #{tpu_custom_call.1} parent=11 // pred_check
          %p383 = pneg %p129
        $region22: #{tpu_custom_call.1} parent=11 // pred_check_branch
          %385 = sbr.rel (%p383) target = $region24
        $region23: #{tpu_custom_call.1} parent=11 // pred_region
          %s387 = ssub.s32 3072, 3072
          %388 = vsyncadd [#allocation13], %s387
          %s389 = sshll.u32 [#allocation12], 4
          %s390 = int_to_ptr.vmem [resolvable:$true] %s389
          %395 = dma.hbm_to_vmem [thread:$0]  %s3, 3072, %s390, [#allocation13], 192, 192, 12
        $region24: #{tpu_custom_call.1} parent=11 // pred_fallthru
          _
        // Predicated region
        $region25: #{tpu_custom_call.1} parent=11 // pred_check
          %p396 = pneg %p150
        $region26: #{tpu_custom_call.1} parent=11 // pred_check_branch
          %398 = sbr.rel (%p396) target = $region28
        $region27: #{tpu_custom_call.1} parent=11 // pred_region
          _
        $region28: #{tpu_custom_call.1} parent=11 // pred_fallthru
          _
        // Predicated region
        $region29: #{tpu_custom_call.1} parent=11 // pred_check
          %p399 = pneg %p171
        $region30: #{tpu_custom_call.1} parent=11 // pred_check_branch
          %401 = sbr.rel (%p399) target = $region32
        $region31: #{tpu_custom_call.1} parent=11 // pred_region
          %s403 = ssub.s32 1024, 1024
          %404 = vsyncadd [#allocation13], %s403
          %s405 = sshll.u32 [#allocation14], 4
          %s406 = int_to_ptr.vmem [resolvable:$true] %s405
          %411 = dma.hbm_to_vmem [thread:$0]  %s5, 1024, %s406, [#allocation13], 64, 64, 4
        $region32: #{tpu_custom_call.1} parent=11 // pred_fallthru
          _
        // Predicated region
        $region33: #{tpu_custom_call.1} parent=11 // pred_check
          %p412 = pneg %p192
        $region34: #{tpu_custom_call.1} parent=11 // pred_check_branch
          %414 = sbr.rel (%p412) target = $region36
        $region35: #{tpu_custom_call.1} parent=11 // pred_region
          _
        $region36: #{tpu_custom_call.1} parent=11 // pred_fallthru
          _
        // Predicated region
        $region37: #{tpu_custom_call.1} parent=11 // pred_check
          %p415 = pneg %p213
        $region38: #{tpu_custom_call.1} parent=11 // pred_check_branch
          %417 = sbr.rel (%p415) target = $region40
        $region39: #{tpu_custom_call.1} parent=11 // pred_region
          _
        $region40: #{tpu_custom_call.1} parent=11 // pred_fallthru
          _
        // Predicated region
        $region41: #{tpu_custom_call.1} parent=11 // pred_check
          %p418 = pneg %p234
        $region42: #{tpu_custom_call.1} parent=11 // pred_check_branch
          %420 = sbr.rel (%p418) target = $region44
        $region43: #{tpu_custom_call.1} parent=11 // pred_region
          _
        $region44: #{tpu_custom_call.1} parent=11 // pred_fallthru
          _
        // Predicated region
        $region45: #{tpu_custom_call.1} parent=11 // pred_check
          %p421 = pneg %p255
        $region46: #{tpu_custom_call.1} parent=11 // pred_check_branch
          %423 = sbr.rel (%p421) target = $region48
        $region47: #{tpu_custom_call.1} parent=11 // pred_region
          %s425 = ssub.s32 4096, 4096
          %426 = vsyncadd [#allocation16], %s425
          %s427 = sshll.u32 [#allocation15], 4
          %s428 = int_to_ptr.vmem [resolvable:$true] %s427
          %433 = dma.hbm_to_vmem [thread:$0]  %s9, 4096, %s428, [#allocation16], 256, 256, 16
        $region48: #{tpu_custom_call.1} parent=11 // pred_fallthru
          _
        // Predicated region
        $region49: #{tpu_custom_call.1} parent=11 // pred_check
          %p434 = pneg %p276
        $region50: #{tpu_custom_call.1} parent=11 // pred_check_branch
          %436 = sbr.rel (%p434) target = $region52
        $region51: #{tpu_custom_call.1} parent=11 // pred_region
          _
        $region52: #{tpu_custom_call.1} parent=11 // pred_fallthru
          _
        // Predicated region
        $region53: #{tpu_custom_call.1} parent=11 // pred_check
          %p437 = pneg %p297
        $region54: #{tpu_custom_call.1} parent=11 // pred_check_branch
          %439 = sbr.rel (%p437) target = $region56
        $region55: #{tpu_custom_call.1} parent=11 // pred_region
          %s441 = ssub.s32 4096, 4096
          %442 = vsyncadd [#allocation16], %s441
          %s443 = sshll.u32 [#allocation17], 4
          %s444 = int_to_ptr.vmem [resolvable:$true] %s443
          %449 = dma.hbm_to_vmem [thread:$0]  %s11, 4096, %s444, [#allocation16], 64, 64, 4
        $region56: #{tpu_custom_call.1} parent=11 // pred_fallthru
          _
        // Predicated region
        $region57: #{tpu_custom_call.1} parent=11 // pred_check
          %p450 = pneg %p318
        $region58: #{tpu_custom_call.1} parent=11 // pred_check_branch
          %452 = sbr.rel (%p450) target = $region60
        $region59: #{tpu_custom_call.1} parent=11 // pred_region
          _
        $region60: #{tpu_custom_call.1} parent=11 // pred_fallthru
          _
      $region12: #{tpu_custom_call.1} parent=5 // pred_fallthru
        _
      %p453 = scmp.lt.s32.totalorder %s28, 4
      // Predicated region
      $region61: #{tpu_custom_call.1} parent=5 // pred_check
        %p454 = pneg %p453
      $region62: #{tpu_custom_call.1} parent=5 // pred_check_branch
        %456 = sbr.rel (%p454) target = $region64
      $region63: #{tpu_custom_call.1} parent=5 // pred_region
        // Predicated region
        $region65: #{tpu_custom_call.1} parent=63 // pred_check
          %p457 = pneg %p60
        $region66: #{tpu_custom_call.1} parent=63 // pred_check_branch
          %459 = sbr.rel (%p457) target = $region68
        $region67: #{tpu_custom_call.1} parent=63 // pred_region
          %s460 = sand.u32 %s50, 1
          %s461 = scalar_lea.sflag [#allocation7], %s460
          %s462 = sand.u32 %s50, 1
          %s463 = smul.addr %s462, 128
          %s464 = scalar_lea.vmem [#allocation6], %s463
          %s466 = ssub.s32 2048, 2048
          %467 = vsyncadd %s461, %s466
          %s468 = smul.addr %s35, 16
          %s469 = smul.addr %s468, 128
          %s470 = scalar_lea.hbm %s0, %s469
          %s471 = sshll.u32 %s464, 4
          %s472 = int_to_ptr.vmem [resolvable:$true] %s471
          %477 = dma.hbm_to_vmem [thread:$0]  %s470, 2048, %s472, %s461, 128, 128, 8
        $region68: #{tpu_custom_call.1} parent=63 // pred_fallthru
          _
      $region64: #{tpu_custom_call.1} parent=5 // pred_fallthru
        _
      %p478 = scmp.le.s32.totalorder 1, %s28
      %p479 = scmp.lt.s32.totalorder %s28, 5
      %p480 = pnand %p478, %p479
      %p481 = pneg %p480
      // Predicated region
      $region69: #{tpu_custom_call.1} parent=5 // pred_check
        _
      $region70: #{tpu_custom_call.1} parent=5 // pred_check_branch
        %483 = sbr.rel (%p480) target = $region72
      $region71: #{tpu_custom_call.1} parent=5 // pred_region
        %s484 = ssub.s32 %s28, 1
        %s485 = sand.u32 %s53, 1
        %s486 = scalar_lea.sflag [#allocation7], %s485
        %s487 = sand.u32 %s53, 1
        %s488 = smul.addr %s487, 128
        %s489 = scalar_lea.vmem [#allocation6], %s488
        // Predicated region
        $region73: #{tpu_custom_call.1} parent=71 // pred_check
          %p490 = pneg %p66
        $region74: #{tpu_custom_call.1} parent=71 // pred_check_branch
          %492 = sbr.rel (%p490) target = $region76
        $region75: #{tpu_custom_call.1} parent=71 // pred_region
          %493 = dma.done %s486, 2048
        $region76: #{tpu_custom_call.1} parent=71 // pred_fallthru
          _
        // Predicated region
        $region77: #{tpu_custom_call.1} parent=71 // pred_check
          %p494 = pneg %p87
        $region78: #{tpu_custom_call.1} parent=71 // pred_check_branch
          %496 = sbr.rel (%p494) target = $region80
        $region79: #{tpu_custom_call.1} parent=71 // pred_region
          %497 = dma.done [#allocation10], 16
        $region80: #{tpu_custom_call.1} parent=71 // pred_fallthru
          _
        // Predicated region
        $region81: #{tpu_custom_call.1} parent=71 // pred_check
          %p498 = pneg %p108
        $region82: #{tpu_custom_call.1} parent=71 // pred_check_branch
          %500 = sbr.rel (%p498) target = $region84
        $region83: #{tpu_custom_call.1} parent=71 // pred_region
          %501 = dma.done [#allocation10], 16
        $region84: #{tpu_custom_call.1} parent=71 // pred_fallthru
          _
        // Predicated region
        $region85: #{tpu_custom_call.1} parent=71 // pred_check
          %p502 = pneg %p129
        $region86: #{tpu_custom_call.1} parent=71 // pred_check_branch
          %504 = sbr.rel (%p502) target = $region88
        $region87: #{tpu_custom_call.1} parent=71 // pred_region
          %505 = dma.done [#allocation13], 3072
        $region88: #{tpu_custom_call.1} parent=71 // pred_fallthru
          _
        // Predicated region
        $region89: #{tpu_custom_call.1} parent=71 // pred_check
          %p506 = pneg %p171
        $region90: #{tpu_custom_call.1} parent=71 // pred_check_branch
          %508 = sbr.rel (%p506) target = $region92
        $region91: #{tpu_custom_call.1} parent=71 // pred_region
          %509 = dma.done [#allocation13], 1024
        $region92: #{tpu_custom_call.1} parent=71 // pred_fallthru
          _
        // Predicated region
        $region93: #{tpu_custom_call.1} parent=71 // pred_check
          %p510 = pneg %p255
        $region94: #{tpu_custom_call.1} parent=71 // pred_check_branch
          %512 = sbr.rel (%p510) target = $region96
        $region95: #{tpu_custom_call.1} parent=71 // pred_region
          %513 = dma.done [#allocation16], 4096
        $region96: #{tpu_custom_call.1} parent=71 // pred_fallthru
          _
        // Predicated region
        $region97: #{tpu_custom_call.1} parent=71 // pred_check
          %p514 = pneg %p297
        $region98: #{tpu_custom_call.1} parent=71 // pred_check_branch
          %516 = sbr.rel (%p514) target = $region100
        $region99: #{tpu_custom_call.1} parent=71 // pred_region
          %517 = dma.done [#allocation16], 4096
        $region100: #{tpu_custom_call.1} parent=71 // pred_fallthru
          _
        %s518 = sand.u32 %s53, 1
        %s519 = scalar_lea.sflag [#allocation7], %s518
        %s520 = sand.u32 %s53, 1
        %s521 = smul.addr %s520, 128
        %s522 = scalar_lea.vmem [#allocation6], %s521
        %p523 = pneg %p66
        %p524 = pneg %p63
        %p525 = pneg %p87
        %p526 = pneg %p84
        %p527 = pneg %p108
        %p528 = pneg %p105
        %p529 = pneg %p129
        %p530 = pneg %p126
        %p531 = pneg %p150
        %p532 = pneg %p147
        %p533 = pneg %p171
        %p534 = pneg %p168
        %p535 = pneg %p192
        %p536 = pneg %p189
        %p537 = pneg %p213
        %p538 = pneg %p210
        %p539 = pneg %p234
        %p540 = pneg %p231
        %p541 = pneg %p255
        %p542 = pneg %p252
        %p543 = pneg %p276
        %p544 = pneg %p273
        %p545 = pneg %p297
        %p546 = pneg %p294
        %p547 = pneg %p318
        %p548 = pneg %p315
        %p549 = pneg %p346
        %p550 = pneg %p343
        %s551 = sand.u32 %s333, 1
        %s552 = scalar_lea.sflag [#allocation8], %s551
        %s553 = sand.u32 %s333, 1
        %s554 = smul.addr %s553, 64
        %s555 = scalar_lea.vmem [#allocation18], %s554
        %s556 = smul.u32 8, %s38
        %p558 = scmp.eq.s32.totalorder %s38, 0
        // Predicated region
        $region101: #{tpu_custom_call.1} parent=71 // pred_check
          %p559 = pneg %p558
        $region102: #{tpu_custom_call.1} parent=71 // pred_check_branch
          %561 = sbr.rel (%p559) target = $region104
        $region103: #{tpu_custom_call.1} parent=71 // pred_region
          %v562 = vld [vmem:[%s489] sm:$0xff]
          %v563 = vld [vmem:[%s489 + $0x8] sm:$0xff]
          %v564 = vld [vmem:[%s489 + $0x10] sm:$0xff]
          %v565 = vld [vmem:[%s489 + $0x18] sm:$0xff]
          %v566 = vld [vmem:[%s489 + $0x20] sm:$0xff]
          %v567 = vld [vmem:[%s489 + $0x28] sm:$0xff]
          %v568 = vld [vmem:[%s489 + $0x30] sm:$0xff]
          %v569 = vld [vmem:[%s489 + $0x38] sm:$0xff]
          %v570 = vld [vmem:[%s489 + $0x40] sm:$0xff]
          %v571 = vld [vmem:[%s489 + $0x48] sm:$0xff]
          %v572 = vld [vmem:[%s489 + $0x50] sm:$0xff]
          %v573 = vld [vmem:[%s489 + $0x58] sm:$0xff]
          %v574 = vld [vmem:[%s489 + $0x60] sm:$0xff]
          %v575 = vld [vmem:[%s489 + $0x68] sm:$0xff]
          %v576 = vld [vmem:[%s489 + $0x70] sm:$0xff]
          %v577 = vld [vmem:[%s489 + $0x78] sm:$0xff]
          %v578 = vld [vmem:[#allocation9] sm:$0x1]
          %v579 = vld [vmem:[#allocation11] sm:$0x1]
          %580 = vadd.xlane.f32.xlu0 %v562
          %v581 = vpop.xlane.xlu0 %580
          %582 = vadd.xlane.f32.xlu0 %v563
          %v583 = vpop.xlane.xlu0 %582
          %584 = vadd.xlane.f32.xlu0 %v564
          %v585 = vpop.xlane.xlu0 %584
          %586 = vadd.xlane.f32.xlu0 %v565
          %v587 = vpop.xlane.xlu0 %586
          %588 = vadd.xlane.f32.xlu0 %v566
          %v589 = vpop.xlane.xlu0 %588
          %590 = vadd.xlane.f32.xlu0 %v567
          %v591 = vpop.xlane.xlu0 %590
          %592 = vadd.xlane.f32.xlu0 %v568
          %v593 = vpop.xlane.xlu0 %592
          %594 = vadd.xlane.f32.xlu0 %v569
          %v595 = vpop.xlane.xlu0 %594
          %596 = vadd.xlane.f32.xlu0 %v570
          %v597 = vpop.xlane.xlu0 %596
          %598 = vadd.xlane.f32.xlu0 %v571
          %v599 = vpop.xlane.xlu0 %598
          %600 = vadd.xlane.f32.xlu0 %v572
          %v601 = vpop.xlane.xlu0 %600
          %602 = vadd.xlane.f32.xlu0 %v573
          %v603 = vpop.xlane.xlu0 %602
          %604 = vadd.xlane.f32.xlu0 %v574
          %v605 = vpop.xlane.xlu0 %604
          %606 = vadd.xlane.f32.xlu0 %v575
          %v607 = vpop.xlane.xlu0 %606
          %608 = vadd.xlane.f32.xlu0 %v576
          %v609 = vpop.xlane.xlu0 %608
          %610 = vadd.xlane.f32.xlu0 %v577
          %v611 = vpop.xlane.xlu0 %610
          %v612 = vrcp.pop 128.0
          %v613 = vmul.f32 %v581, %v612
          %v614 = vmul.f32 %v583, %v612
          %v615 = vmul.f32 %v585, %v612
          %v616 = vmul.f32 %v587, %v612
          %v617 = vmul.f32 %v589, %v612
          %v618 = vmul.f32 %v591, %v612
          %v619 = vmul.f32 %v593, %v612
          %v620 = vmul.f32 %v595, %v612
          %v621 = vmul.f32 %v597, %v612
          %v622 = vmul.f32 %v599, %v612
          %v623 = vmul.f32 %v601, %v612
          %v624 = vmul.f32 %v603, %v612
          %v625 = vmul.f32 %v605, %v612
          %v626 = vmul.f32 %v607, %v612
          %v627 = vmul.f32 %v609, %v612
          %v628 = vmul.f32 %v611, %v612
          %v629 = vmul.f32 %v562, %v562
          %v630 = vmul.f32 %v563, %v563
          %v631 = vmul.f32 %v564, %v564
          %v632 = vmul.f32 %v565, %v565
          %v633 = vmul.f32 %v566, %v566
          %v634 = vmul.f32 %v567, %v567
          %v635 = vmul.f32 %v568, %v568
          %v636 = vmul.f32 %v569, %v569
          %v637 = vmul.f32 %v570, %v570
          %v638 = vmul.f32 %v571, %v571
          %v639 = vmul.f32 %v572, %v572
          %v640 = vmul.f32 %v573, %v573
          %v641 = vmul.f32 %v574, %v574
          %v642 = vmul.f32 %v575, %v575
          %v643 = vmul.f32 %v576, %v576
          %v644 = vmul.f32 %v577, %v577
          %645 = vadd.xlane.f32.xlu0 %v629
          %v646 = vpop.xlane.xlu0 %645
          %647 = vadd.xlane.f32.xlu0 %v630
          %v648 = vpop.xlane.xlu0 %647
          %649 = vadd.xlane.f32.xlu0 %v631
          %v650 = vpop.xlane.xlu0 %649
          %651 = vadd.xlane.f32.xlu0 %v632
          %v652 = vpop.xlane.xlu0 %651
          %653 = vadd.xlane.f32.xlu0 %v633
          %v654 = vpop.xlane.xlu0 %653
          %655 = vadd.xlane.f32.xlu0 %v634
          %v656 = vpop.xlane.xlu0 %655
          %657 = vadd.xlane.f32.xlu0 %v635
          %v658 = vpop.xlane.xlu0 %657
          %659 = vadd.xlane.f32.xlu0 %v636
          %v660 = vpop.xlane.xlu0 %659
          %661 = vadd.xlane.f32.xlu0 %v637
          %v662 = vpop.xlane.xlu0 %661
          %663 = vadd.xlane.f32.xlu0 %v638
          %v664 = vpop.xlane.xlu0 %663
          %665 = vadd.xlane.f32.xlu0 %v639
          %v666 = vpop.xlane.xlu0 %665
          %667 = vadd.xlane.f32.xlu0 %v640
          %v668 = vpop.xlane.xlu0 %667
          %669 = vadd.xlane.f32.xlu0 %v641
          %v670 = vpop.xlane.xlu0 %669
          %671 = vadd.xlane.f32.xlu0 %v642
          %v672 = vpop.xlane.xlu0 %671
          %673 = vadd.xlane.f32.xlu0 %v643
          %v674 = vpop.xlane.xlu0 %673
          %675 = vadd.xlane.f32.xlu0 %v644
          %v676 = vpop.xlane.xlu0 %675
          %v677 = vmul.f32 %v646, %v612
          %v678 = vmul.f32 %v648, %v612
          %v679 = vmul.f32 %v650, %v612
          %v680 = vmul.f32 %v652, %v612
          %v681 = vmul.f32 %v654, %v612
          %v682 = vmul.f32 %v656, %v612
          %v683 = vmul.f32 %v658, %v612
          %v684 = vmul.f32 %v660, %v612
          %v685 = vmul.f32 %v662, %v612
          %v686 = vmul.f32 %v664, %v612
          %v687 = vmul.f32 %v666, %v612
          %v688 = vmul.f32 %v668, %v612
          %v689 = vmul.f32 %v670, %v612
          %v690 = vmul.f32 %v672, %v612
          %v691 = vmul.f32 %v674, %v612
          %v692 = vmul.f32 %v676, %v612
          %v693 = vmul.f32 %v613, %v613
          %v694 = vmul.f32 %v614, %v614
          %v695 = vmul.f32 %v615, %v615
          %v696 = vmul.f32 %v616, %v616
          %v697 = vmul.f32 %v617, %v617
          %v698 = vmul.f32 %v618, %v618
          %v699 = vmul.f32 %v619, %v619
          %v700 = vmul.f32 %v620, %v620
          %v701 = vmul.f32 %v621, %v621
          %v702 = vmul.f32 %v622, %v622
          %v703 = vmul.f32 %v623, %v623
          %v704 = vmul.f32 %v624, %v624
          %v705 = vmul.f32 %v625, %v625
          %v706 = vmul.f32 %v626, %v626
          %v707 = vmul.f32 %v627, %v627
          %v708 = vmul.f32 %v628, %v628
          %v709 = vsub.f32 %v677, %v693
          %v710 = vsub.f32 %v678, %v694
          %v711 = vsub.f32 %v679, %v695
          %v712 = vsub.f32 %v680, %v696
          %v713 = vsub.f32 %v681, %v697
          %v714 = vsub.f32 %v682, %v698
          %v715 = vsub.f32 %v683, %v699
          %v716 = vsub.f32 %v684, %v700
          %v717 = vsub.f32 %v685, %v701
          %v718 = vsub.f32 %v686, %v702
          %v719 = vsub.f32 %v687, %v703
          %v720 = vsub.f32 %v688, %v704
          %v721 = vsub.f32 %v689, %v705
          %v722 = vsub.f32 %v690, %v706
          %v723 = vsub.f32 %v691, %v707
          %v724 = vsub.f32 %v692, %v708
          %v725 = vsub.f32 %v562, %v613
          %v726 = vsub.f32 %v563, %v614
          %v727 = vsub.f32 %v564, %v615
          %v728 = vsub.f32 %v565, %v616
          %v729 = vsub.f32 %v566, %v617
          %v730 = vsub.f32 %v567, %v618
          %v731 = vsub.f32 %v568, %v619
          %v732 = vsub.f32 %v569, %v620
          %v733 = vsub.f32 %v570, %v621
          %v734 = vsub.f32 %v571, %v622
          %v735 = vsub.f32 %v572, %v623
          %v736 = vsub.f32 %v573, %v624
          %v737 = vsub.f32 %v574, %v625
          %v738 = vsub.f32 %v575, %v626
          %v739 = vsub.f32 %v576, %v627
          %v740 = vsub.f32 %v577, %v628
          %v741 = vadd.f32 %v709, 1e-05
          %v742 = vadd.f32 %v710, 1e-05
          %v743 = vadd.f32 %v711, 1e-05
          %v744 = vadd.f32 %v712, 1e-05
          %v745 = vadd.f32 %v713, 1e-05
          %v746 = vadd.f32 %v714, 1e-05
          %v747 = vadd.f32 %v715, 1e-05
          %v748 = vadd.f32 %v716, 1e-05
          %v749 = vadd.f32 %v717, 1e-05
          %v750 = vadd.f32 %v718, 1e-05
          %v751 = vadd.f32 %v719, 1e-05
          %v752 = vadd.f32 %v720, 1e-05
          %v753 = vadd.f32 %v721, 1e-05
          %v754 = vadd.f32 %v722, 1e-05
          %v755 = vadd.f32 %v723, 1e-05
          %v756 = vadd.f32 %v724, 1e-05
          %v757 = vrsqrt.pop %v741
          %v758 = vrsqrt.pop %v742
          %v759 = vrsqrt.pop %v743
          %v760 = vrsqrt.pop %v744
          %v761 = vrsqrt.pop %v745
          %v762 = vrsqrt.pop %v746
          %v763 = vrsqrt.pop %v747
          %v764 = vrsqrt.pop %v748
          %v765 = vrsqrt.pop %v749
          %v766 = vrsqrt.pop %v750
          %v767 = vrsqrt.pop %v751
          %v768 = vrsqrt.pop %v752
          %v769 = vrsqrt.pop %v753
          %v770 = vrsqrt.pop %v754
          %v771 = vrsqrt.pop %v755
          %v772 = vrsqrt.pop %v756
          %v773 = vmul.f32 %v725, %v757
          %v774 = vmul.f32 %v726, %v758
          %v775 = vmul.f32 %v727, %v759
          %v776 = vmul.f32 %v728, %v760
          %v777 = vmul.f32 %v729, %v761
          %v778 = vmul.f32 %v730, %v762
          %v779 = vmul.f32 %v731, %v763
          %v780 = vmul.f32 %v732, %v764
          %v781 = vmul.f32 %v733, %v765
          %v782 = vmul.f32 %v734, %v766
          %v783 = vmul.f32 %v735, %v767
          %v784 = vmul.f32 %v736, %v768
          %v785 = vmul.f32 %v737, %v769
          %v786 = vmul.f32 %v738, %v770
          %v787 = vmul.f32 %v739, %v771
          %v788 = vmul.f32 %v740, %v772
          %v790 = vlaneseq
          %v791 = vshrl.u32 %v790, 7
          %v792 = vsub.s32 0, %v791
          %v793 = vrot.slane %v578, %v792
          %v795 = vmul.f32 %v773, %v793
          %v796 = vmul.f32 %v774, %v793
          %v797 = vmul.f32 %v775, %v793
          %v798 = vmul.f32 %v776, %v793
          %v799 = vmul.f32 %v777, %v793
          %v800 = vmul.f32 %v778, %v793
          %v801 = vmul.f32 %v779, %v793
          %v802 = vmul.f32 %v780, %v793
          %v803 = vmul.f32 %v781, %v793
          %v804 = vmul.f32 %v782, %v793
          %v805 = vmul.f32 %v783, %v793
          %v806 = vmul.f32 %v784, %v793
          %v807 = vmul.f32 %v785, %v793
          %v808 = vmul.f32 %v786, %v793
          %v809 = vmul.f32 %v787, %v793
          %v810 = vmul.f32 %v788, %v793
          %v812 = vlaneseq
          %v813 = vshrl.u32 %v812, 7
          %v814 = vsub.s32 0, %v813
          %v815 = vrot.slane %v579, %v814
          %v817 = vadd.f32 %v795, %v815
          %v818 = vadd.f32 %v796, %v815
          %v819 = vadd.f32 %v797, %v815
          %v820 = vadd.f32 %v798, %v815
          %v821 = vadd.f32 %v799, %v815
          %v822 = vadd.f32 %v800, %v815
          %v823 = vadd.f32 %v801, %v815
          %v824 = vadd.f32 %v802, %v815
          %v825 = vadd.f32 %v803, %v815
          %v826 = vadd.f32 %v804, %v815
          %v827 = vadd.f32 %v805, %v815
          %v828 = vadd.f32 %v806, %v815
          %v829 = vadd.f32 %v807, %v815
          %v830 = vadd.f32 %v808, %v815
          %v831 = vadd.f32 %v809, %v815
          %v832 = vadd.f32 %v810, %v815
          %v833 = vpack.c.bf16 %v818, %v817
          %v834 = vpack.c.bf16 %v820, %v819
          %v835 = vpack.c.bf16 %v822, %v821
          %v836 = vpack.c.bf16 %v824, %v823
          %v837 = vpack.c.bf16 %v826, %v825
          %v838 = vpack.c.bf16 %v828, %v827
          %v839 = vpack.c.bf16 %v830, %v829
          %v840 = vpack.c.bf16 %v832, %v831
          %v841 = vld [vmem:[#allocation12] sm:$0xff]
          %v842 = vld [vmem:[#allocation12 + $0x8] sm:$0xf]
          %v843 = vld [vmem:[#allocation12 + $0xc] sm:$0xff]
          %v844 = vld [vmem:[#allocation12 + $0x14] sm:$0xf]
          %v845 = vld [vmem:[#allocation12 + $0x18] sm:$0xff]
          %v846 = vld [vmem:[#allocation12 + $0x20] sm:$0xf]
          %v847 = vld [vmem:[#allocation12 + $0x24] sm:$0xff]
          %v848 = vld [vmem:[#allocation12 + $0x2c] sm:$0xf]
          %v849 = vld [vmem:[#allocation12 + $0x30] sm:$0xff]
          %v850 = vld [vmem:[#allocation12 + $0x38] sm:$0xf]
          %v851 = vld [vmem:[#allocation12 + $0x3c] sm:$0xff]
          %v852 = vld [vmem:[#allocation12 + $0x44] sm:$0xf]
          %v853 = vld [vmem:[#allocation12 + $0x48] sm:$0xff]
          %v854 = vld [vmem:[#allocation12 + $0x50] sm:$0xf]
          %v855 = vld [vmem:[#allocation12 + $0x54] sm:$0xff]
          %v856 = vld [vmem:[#allocation12 + $0x5c] sm:$0xf]
          %v857 = vld [vmem:[#allocation12 + $0x60] sm:$0xff]
          %v858 = vld [vmem:[#allocation12 + $0x68] sm:$0xf]
          %v859 = vld [vmem:[#allocation12 + $0x6c] sm:$0xff]
          %v860 = vld [vmem:[#allocation12 + $0x74] sm:$0xf]
          %v861 = vld [vmem:[#allocation12 + $0x78] sm:$0xff]
          %v862 = vld [vmem:[#allocation12 + $0x80] sm:$0xf]
          %v863 = vld [vmem:[#allocation12 + $0x84] sm:$0xff]
          %v864 = vld [vmem:[#allocation12 + $0x8c] sm:$0xf]
          %v865 = vld [vmem:[#allocation12 + $0x90] sm:$0xff]
          %v866 = vld [vmem:[#allocation12 + $0x98] sm:$0xf]
          %v867 = vld [vmem:[#allocation12 + $0x9c] sm:$0xff]
          %v868 = vld [vmem:[#allocation12 + $0xa4] sm:$0xf]
          %v869 = vld [vmem:[#allocation12 + $0xa8] sm:$0xff]
          %v870 = vld [vmem:[#allocation12 + $0xb0] sm:$0xf]
          %v871 = vld [vmem:[#allocation12 + $0xb4] sm:$0xff]
          %v872 = vld [vmem:[#allocation12 + $0xbc] sm:$0xf]
          %v873 = vld [vmem:[%s4] sm:$0x7]
          %v875 = vlaneseq
          %v876 = vshrl.u32 %v875, 7
          %v877 = vsub.s32 0, %v876
          %v878 = vrot.slane %v873, %v877
          %v879 = vlaneseq
          %v880 = vshrl.u32 %v879, 7
          %v881 = vsub.s32 1, %v880
          %v882 = vrot.slane %v873, %v881
          %v883 = vlaneseq
          %v884 = vshrl.u32 %v883, 7
          %v885 = vsub.s32 2, %v884
          %v886 = vrot.slane %v873, %v885
          %v922 = vunpack.c.l.b16 %v841
          %v923 = vunpack.c.h.b16 %v841
          %v924 = vunpack.c.l.b16 %v842
          %v925 = vunpack.c.l.b16 %v843
          %v926 = vunpack.c.h.b16 %v843
          %v927 = vunpack.c.l.b16 %v844
          %v928 = vunpack.c.l.b16 %v845
          %v929 = vunpack.c.h.b16 %v845
          %v930 = vunpack.c.l.b16 %v846
          %v931 = vunpack.c.l.b16 %v847
          %v932 = vunpack.c.h.b16 %v847
          %v933 = vunpack.c.l.b16 %v848
          %v934 = vunpack.c.l.b16 %v849
          %v935 = vunpack.c.h.b16 %v849
          %v936 = vunpack.c.l.b16 %v850
          %v937 = vunpack.c.l.b16 %v851
          %v938 = vunpack.c.h.b16 %v851
          %v939 = vunpack.c.l.b16 %v852
          %v940 = vunpack.c.l.b16 %v853
          %v941 = vunpack.c.h.b16 %v853
          %v942 = vunpack.c.l.b16 %v854
          %v943 = vunpack.c.l.b16 %v855
          %v944 = vunpack.c.h.b16 %v855
          %v945 = vunpack.c.l.b16 %v856
          %v946 = vunpack.c.l.b16 %v857
          %v947 = vunpack.c.h.b16 %v857
          %v948 = vunpack.c.l.b16 %v858
          %v949 = vunpack.c.l.b16 %v859
          %v950 = vunpack.c.h.b16 %v859
          %v951 = vunpack.c.l.b16 %v860
          %v952 = vunpack.c.l.b16 %v861
          %v953 = vunpack.c.h.b16 %v861
          %v954 = vunpack.c.l.b16 %v862
          %v955 = vunpack.c.l.b16 %v863
          %v956 = vunpack.c.h.b16 %v863
          %v957 = vunpack.c.l.b16 %v864
          %v958 = vunpack.c.l.b16 %v865
          %v959 = vunpack.c.h.b16 %v865
          %v960 = vunpack.c.l.b16 %v866
          %v961 = vunpack.c.l.b16 %v867
          %v962 = vunpack.c.h.b16 %v867
          %v963 = vunpack.c.l.b16 %v868
          %v964 = vunpack.c.l.b16 %v869
          %v965 = vunpack.c.h.b16 %v869
          %v966 = vunpack.c.l.b16 %v870
          %v967 = vunpack.c.l.b16 %v871
          %v968 = vunpack.c.h.b16 %v871
          %v969 = vunpack.c.l.b16 %v872
          %v970 = vpack.c.b16 %v925, %v922
          %v971 = vpack.c.b16 %v926, %v923
          %v972 = vpack.c.b16 %v927, %v924
          %v973 = vpack.c.b16 %v931, %v928
          %v974 = vpack.c.b16 %v932, %v929
          %v975 = vpack.c.b16 %v933, %v930
          %v976 = vpack.c.b16 %v937, %v934
          %v977 = vpack.c.b16 %v938, %v935
          %v978 = vpack.c.b16 %v939, %v936
          %v979 = vpack.c.b16 %v943, %v940
          %v980 = vpack.c.b16 %v944, %v941
          %v981 = vpack.c.b16 %v945, %v942
          %v982 = vpack.c.b16 %v949, %v946
          %v983 = vpack.c.b16 %v950, %v947
          %v984 = vpack.c.b16 %v951, %v948
          %v985 = vpack.c.b16 %v955, %v952
          %v986 = vpack.c.b16 %v956, %v953
          %v987 = vpack.c.b16 %v957, %v954
          %v988 = vpack.c.b16 %v961, %v958
          %v989 = vpack.c.b16 %v962, %v959
          %v990 = vpack.c.b16 %v963, %v960
          %v991 = vpack.c.b16 %v967, %v964
          %v992 = vpack.c.b16 %v968, %v965
          %v993 = vpack.c.b16 %v969, %v966
          %1018 = vmatprep.subr.bf16.mxu0 %v992
          %1019 = vmatpush1.bf16.msra.mxu0 %v991
          %1020 = vmatprep.subr.bf16.mxu0 %v989
          %1021 = vmatpush1.bf16.msra.mxu0 %v988
          %1022 = vmatprep.subr.bf16.mxu0 %v986
          %1023 = vmatpush1.bf16.msra.mxu0 %v985
          %1024 = vmatprep.subr.bf16.mxu0 %v983
          %1025 = vmatpush1.bf16.msra.mxu0 %v982
          %1026 = vmatprep.subr.bf16.mxu0 %v980
          %1027 = vmatpush1.bf16.msra.mxu0 %v979
          %1028 = vmatprep.subr.bf16.mxu0 %v977
          %1029 = vmatpush1.bf16.msra.mxu0 %v976
          %1030 = vmatprep.subr.bf16.mxu0 %v974
          %1031 = vmatpush1.bf16.msra.mxu0 %v973
          %1032 = vmatprep.subr.bf16.mxu0 %v971
          %1033 = vmatpush1.bf16.msra.mxu0 %v970
          %1034 = vmatprep.subr.bf16.mxu0 0
          %1035 = vmatpush2.bf16.msra.mxu0 0
          %1036 = vmatprep.subr.bf16.mxu0 0
          %1037 = vmatpush2.bf16.msra.mxu0 0
          %1038 = vmatprep.subr.bf16.mxu0 0
          %1039 = vmatpush2.bf16.msra.mxu0 0
          %1040 = vmatprep.subr.bf16.mxu0 0
          %1041 = vmatpush2.bf16.msra.mxu0 0
          %1042 = vmatprep.subr.bf16.mxu0 0
          %1043 = vmatpush2.bf16.msra.mxu0 0
          %1044 = vmatprep.subr.bf16.mxu0 0
          %1045 = vmatpush2.bf16.msra.mxu0 0
          %1046 = vmatprep.subr.bf16.mxu0 0
          %1047 = vmatpush2.bf16.msra.mxu0 0
          %1048 = vmatprep.subr.bf16.mxu0 0
          %1049 = vmatpush2.bf16.msra.mxu0 0
          %1050 = vmatprep.mubr.bf16.mxu0 0
          %1051 = vmatmul.mubr.bf16.gmra.mxu0 %v833
          %v1052 = vpop.f32.mrf.mxu0
          %v1053 = vadd.f32 %v878, %v1052
          %v1054 = vpop.f32.mrf.mxu0
          %v1055 = vadd.f32 %v882, %v1054
          %v1056 = vpop.f32.mrf.mxu0
          %v1057 = vadd.f32 %v878, %v1056
          %v1058 = vpop.f32.mrf.mxu0
          %v1059 = vadd.f32 %v882, %v1058
          %1060 = vmatprep.mubr.bf16.mxu0 0
          %1061 = vmatmul.mubr.bf16.gmra.mxu0 %v834
          %v1062 = vpop.f32.mrf.mxu0
          %v1063 = vadd.f32 %v878, %v1062
          %v1064 = vpop.f32.mrf.mxu0
          %v1065 = vadd.f32 %v882, %v1064
          %v1066 = vpop.f32.mrf.mxu0
          %v1067 = vadd.f32 %v878, %v1066
          %v1068 = vpop.f32.mrf.mxu0
          %v1069 = vadd.f32 %v882, %v1068
          %1070 = vmatprep.mubr.bf16.mxu0 0
          %1071 = vmatmul.mubr.bf16.gmra.mxu0 %v835
          %v1072 = vpop.f32.mrf.mxu0
          %v1073 = vadd.f32 %v878, %v1072
          %v1074 = vpop.f32.mrf.mxu0
          %v1075 = vadd.f32 %v882, %v1074
          %v1076 = vpop.f32.mrf.mxu0
          %v1077 = vadd.f32 %v878, %v1076
          %v1078 = vpop.f32.mrf.mxu0
          %v1079 = vadd.f32 %v882, %v1078
          %1080 = vmatprep.mubr.bf16.mxu0 0
          %1081 = vmatmul.mubr.bf16.gmra.mxu0 %v836
          %v1082 = vpop.f32.mrf.mxu0
          %v1083 = vadd.f32 %v878, %v1082
          %v1084 = vpop.f32.mrf.mxu0
          %v1085 = vadd.f32 %v882, %v1084
          %v1086 = vpop.f32.mrf.mxu0
          %v1087 = vadd.f32 %v878, %v1086
          %v1088 = vpop.f32.mrf.mxu0
          %v1089 = vadd.f32 %v882, %v1088
          %1090 = vmatprep.mubr.bf16.mxu0 0
          %1091 = vmatmul.mubr.bf16.gmra.mxu0 %v837
          %v1092 = vpop.f32.mrf.mxu0
          %v1093 = vadd.f32 %v878, %v1092
          %v1094 = vpop.f32.mrf.mxu0
          %v1095 = vadd.f32 %v882, %v1094
          %v1096 = vpop.f32.mrf.mxu0
          %v1097 = vadd.f32 %v878, %v1096
          %v1098 = vpop.f32.mrf.mxu0
          %v1099 = vadd.f32 %v882, %v1098
          %1100 = vmatprep.mubr.bf16.mxu0 0
          %1101 = vmatmul.mubr.bf16.gmra.mxu0 %v838
          %v1102 = vpop.f32.mrf.mxu0
          %v1103 = vadd.f32 %v878, %v1102
          %v1104 = vpop.f32.mrf.mxu0
          %v1105 = vadd.f32 %v882, %v1104
          %v1106 = vpop.f32.mrf.mxu0
          %v1107 = vadd.f32 %v878, %v1106
          %v1108 = vpop.f32.mrf.mxu0
          %v1109 = vadd.f32 %v882, %v1108
          %1110 = vmatprep.mubr.bf16.mxu0 0
          %1111 = vmatmul.mubr.bf16.gmra.mxu0 %v839
          %v1112 = vpop.f32.mrf.mxu0
          %v1113 = vadd.f32 %v878, %v1112
          %v1114 = vpop.f32.mrf.mxu0
          %v1115 = vadd.f32 %v882, %v1114
          %v1116 = vpop.f32.mrf.mxu0
          %v1117 = vadd.f32 %v878, %v1116
          %v1118 = vpop.f32.mrf.mxu0
          %v1119 = vadd.f32 %v882, %v1118
          %1120 = vmatprep.mubr.bf16.mxu0 0
          %1121 = vmatmul.mubr.bf16.gmra.mxu0 %v840
          %v1122 = vpop.f32.mrf.mxu0
          %v1123 = vadd.f32 %v878, %v1122
          %v1124 = vpop.f32.mrf.mxu0
          %v1125 = vadd.f32 %v882, %v1124
          %v1126 = vpop.f32.mrf.mxu0
          %v1127 = vadd.f32 %v878, %v1126
          %v1128 = vpop.f32.mrf.mxu0
          %v1129 = vadd.f32 %v882, %v1128
          %1130 = vdwg.mxu0
          %1131 = vmatprep.subr.bf16.mxu0 0
          %1132 = vmatpush1.bf16.msra.mxu0 %v993
          %1133 = vmatprep.subr.bf16.mxu0 0
          %1134 = vmatpush1.bf16.msra.mxu0 %v990
          %1135 = vmatprep.subr.bf16.mxu0 0
          %1136 = vmatpush1.bf16.msra.mxu0 %v987
          %1137 = vmatprep.subr.bf16.mxu0 0
          %1138 = vmatpush1.bf16.msra.mxu0 %v984
          %1139 = vmatprep.subr.bf16.mxu0 0
          %1140 = vmatpush1.bf16.msra.mxu0 %v981
          %1141 = vmatprep.subr.bf16.mxu0 0
          %1142 = vmatpush1.bf16.msra.mxu0 %v978
          %1143 = vmatprep.subr.bf16.mxu0 0
          %1144 = vmatpush1.bf16.msra.mxu0 %v975
          %1145 = vmatprep.subr.bf16.mxu0 0
          %1146 = vmatpush1.bf16.msra.mxu0 %v972
          %1147 = vmatprep.subr.bf16.mxu0 0
          %1148 = vmatpush2.bf16.msra.mxu0 0
          %1149 = vmatprep.subr.bf16.mxu0 0
          %1150 = vmatpush2.bf16.msra.mxu0 0
          %1151 = vmatprep.subr.bf16.mxu0 0
          %1152 = vmatpush2.bf16.msra.mxu0 0
          %1153 = vmatprep.subr.bf16.mxu0 0
          %1154 = vmatpush2.bf16.msra.mxu0 0
          %1155 = vmatprep.subr.bf16.mxu0 0
          %1156 = vmatpush2.bf16.msra.mxu0 0
          %1157 = vmatprep.subr.bf16.mxu0 0
          %1158 = vmatpush2.bf16.msra.mxu0 0
          %1159 = vmatprep.subr.bf16.mxu0 0
          %1160 = vmatpush2.bf16.msra.mxu0 0
          %1161 = vmatprep.subr.bf16.mxu0 0
          %1162 = vmatpush2.bf16.msra.mxu0 0
          %1163 = vmatprep.mubr.bf16.mxu0 0
          %1164 = vmatmul.mubr.bf16.gmra.mxu0 %v833
          %v1165 = vpop.f32.mrf.mxu0
          %v1166 = vadd.f32 %v886, %v1165
          %v1167 = vpop.f32.mrf.mxu0
          %v1168 = vpop.f32.mrf.mxu0
          %v1169 = vadd.f32 %v886, %v1168
          %v1170 = vpop.f32.mrf.mxu0
          %1171 = vmatprep.mubr.bf16.mxu0 0
          %1172 = vmatmul.mubr.bf16.gmra.mxu0 %v834
          %v1173 = vpop.f32.mrf.mxu0
          %v1174 = vadd.f32 %v886, %v1173
          %v1175 = vpop.f32.mrf.mxu0
          %v1176 = vpop.f32.mrf.mxu0
          %v1177 = vadd.f32 %v886, %v1176
          %v1178 = vpop.f32.mrf.mxu0
          %1179 = vmatprep.mubr.bf16.mxu0 0
          %1180 = vmatmul.mubr.bf16.gmra.mxu0 %v835
          %v1181 = vpop.f32.mrf.mxu0
          %v1182 = vadd.f32 %v886, %v1181
          %v1183 = vpop.f32.mrf.mxu0
          %v1184 = vpop.f32.mrf.mxu0
          %v1185 = vadd.f32 %v886, %v1184
          %v1186 = vpop.f32.mrf.mxu0
          %1187 = vmatprep.mubr.bf16.mxu0 0
          %1188 = vmatmul.mubr.bf16.gmra.mxu0 %v836
          %v1189 = vpop.f32.mrf.mxu0
          %v1190 = vadd.f32 %v886, %v1189
          %v1191 = vpop.f32.mrf.mxu0
          %v1192 = vpop.f32.mrf.mxu0
          %v1193 = vadd.f32 %v886, %v1192
          %v1194 = vpop.f32.mrf.mxu0
          %1195 = vmatprep.mubr.bf16.mxu0 0
          %1196 = vmatmul.mubr.bf16.gmra.mxu0 %v837
          %v1197 = vpop.f32.mrf.mxu0
          %v1198 = vadd.f32 %v886, %v1197
          %v1199 = vpop.f32.mrf.mxu0
          %v1200 = vpop.f32.mrf.mxu0
          %v1201 = vadd.f32 %v886, %v1200
          %v1202 = vpop.f32.mrf.mxu0
          %1203 = vmatprep.mubr.bf16.mxu0 0
          %1204 = vmatmul.mubr.bf16.gmra.mxu0 %v838
          %v1205 = vpop.f32.mrf.mxu0
          %v1206 = vadd.f32 %v886, %v1205
          %v1207 = vpop.f32.mrf.mxu0
          %v1208 = vpop.f32.mrf.mxu0
          %v1209 = vadd.f32 %v886, %v1208
          %v1210 = vpop.f32.mrf.mxu0
          %1211 = vmatprep.mubr.bf16.mxu0 0
          %1212 = vmatmul.mubr.bf16.gmra.mxu0 %v839
          %v1213 = vpop.f32.mrf.mxu0
          %v1214 = vadd.f32 %v886, %v1213
          %v1215 = vpop.f32.mrf.mxu0
          %v1216 = vpop.f32.mrf.mxu0
          %v1217 = vadd.f32 %v886, %v1216
          %v1218 = vpop.f32.mrf.mxu0
          %1219 = vmatprep.mubr.bf16.mxu0 0
          %1220 = vmatmul.mubr.bf16.gmra.mxu0 %v840
          %v1221 = vpop.f32.mrf.mxu0
          %v1222 = vadd.f32 %v886, %v1221
          %v1223 = vpop.f32.mrf.mxu0
          %v1224 = vpop.f32.mrf.mxu0
          %v1225 = vadd.f32 %v886, %v1224
          %v1226 = vpop.f32.mrf.mxu0
          %1227 = vdwg.mxu0
          %v1228 = vmul.f32 %v1053, 0.17677669
          %v1229 = vmul.f32 %v1057, 0.17677669
          %v1230 = vmul.f32 %v1063, 0.17677669
          %v1231 = vmul.f32 %v1067, 0.17677669
          %v1232 = vmul.f32 %v1073, 0.17677669
          %v1233 = vmul.f32 %v1077, 0.17677669
          %v1234 = vmul.f32 %v1083, 0.17677669
          %v1235 = vmul.f32 %v1087, 0.17677669
          %v1236 = vmul.f32 %v1093, 0.17677669
          %v1237 = vmul.f32 %v1097, 0.17677669
          %v1238 = vmul.f32 %v1103, 0.17677669
          %v1239 = vmul.f32 %v1107, 0.17677669
          %v1240 = vmul.f32 %v1113, 0.17677669
          %v1241 = vmul.f32 %v1117, 0.17677669
          %v1242 = vmul.f32 %v1123, 0.17677669
          %v1243 = vmul.f32 %v1127, 0.17677669
          %v1244 = vpack.c.bf16 %v1229, %v1228
          %v1245 = vpack.c.bf16 %v1231, %v1230
          %v1246 = vpack.c.bf16 %v1233, %v1232
          %v1247 = vpack.c.bf16 %v1235, %v1234
          %v1248 = vpack.c.bf16 %v1237, %v1236
          %v1249 = vpack.c.bf16 %v1239, %v1238
          %v1250 = vpack.c.bf16 %v1241, %v1240
          %v1251 = vpack.c.bf16 %v1243, %v1242
          %v1260 = vunpack.c.l.b16 %v1244
          %v1261 = vunpack.c.h.b16 %v1244
          %v1262 = vunpack.c.l.b16 %v1245
          %v1263 = vunpack.c.h.b16 %v1245
          %v1264 = vunpack.c.l.b16 %v1246
          %v1265 = vunpack.c.h.b16 %v1246
          %v1266 = vunpack.c.l.b16 %v1247
          %v1267 = vunpack.c.h.b16 %v1247
          %v1268 = vunpack.c.l.b16 %v1248
          %v1269 = vunpack.c.h.b16 %v1248
          %v1270 = vunpack.c.l.b16 %v1249
          %v1271 = vunpack.c.h.b16 %v1249
          %v1272 = vunpack.c.l.b16 %v1250
          %v1273 = vunpack.c.h.b16 %v1250
          %v1274 = vunpack.c.l.b16 %v1251
          %v1275 = vunpack.c.h.b16 %v1251
          %v1276 = vpack.c.b16 %v1260, %v1260
          %v1277 = vpack.c.b16 %v1261, %v1261
          %v1278 = vpack.c.b16 %v1262, %v1262
          %v1279 = vpack.c.b16 %v1263, %v1263
          %v1280 = vpack.c.b16 %v1264, %v1264
          %v1281 = vpack.c.b16 %v1265, %v1265
          %v1282 = vpack.c.b16 %v1266, %v1266
          %v1283 = vpack.c.b16 %v1267, %v1267
          %v1284 = vpack.c.b16 %v1268, %v1268
          %v1285 = vpack.c.b16 %v1269, %v1269
          %v1286 = vpack.c.b16 %v1270, %v1270
          %v1287 = vpack.c.b16 %v1271, %v1271
          %v1288 = vpack.c.b16 %v1272, %v1272
          %v1289 = vpack.c.b16 %v1273, %v1273
          %v1290 = vpack.c.b16 %v1274, %v1274
          %v1291 = vpack.c.b16 %v1275, %v1275
          %vm1308 = vcmask 257024
          %1309 = vst.msk [vmem:[#allocation2] sm:$0xf] %vm1308, %v1276
          %1310 = vst.msk [vmem:[#allocation2 + $0x4] sm:$0xf] %vm1308, %v1277
          %1311 = vst.msk [vmem:[#allocation2 + $0x8] sm:$0xf] %vm1308, %v1278
          %1312 = vst.msk [vmem:[#allocation2 + $0xc] sm:$0xf] %vm1308, %v1279
          %1313 = vst.msk [vmem:[#allocation2 + $0x10] sm:$0xf] %vm1308, %v1280
          %1314 = vst.msk [vmem:[#allocation2 + $0x14] sm:$0xf] %vm1308, %v1281
          %1315 = vst.msk [vmem:[#allocation2 + $0x18] sm:$0xf] %vm1308, %v1282
          %1316 = vst.msk [vmem:[#allocation2 + $0x1c] sm:$0xf] %vm1308, %v1283
          %1317 = vst.msk [vmem:[#allocation2 + $0x20] sm:$0xf] %vm1308, %v1284
          %1318 = vst.msk [vmem:[#allocation2 + $0x24] sm:$0xf] %vm1308, %v1285
          %1319 = vst.msk [vmem:[#allocation2 + $0x28] sm:$0xf] %vm1308, %v1286
          %1320 = vst.msk [vmem:[#allocation2 + $0x2c] sm:$0xf] %vm1308, %v1287
          %1321 = vst.msk [vmem:[#allocation2 + $0x30] sm:$0xf] %vm1308, %v1288
          %1322 = vst.msk [vmem:[#allocation2 + $0x34] sm:$0xf] %vm1308, %v1289
          %1323 = vst.msk [vmem:[#allocation2 + $0x38] sm:$0xf] %vm1308, %v1290
          %1324 = vst.msk [vmem:[#allocation2 + $0x3c] sm:$0xf] %vm1308, %v1291
          %v1325 = vpack.c.bf16 %v1059, %v1055
          %v1326 = vpack.c.bf16 %v1069, %v1065
          %v1327 = vpack.c.bf16 %v1079, %v1075
          %v1328 = vpack.c.bf16 %v1089, %v1085
          %v1329 = vpack.c.bf16 %v1099, %v1095
          %v1330 = vpack.c.bf16 %v1109, %v1105
          %v1331 = vpack.c.bf16 %v1119, %v1115
          %v1332 = vpack.c.bf16 %v1129, %v1125
          %v1341 = vunpack.c.l.b16 %v1325
          %v1342 = vunpack.c.h.b16 %v1325
          %v1343 = vunpack.c.l.b16 %v1326
          %v1344 = vunpack.c.h.b16 %v1326
          %v1345 = vunpack.c.l.b16 %v1327
          %v1346 = vunpack.c.h.b16 %v1327
          %v1347 = vunpack.c.l.b16 %v1328
          %v1348 = vunpack.c.h.b16 %v1328
          %v1349 = vunpack.c.l.b16 %v1329
          %v1350 = vunpack.c.h.b16 %v1329
          %v1351 = vunpack.c.l.b16 %v1330
          %v1352 = vunpack.c.h.b16 %v1330
          %v1353 = vunpack.c.l.b16 %v1331
          %v1354 = vunpack.c.h.b16 %v1331
          %v1355 = vunpack.c.l.b16 %v1332
          %v1356 = vunpack.c.h.b16 %v1332
          %v1357 = vpack.c.b16 %v1341, %v1341
          %v1358 = vpack.c.b16 %v1342, %v1342
          %v1359 = vpack.c.b16 %v1343, %v1343
          %v1360 = vpack.c.b16 %v1344, %v1344
          %v1361 = vpack.c.b16 %v1345, %v1345
          %v1362 = vpack.c.b16 %v1346, %v1346
          %v1363 = vpack.c.b16 %v1347, %v1347
          %v1364 = vpack.c.b16 %v1348, %v1348
          %v1365 = vpack.c.b16 %v1349, %v1349
          %v1366 = vpack.c.b16 %v1350, %v1350
          %v1367 = vpack.c.b16 %v1351, %v1351
          %v1368 = vpack.c.b16 %v1352, %v1352
          %v1369 = vpack.c.b16 %v1353, %v1353
          %v1370 = vpack.c.b16 %v1354, %v1354
          %v1371 = vpack.c.b16 %v1355, %v1355
          %v1372 = vpack.c.b16 %v1356, %v1356
          %1389 = vst.msk [vmem:[#allocation3] sm:$0xf] %vm1308, %v1357
          %1390 = vst.msk [vmem:[#allocation3 + $0x4] sm:$0xf] %vm1308, %v1358
          %1391 = vst.msk [vmem:[#allocation3 + $0x8] sm:$0xf] %vm1308, %v1359
          %1392 = vst.msk [vmem:[#allocation3 + $0xc] sm:$0xf] %vm1308, %v1360
          %1393 = vst.msk [vmem:[#allocation3 + $0x10] sm:$0xf] %vm1308, %v1361
          %1394 = vst.msk [vmem:[#allocation3 + $0x14] sm:$0xf] %vm1308, %v1362
          %1395 = vst.msk [vmem:[#allocation3 + $0x18] sm:$0xf] %vm1308, %v1363
          %1396 = vst.msk [vmem:[#allocation3 + $0x1c] sm:$0xf] %vm1308, %v1364
          %1397 = vst.msk [vmem:[#allocation3 + $0x20] sm:$0xf] %vm1308, %v1365
          %1398 = vst.msk [vmem:[#allocation3 + $0x24] sm:$0xf] %vm1308, %v1366
          %1399 = vst.msk [vmem:[#allocation3 + $0x28] sm:$0xf] %vm1308, %v1367
          %1400 = vst.msk [vmem:[#allocation3 + $0x2c] sm:$0xf] %vm1308, %v1368
          %1401 = vst.msk [vmem:[#allocation3 + $0x30] sm:$0xf] %vm1308, %v1369
          %1402 = vst.msk [vmem:[#allocation3 + $0x34] sm:$0xf] %vm1308, %v1370
          %1403 = vst.msk [vmem:[#allocation3 + $0x38] sm:$0xf] %vm1308, %v1371
          %1404 = vst.msk [vmem:[#allocation3 + $0x3c] sm:$0xf] %vm1308, %v1372
          %v1405 = vpack.c.bf16 %v1169, %v1166
          %v1406 = vpack.c.bf16 %v1177, %v1174
          %v1407 = vpack.c.bf16 %v1185, %v1182
          %v1408 = vpack.c.bf16 %v1193, %v1190
          %v1409 = vpack.c.bf16 %v1201, %v1198
          %v1410 = vpack.c.bf16 %v1209, %v1206
          %v1411 = vpack.c.bf16 %v1217, %v1214
          %v1412 = vpack.c.bf16 %v1225, %v1222
          %v1421 = vunpack.c.l.b16 %v1405
          %v1422 = vunpack.c.h.b16 %v1405
          %v1423 = vunpack.c.l.b16 %v1406
          %v1424 = vunpack.c.h.b16 %v1406
          %v1425 = vunpack.c.l.b16 %v1407
          %v1426 = vunpack.c.h.b16 %v1407
          %v1427 = vunpack.c.l.b16 %v1408
          %v1428 = vunpack.c.h.b16 %v1408
          %v1429 = vunpack.c.l.b16 %v1409
          %v1430 = vunpack.c.h.b16 %v1409
          %v1431 = vunpack.c.l.b16 %v1410
          %v1432 = vunpack.c.h.b16 %v1410
          %v1433 = vunpack.c.l.b16 %v1411
          %v1434 = vunpack.c.h.b16 %v1411
          %v1435 = vunpack.c.l.b16 %v1412
          %v1436 = vunpack.c.h.b16 %v1412
          %v1437 = vpack.c.b16 %v1421, %v1421
          %v1438 = vpack.c.b16 %v1422, %v1422
          %v1439 = vpack.c.b16 %v1423, %v1423
          %v1440 = vpack.c.b16 %v1424, %v1424
          %v1441 = vpack.c.b16 %v1425, %v1425
          %v1442 = vpack.c.b16 %v1426, %v1426
          %v1443 = vpack.c.b16 %v1427, %v1427
          %v1444 = vpack.c.b16 %v1428, %v1428
          %v1445 = vpack.c.b16 %v1429, %v1429
          %v1446 = vpack.c.b16 %v1430, %v1430
          %v1447 = vpack.c.b16 %v1431, %v1431
          %v1448 = vpack.c.b16 %v1432, %v1432
          %v1449 = vpack.c.b16 %v1433, %v1433
          %v1450 = vpack.c.b16 %v1434, %v1434
          %v1451 = vpack.c.b16 %v1435, %v1435
          %v1452 = vpack.c.b16 %v1436, %v1436
          %1469 = vst.msk [vmem:[#allocation4] sm:$0xf] %vm1308, %v1437
          %1470 = vst.msk [vmem:[#allocation4 + $0x4] sm:$0xf] %vm1308, %v1438
          %1471 = vst.msk [vmem:[#allocation4 + $0x8] sm:$0xf] %vm1308, %v1439
          %1472 = vst.msk [vmem:[#allocation4 + $0xc] sm:$0xf] %vm1308, %v1440
          %1473 = vst.msk [vmem:[#allocation4 + $0x10] sm:$0xf] %vm1308, %v1441
          %1474 = vst.msk [vmem:[#allocation4 + $0x14] sm:$0xf] %vm1308, %v1442
          %1475 = vst.msk [vmem:[#allocation4 + $0x18] sm:$0xf] %vm1308, %v1443
          %1476 = vst.msk [vmem:[#allocation4 + $0x1c] sm:$0xf] %vm1308, %v1444
          %1477 = vst.msk [vmem:[#allocation4 + $0x20] sm:$0xf] %vm1308, %v1445
          %1478 = vst.msk [vmem:[#allocation4 + $0x24] sm:$0xf] %vm1308, %v1446
          %1479 = vst.msk [vmem:[#allocation4 + $0x28] sm:$0xf] %vm1308, %v1447
          %1480 = vst.msk [vmem:[#allocation4 + $0x2c] sm:$0xf] %vm1308, %v1448
          %1481 = vst.msk [vmem:[#allocation4 + $0x30] sm:$0xf] %vm1308, %v1449
          %1482 = vst.msk [vmem:[#allocation4 + $0x34] sm:$0xf] %vm1308, %v1450
          %1483 = vst.msk [vmem:[#allocation4 + $0x38] sm:$0xf] %vm1308, %v1451
          %1484 = vst.msk [vmem:[#allocation4 + $0x3c] sm:$0xf] %vm1308, %v1452
          %1485 = vrot.lane.b32.xlu0 %v1276, 96
          %v1486 = vpop.permute.xlu0 %1485
          %1487 = vrot.lane.b32.xlu0 %v1277, 96
          %v1488 = vpop.permute.xlu0 %1487
          %1489 = vrot.lane.b32.xlu0 %v1278, 96
          %v1490 = vpop.permute.xlu0 %1489
          %1491 = vrot.lane.b32.xlu0 %v1279, 96
          %v1492 = vpop.permute.xlu0 %1491
          %1493 = vrot.lane.b32.xlu0 %v1280, 96
          %v1494 = vpop.permute.xlu0 %1493
          %1495 = vrot.lane.b32.xlu0 %v1281, 96
          %v1496 = vpop.permute.xlu0 %1495
          %1497 = vrot.lane.b32.xlu0 %v1282, 96
          %v1498 = vpop.permute.xlu0 %1497
          %1499 = vrot.lane.b32.xlu0 %v1283, 96
          %v1500 = vpop.permute.xlu0 %1499
          %1501 = vrot.lane.b32.xlu0 %v1284, 96
          %v1502 = vpop.permute.xlu0 %1501
          %1503 = vrot.lane.b32.xlu0 %v1285, 96
          %v1504 = vpop.permute.xlu0 %1503
          %1505 = vrot.lane.b32.xlu0 %v1286, 96
          %v1506 = vpop.permute.xlu0 %1505
          %1507 = vrot.lane.b32.xlu0 %v1287, 96
          %v1508 = vpop.permute.xlu0 %1507
          %1509 = vrot.lane.b32.xlu0 %v1288, 96
          %v1510 = vpop.permute.xlu0 %1509
          %1511 = vrot.lane.b32.xlu0 %v1289, 96
          %v1512 = vpop.permute.xlu0 %1511
          %1513 = vrot.lane.b32.xlu0 %v1290, 96
          %v1514 = vpop.permute.xlu0 %1513
          %1515 = vrot.lane.b32.xlu0 %v1291, 96
          %v1516 = vpop.permute.xlu0 %1515
          %s1533 = scalar_lea.vmem [#allocation2], 64
          %1534 = vst.msk [vmem:[%s1533] sm:$0xf] %vm1308, %v1486
          %1535 = vst.msk [vmem:[%s1533 + $0x4] sm:$0xf] %vm1308, %v1488
          %1536 = vst.msk [vmem:[%s1533 + $0x8] sm:$0xf] %vm1308, %v1490
          %1537 = vst.msk [vmem:[%s1533 + $0xc] sm:$0xf] %vm1308, %v1492
          %1538 = vst.msk [vmem:[%s1533 + $0x10] sm:$0xf] %vm1308, %v1494
          %1539 = vst.msk [vmem:[%s1533 + $0x14] sm:$0xf] %vm1308, %v1496
          %1540 = vst.msk [vmem:[%s1533 + $0x18] sm:$0xf] %vm1308, %v1498
          %1541 = vst.msk [vmem:[%s1533 + $0x1c] sm:$0xf] %vm1308, %v1500
          %1542 = vst.msk [vmem:[%s1533 + $0x20] sm:$0xf] %vm1308, %v1502
          %1543 = vst.msk [vmem:[%s1533 + $0x24] sm:$0xf] %vm1308, %v1504
          %1544 = vst.msk [vmem:[%s1533 + $0x28] sm:$0xf] %vm1308, %v1506
          %1545 = vst.msk [vmem:[%s1533 + $0x2c] sm:$0xf] %vm1308, %v1508
          %1546 = vst.msk [vmem:[%s1533 + $0x30] sm:$0xf] %vm1308, %v1510
          %1547 = vst.msk [vmem:[%s1533 + $0x34] sm:$0xf] %vm1308, %v1512
          %1548 = vst.msk [vmem:[%s1533 + $0x38] sm:$0xf] %vm1308, %v1514
          %1549 = vst.msk [vmem:[%s1533 + $0x3c] sm:$0xf] %vm1308, %v1516
          %1550 = vrot.lane.b32.xlu0 %v1357, 96
          %v1551 = vpop.permute.xlu0 %1550
          %1552 = vrot.lane.b32.xlu0 %v1358, 96
          %v1553 = vpop.permute.xlu0 %1552
          %1554 = vrot.lane.b32.xlu0 %v1359, 96
          %v1555 = vpop.permute.xlu0 %1554
          %1556 = vrot.lane.b32.xlu0 %v1360, 96
          %v1557 = vpop.permute.xlu0 %1556
          %1558 = vrot.lane.b32.xlu0 %v1361, 96
          %v1559 = vpop.permute.xlu0 %1558
          %1560 = vrot.lane.b32.xlu0 %v1362, 96
          %v1561 = vpop.permute.xlu0 %1560
          %1562 = vrot.lane.b32.xlu0 %v1363, 96
          %v1563 = vpop.permute.xlu0 %1562
          %1564 = vrot.lane.b32.xlu0 %v1364, 96
          %v1565 = vpop.permute.xlu0 %1564
          %1566 = vrot.lane.b32.xlu0 %v1365, 96
          %v1567 = vpop.permute.xlu0 %1566
          %1568 = vrot.lane.b32.xlu0 %v1366, 96
          %v1569 = vpop.permute.xlu0 %1568
          %1570 = vrot.lane.b32.xlu0 %v1367, 96
          %v1571 = vpop.permute.xlu0 %1570
          %1572 = vrot.lane.b32.xlu0 %v1368, 96
          %v1573 = vpop.permute.xlu0 %1572
          %1574 = vrot.lane.b32.xlu0 %v1369, 96
          %v1575 = vpop.permute.xlu0 %1574
          %1576 = vrot.lane.b32.xlu0 %v1370, 96
          %v1577 = vpop.permute.xlu0 %1576
          %1578 = vrot.lane.b32.xlu0 %v1371, 96
          %v1579 = vpop.permute.xlu0 %1578
          %1580 = vrot.lane.b32.xlu0 %v1372, 96
          %v1581 = vpop.permute.xlu0 %1580
          %s1598 = scalar_lea.vmem [#allocation3], 64
          %1599 = vst.msk [vmem:[%s1598] sm:$0xf] %vm1308, %v1551
          %1600 = vst.msk [vmem:[%s1598 + $0x4] sm:$0xf] %vm1308, %v1553
          %1601 = vst.msk [vmem:[%s1598 + $0x8] sm:$0xf] %vm1308, %v1555
          %1602 = vst.msk [vmem:[%s1598 + $0xc] sm:$0xf] %vm1308, %v1557
          %1603 = vst.msk [vmem:[%s1598 + $0x10] sm:$0xf] %vm1308, %v1559
          %1604 = vst.msk [vmem:[%s1598 + $0x14] sm:$0xf] %vm1308, %v1561
          %1605 = vst.msk [vmem:[%s1598 + $0x18] sm:$0xf] %vm1308, %v1563
          %1606 = vst.msk [vmem:[%s1598 + $0x1c] sm:$0xf] %vm1308, %v1565
          %1607 = vst.msk [vmem:[%s1598 + $0x20] sm:$0xf] %vm1308, %v1567
          %1608 = vst.msk [vmem:[%s1598 + $0x24] sm:$0xf] %vm1308, %v1569
          %1609 = vst.msk [vmem:[%s1598 + $0x28] sm:$0xf] %vm1308, %v1571
          %1610 = vst.msk [vmem:[%s1598 + $0x2c] sm:$0xf] %vm1308, %v1573
          %1611 = vst.msk [vmem:[%s1598 + $0x30] sm:$0xf] %vm1308, %v1575
          %1612 = vst.msk [vmem:[%s1598 + $0x34] sm:$0xf] %vm1308, %v1577
          %1613 = vst.msk [vmem:[%s1598 + $0x38] sm:$0xf] %vm1308, %v1579
          %1614 = vst.msk [vmem:[%s1598 + $0x3c] sm:$0xf] %vm1308, %v1581
          %1615 = vrot.lane.b32.xlu0 %v1437, 96
          %v1616 = vpop.permute.xlu0 %1615
          %1617 = vrot.lane.b32.xlu0 %v1438, 96
          %v1618 = vpop.permute.xlu0 %1617
          %1619 = vrot.lane.b32.xlu0 %v1439, 96
          %v1620 = vpop.permute.xlu0 %1619
          %1621 = vrot.lane.b32.xlu0 %v1440, 96
          %v1622 = vpop.permute.xlu0 %1621
          %1623 = vrot.lane.b32.xlu0 %v1441, 96
          %v1624 = vpop.permute.xlu0 %1623
          %1625 = vrot.lane.b32.xlu0 %v1442, 96
          %v1626 = vpop.permute.xlu0 %1625
          %1627 = vrot.lane.b32.xlu0 %v1443, 96
          %v1628 = vpop.permute.xlu0 %1627
          %1629 = vrot.lane.b32.xlu0 %v1444, 96
          %v1630 = vpop.permute.xlu0 %1629
          %1631 = vrot.lane.b32.xlu0 %v1445, 96
          %v1632 = vpop.permute.xlu0 %1631
          %1633 = vrot.lane.b32.xlu0 %v1446, 96
          %v1634 = vpop.permute.xlu0 %1633
          %1635 = vrot.lane.b32.xlu0 %v1447, 96
          %v1636 = vpop.permute.xlu0 %1635
          %1637 = vrot.lane.b32.xlu0 %v1448, 96
          %v1638 = vpop.permute.xlu0 %1637
          %1639 = vrot.lane.b32.xlu0 %v1449, 96
          %v1640 = vpop.permute.xlu0 %1639
          %1641 = vrot.lane.b32.xlu0 %v1450, 96
          %v1642 = vpop.permute.xlu0 %1641
          %1643 = vrot.lane.b32.xlu0 %v1451, 96
          %v1644 = vpop.permute.xlu0 %1643
          %1645 = vrot.lane.b32.xlu0 %v1452, 96
          %v1646 = vpop.permute.xlu0 %1645
          %s1663 = scalar_lea.vmem [#allocation4], 64
          %1664 = vst.msk [vmem:[%s1663] sm:$0xf] %vm1308, %v1616
          %1665 = vst.msk [vmem:[%s1663 + $0x4] sm:$0xf] %vm1308, %v1618
          %1666 = vst.msk [vmem:[%s1663 + $0x8] sm:$0xf] %vm1308, %v1620
          %1667 = vst.msk [vmem:[%s1663 + $0xc] sm:$0xf] %vm1308, %v1622
          %1668 = vst.msk [vmem:[%s1663 + $0x10] sm:$0xf] %vm1308, %v1624
          %1669 = vst.msk [vmem:[%s1663 + $0x14] sm:$0xf] %vm1308, %v1626
          %1670 = vst.msk [vmem:[%s1663 + $0x18] sm:$0xf] %vm1308, %v1628
          %1671 = vst.msk [vmem:[%s1663 + $0x1c] sm:$0xf] %vm1308, %v1630
          %1672 = vst.msk [vmem:[%s1663 + $0x20] sm:$0xf] %vm1308, %v1632
          %1673 = vst.msk [vmem:[%s1663 + $0x24] sm:$0xf] %vm1308, %v1634
          %1674 = vst.msk [vmem:[%s1663 + $0x28] sm:$0xf] %vm1308, %v1636
          %1675 = vst.msk [vmem:[%s1663 + $0x2c] sm:$0xf] %vm1308, %v1638
          %1676 = vst.msk [vmem:[%s1663 + $0x30] sm:$0xf] %vm1308, %v1640
          %1677 = vst.msk [vmem:[%s1663 + $0x34] sm:$0xf] %vm1308, %v1642
          %1678 = vst.msk [vmem:[%s1663 + $0x38] sm:$0xf] %vm1308, %v1644
          %1679 = vst.msk [vmem:[%s1663 + $0x3c] sm:$0xf] %vm1308, %v1646
          %1680 = vrot.lane.b32.xlu0 %v1276, 64
          %v1681 = vpop.permute.xlu0 %1680
          %1682 = vrot.lane.b32.xlu0 %v1277, 64
          %v1683 = vpop.permute.xlu0 %1682
          %1684 = vrot.lane.b32.xlu0 %v1278, 64
          %v1685 = vpop.permute.xlu0 %1684
          %1686 = vrot.lane.b32.xlu0 %v1279, 64
          %v1687 = vpop.permute.xlu0 %1686
          %1688 = vrot.lane.b32.xlu0 %v1280, 64
          %v1689 = vpop.permute.xlu0 %1688
          %1690 = vrot.lane.b32.xlu0 %v1281, 64
          %v1691 = vpop.permute.xlu0 %1690
          %1692 = vrot.lane.b32.xlu0 %v1282, 64
          %v1693 = vpop.permute.xlu0 %1692
          %1694 = vrot.lane.b32.xlu0 %v1283, 64
          %v1695 = vpop.permute.xlu0 %1694
          %1696 = vrot.lane.b32.xlu0 %v1284, 64
          %v1697 = vpop.permute.xlu0 %1696
          %1698 = vrot.lane.b32.xlu0 %v1285, 64
          %v1699 = vpop.permute.xlu0 %1698
          %1700 = vrot.lane.b32.xlu0 %v1286, 64
          %v1701 = vpop.permute.xlu0 %1700
          %1702 = vrot.lane.b32.xlu0 %v1287, 64
          %v1703 = vpop.permute.xlu0 %1702
          %1704 = vrot.lane.b32.xlu0 %v1288, 64
          %v1705 = vpop.permute.xlu0 %1704
          %1706 = vrot.lane.b32.xlu0 %v1289, 64
          %v1707 = vpop.permute.xlu0 %1706
          %1708 = vrot.lane.b32.xlu0 %v1290, 64
          %v1709 = vpop.permute.xlu0 %1708
          %1710 = vrot.lane.b32.xlu0 %v1291, 64
          %v1711 = vpop.permute.xlu0 %1710
          %s1728 = scalar_lea.vmem [#allocation2], 128
          %1729 = vst.msk [vmem:[%s1728] sm:$0xf] %vm1308, %v1681
          %1730 = vst.msk [vmem:[%s1728 + $0x4] sm:$0xf] %vm1308, %v1683
          %1731 = vst.msk [vmem:[%s1728 + $0x8] sm:$0xf] %vm1308, %v1685
          %1732 = vst.msk [vmem:[%s1728 + $0xc] sm:$0xf] %vm1308, %v1687
          %1733 = vst.msk [vmem:[%s1728 + $0x10] sm:$0xf] %vm1308, %v1689
          %1734 = vst.msk [vmem:[%s1728 + $0x14] sm:$0xf] %vm1308, %v1691
          %1735 = vst.msk [vmem:[%s1728 + $0x18] sm:$0xf] %vm1308, %v1693
          %1736 = vst.msk [vmem:[%s1728 + $0x1c] sm:$0xf] %vm1308, %v1695
          %1737 = vst.msk [vmem:[%s1728 + $0x20] sm:$0xf] %vm1308, %v1697
          %1738 = vst.msk [vmem:[%s1728 + $0x24] sm:$0xf] %vm1308, %v1699
          %1739 = vst.msk [vmem:[%s1728 + $0x28] sm:$0xf] %vm1308, %v1701
          %1740 = vst.msk [vmem:[%s1728 + $0x2c] sm:$0xf] %vm1308, %v1703
          %1741 = vst.msk [vmem:[%s1728 + $0x30] sm:$0xf] %vm1308, %v1705
          %1742 = vst.msk [vmem:[%s1728 + $0x34] sm:$0xf] %vm1308, %v1707
          %1743 = vst.msk [vmem:[%s1728 + $0x38] sm:$0xf] %vm1308, %v1709
          %1744 = vst.msk [vmem:[%s1728 + $0x3c] sm:$0xf] %vm1308, %v1711
          %1745 = vrot.lane.b32.xlu0 %v1357, 64
          %v1746 = vpop.permute.xlu0 %1745
          %1747 = vrot.lane.b32.xlu0 %v1358, 64
          %v1748 = vpop.permute.xlu0 %1747
          %1749 = vrot.lane.b32.xlu0 %v1359, 64
          %v1750 = vpop.permute.xlu0 %1749
          %1751 = vrot.lane.b32.xlu0 %v1360, 64
          %v1752 = vpop.permute.xlu0 %1751
          %1753 = vrot.lane.b32.xlu0 %v1361, 64
          %v1754 = vpop.permute.xlu0 %1753
          %1755 = vrot.lane.b32.xlu0 %v1362, 64
          %v1756 = vpop.permute.xlu0 %1755
          %1757 = vrot.lane.b32.xlu0 %v1363, 64
          %v1758 = vpop.permute.xlu0 %1757
          %1759 = vrot.lane.b32.xlu0 %v1364, 64
          %v1760 = vpop.permute.xlu0 %1759
          %1761 = vrot.lane.b32.xlu0 %v1365, 64
          %v1762 = vpop.permute.xlu0 %1761
          %1763 = vrot.lane.b32.xlu0 %v1366, 64
          %v1764 = vpop.permute.xlu0 %1763
          %1765 = vrot.lane.b32.xlu0 %v1367, 64
          %v1766 = vpop.permute.xlu0 %1765
          %1767 = vrot.lane.b32.xlu0 %v1368, 64
          %v1768 = vpop.permute.xlu0 %1767
          %1769 = vrot.lane.b32.xlu0 %v1369, 64
          %v1770 = vpop.permute.xlu0 %1769
          %1771 = vrot.lane.b32.xlu0 %v1370, 64
          %v1772 = vpop.permute.xlu0 %1771
          %1773 = vrot.lane.b32.xlu0 %v1371, 64
          %v1774 = vpop.permute.xlu0 %1773
          %1775 = vrot.lane.b32.xlu0 %v1372, 64
          %v1776 = vpop.permute.xlu0 %1775
          %s1793 = scalar_lea.vmem [#allocation3], 128
          %1794 = vst.msk [vmem:[%s1793] sm:$0xf] %vm1308, %v1746
          %1795 = vst.msk [vmem:[%s1793 + $0x4] sm:$0xf] %vm1308, %v1748
          %1796 = vst.msk [vmem:[%s1793 + $0x8] sm:$0xf] %vm1308, %v1750
          %1797 = vst.msk [vmem:[%s1793 + $0xc] sm:$0xf] %vm1308, %v1752
          %1798 = vst.msk [vmem:[%s1793 + $0x10] sm:$0xf] %vm1308, %v1754
          %1799 = vst.msk [vmem:[%s1793 + $0x14] sm:$0xf] %vm1308, %v1756
          %1800 = vst.msk [vmem:[%s1793 + $0x18] sm:$0xf] %vm1308, %v1758
          %1801 = vst.msk [vmem:[%s1793 + $0x1c] sm:$0xf] %vm1308, %v1760
          %1802 = vst.msk [vmem:[%s1793 + $0x20] sm:$0xf] %vm1308, %v1762
          %1803 = vst.msk [vmem:[%s1793 + $0x24] sm:$0xf] %vm1308, %v1764
          %1804 = vst.msk [vmem:[%s1793 + $0x28] sm:$0xf] %vm1308, %v1766
          %1805 = vst.msk [vmem:[%s1793 + $0x2c] sm:$0xf] %vm1308, %v1768
          %1806 = vst.msk [vmem:[%s1793 + $0x30] sm:$0xf] %vm1308, %v1770
          %1807 = vst.msk [vmem:[%s1793 + $0x34] sm:$0xf] %vm1308, %v1772
          %1808 = vst.msk [vmem:[%s1793 + $0x38] sm:$0xf] %vm1308, %v1774
          %1809 = vst.msk [vmem:[%s1793 + $0x3c] sm:$0xf] %vm1308, %v1776
          %1810 = vrot.lane.b32.xlu0 %v1437, 64
          %v1811 = vpop.permute.xlu0 %1810
          %1812 = vrot.lane.b32.xlu0 %v1438, 64
          %v1813 = vpop.permute.xlu0 %1812
          %1814 = vrot.lane.b32.xlu0 %v1439, 64
          %v1815 = vpop.permute.xlu0 %1814
          %1816 = vrot.lane.b32.xlu0 %v1440, 64
          %v1817 = vpop.permute.xlu0 %1816
          %1818 = vrot.lane.b32.xlu0 %v1441, 64
          %v1819 = vpop.permute.xlu0 %1818
          %1820 = vrot.lane.b32.xlu0 %v1442, 64
          %v1821 = vpop.permute.xlu0 %1820
          %1822 = vrot.lane.b32.xlu0 %v1443, 64
          %v1823 = vpop.permute.xlu0 %1822
          %1824 = vrot.lane.b32.xlu0 %v1444, 64
          %v1825 = vpop.permute.xlu0 %1824
          %1826 = vrot.lane.b32.xlu0 %v1445, 64
          %v1827 = vpop.permute.xlu0 %1826
          %1828 = vrot.lane.b32.xlu0 %v1446, 64
          %v1829 = vpop.permute.xlu0 %1828
          %1830 = vrot.lane.b32.xlu0 %v1447, 64
          %v1831 = vpop.permute.xlu0 %1830
          %1832 = vrot.lane.b32.xlu0 %v1448, 64
          %v1833 = vpop.permute.xlu0 %1832
          %1834 = vrot.lane.b32.xlu0 %v1449, 64
          %v1835 = vpop.permute.xlu0 %1834
          %1836 = vrot.lane.b32.xlu0 %v1450, 64
          %v1837 = vpop.permute.xlu0 %1836
          %1838 = vrot.lane.b32.xlu0 %v1451, 64
          %v1839 = vpop.permute.xlu0 %1838
          %1840 = vrot.lane.b32.xlu0 %v1452, 64
          %v1841 = vpop.permute.xlu0 %1840
          %s1858 = scalar_lea.vmem [#allocation4], 128
          %1859 = vst.msk [vmem:[%s1858] sm:$0xf] %vm1308, %v1811
          %1860 = vst.msk [vmem:[%s1858 + $0x4] sm:$0xf] %vm1308, %v1813
          %1861 = vst.msk [vmem:[%s1858 + $0x8] sm:$0xf] %vm1308, %v1815
          %1862 = vst.msk [vmem:[%s1858 + $0xc] sm:$0xf] %vm1308, %v1817
          %1863 = vst.msk [vmem:[%s1858 + $0x10] sm:$0xf] %vm1308, %v1819
          %1864 = vst.msk [vmem:[%s1858 + $0x14] sm:$0xf] %vm1308, %v1821
          %1865 = vst.msk [vmem:[%s1858 + $0x18] sm:$0xf] %vm1308, %v1823
          %1866 = vst.msk [vmem:[%s1858 + $0x1c] sm:$0xf] %vm1308, %v1825
          %1867 = vst.msk [vmem:[%s1858 + $0x20] sm:$0xf] %vm1308, %v1827
          %1868 = vst.msk [vmem:[%s1858 + $0x24] sm:$0xf] %vm1308, %v1829
          %1869 = vst.msk [vmem:[%s1858 + $0x28] sm:$0xf] %vm1308, %v1831
          %1870 = vst.msk [vmem:[%s1858 + $0x2c] sm:$0xf] %vm1308, %v1833
          %1871 = vst.msk [vmem:[%s1858 + $0x30] sm:$0xf] %vm1308, %v1835
          %1872 = vst.msk [vmem:[%s1858 + $0x34] sm:$0xf] %vm1308, %v1837
          %1873 = vst.msk [vmem:[%s1858 + $0x38] sm:$0xf] %vm1308, %v1839
          %1874 = vst.msk [vmem:[%s1858 + $0x3c] sm:$0xf] %vm1308, %v1841
          %1875 = vrot.lane.b32.xlu0 %v1276, 32
          %v1876 = vpop.permute.xlu0 %1875
          %1877 = vrot.lane.b32.xlu0 %v1277, 32
          %v1878 = vpop.permute.xlu0 %1877
          %1879 = vrot.lane.b32.xlu0 %v1278, 32
          %v1880 = vpop.permute.xlu0 %1879
          %1881 = vrot.lane.b32.xlu0 %v1279, 32
          %v1882 = vpop.permute.xlu0 %1881
          %1883 = vrot.lane.b32.xlu0 %v1280, 32
          %v1884 = vpop.permute.xlu0 %1883
          %1885 = vrot.lane.b32.xlu0 %v1281, 32
          %v1886 = vpop.permute.xlu0 %1885
          %1887 = vrot.lane.b32.xlu0 %v1282, 32
          %v1888 = vpop.permute.xlu0 %1887
          %1889 = vrot.lane.b32.xlu0 %v1283, 32
          %v1890 = vpop.permute.xlu0 %1889
          %1891 = vrot.lane.b32.xlu0 %v1284, 32
          %v1892 = vpop.permute.xlu0 %1891
          %1893 = vrot.lane.b32.xlu0 %v1285, 32
          %v1894 = vpop.permute.xlu0 %1893
          %1895 = vrot.lane.b32.xlu0 %v1286, 32
          %v1896 = vpop.permute.xlu0 %1895
          %1897 = vrot.lane.b32.xlu0 %v1287, 32
          %v1898 = vpop.permute.xlu0 %1897
          %1899 = vrot.lane.b32.xlu0 %v1288, 32
          %v1900 = vpop.permute.xlu0 %1899
          %1901 = vrot.lane.b32.xlu0 %v1289, 32
          %v1902 = vpop.permute.xlu0 %1901
          %1903 = vrot.lane.b32.xlu0 %v1290, 32
          %v1904 = vpop.permute.xlu0 %1903
          %1905 = vrot.lane.b32.xlu0 %v1291, 32
          %v1906 = vpop.permute.xlu0 %1905
          %s1923 = scalar_lea.vmem [#allocation2], 192
          %1924 = vst.msk [vmem:[%s1923] sm:$0xf] %vm1308, %v1876
          %1925 = vst.msk [vmem:[%s1923 + $0x4] sm:$0xf] %vm1308, %v1878
          %1926 = vst.msk [vmem:[%s1923 + $0x8] sm:$0xf] %vm1308, %v1880
          %1927 = vst.msk [vmem:[%s1923 + $0xc] sm:$0xf] %vm1308, %v1882
          %1928 = vst.msk [vmem:[%s1923 + $0x10] sm:$0xf] %vm1308, %v1884
          %1929 = vst.msk [vmem:[%s1923 + $0x14] sm:$0xf] %vm1308, %v1886
          %1930 = vst.msk [vmem:[%s1923 + $0x18] sm:$0xf] %vm1308, %v1888
          %1931 = vst.msk [vmem:[%s1923 + $0x1c] sm:$0xf] %vm1308, %v1890
          %1932 = vst.msk [vmem:[%s1923 + $0x20] sm:$0xf] %vm1308, %v1892
          %1933 = vst.msk [vmem:[%s1923 + $0x24] sm:$0xf] %vm1308, %v1894
          %1934 = vst.msk [vmem:[%s1923 + $0x28] sm:$0xf] %vm1308, %v1896
          %1935 = vst.msk [vmem:[%s1923 + $0x2c] sm:$0xf] %vm1308, %v1898
          %1936 = vst.msk [vmem:[%s1923 + $0x30] sm:$0xf] %vm1308, %v1900
          %1937 = vst.msk [vmem:[%s1923 + $0x34] sm:$0xf] %vm1308, %v1902
          %1938 = vst.msk [vmem:[%s1923 + $0x38] sm:$0xf] %vm1308, %v1904
          %1939 = vst.msk [vmem:[%s1923 + $0x3c] sm:$0xf] %vm1308, %v1906
          %1940 = vrot.lane.b32.xlu0 %v1357, 32
          %v1941 = vpop.permute.xlu0 %1940
          %1942 = vrot.lane.b32.xlu0 %v1358, 32
          %v1943 = vpop.permute.xlu0 %1942
          %1944 = vrot.lane.b32.xlu0 %v1359, 32
          %v1945 = vpop.permute.xlu0 %1944
          %1946 = vrot.lane.b32.xlu0 %v1360, 32
          %v1947 = vpop.permute.xlu0 %1946
          %1948 = vrot.lane.b32.xlu0 %v1361, 32
          %v1949 = vpop.permute.xlu0 %1948
          %1950 = vrot.lane.b32.xlu0 %v1362, 32
          %v1951 = vpop.permute.xlu0 %1950
          %1952 = vrot.lane.b32.xlu0 %v1363, 32
          %v1953 = vpop.permute.xlu0 %1952
          %1954 = vrot.lane.b32.xlu0 %v1364, 32
          %v1955 = vpop.permute.xlu0 %1954
          %1956 = vrot.lane.b32.xlu0 %v1365, 32
          %v1957 = vpop.permute.xlu0 %1956
          %1958 = vrot.lane.b32.xlu0 %v1366, 32
          %v1959 = vpop.permute.xlu0 %1958
          %1960 = vrot.lane.b32.xlu0 %v1367, 32
          %v1961 = vpop.permute.xlu0 %1960
          %1962 = vrot.lane.b32.xlu0 %v1368, 32
          %v1963 = vpop.permute.xlu0 %1962
          %1964 = vrot.lane.b32.xlu0 %v1369, 32
          %v1965 = vpop.permute.xlu0 %1964
          %1966 = vrot.lane.b32.xlu0 %v1370, 32
          %v1967 = vpop.permute.xlu0 %1966
          %1968 = vrot.lane.b32.xlu0 %v1371, 32
          %v1969 = vpop.permute.xlu0 %1968
          %1970 = vrot.lane.b32.xlu0 %v1372, 32
          %v1971 = vpop.permute.xlu0 %1970
          %s1988 = scalar_lea.vmem [#allocation3], 192
          %1989 = vst.msk [vmem:[%s1988] sm:$0xf] %vm1308, %v1941
          %1990 = vst.msk [vmem:[%s1988 + $0x4] sm:$0xf] %vm1308, %v1943
          %1991 = vst.msk [vmem:[%s1988 + $0x8] sm:$0xf] %vm1308, %v1945
          %1992 = vst.msk [vmem:[%s1988 + $0xc] sm:$0xf] %vm1308, %v1947
          %1993 = vst.msk [vmem:[%s1988 + $0x10] sm:$0xf] %vm1308, %v1949
          %1994 = vst.msk [vmem:[%s1988 + $0x14] sm:$0xf] %vm1308, %v1951
          %1995 = vst.msk [vmem:[%s1988 + $0x18] sm:$0xf] %vm1308, %v1953
          %1996 = vst.msk [vmem:[%s1988 + $0x1c] sm:$0xf] %vm1308, %v1955
          %1997 = vst.msk [vmem:[%s1988 + $0x20] sm:$0xf] %vm1308, %v1957
          %1998 = vst.msk [vmem:[%s1988 + $0x24] sm:$0xf] %vm1308, %v1959
          %1999 = vst.msk [vmem:[%s1988 + $0x28] sm:$0xf] %vm1308, %v1961
          %2000 = vst.msk [vmem:[%s1988 + $0x2c] sm:$0xf] %vm1308, %v1963
          %2001 = vst.msk [vmem:[%s1988 + $0x30] sm:$0xf] %vm1308, %v1965
          %2002 = vst.msk [vmem:[%s1988 + $0x34] sm:$0xf] %vm1308, %v1967
          %2003 = vst.msk [vmem:[%s1988 + $0x38] sm:$0xf] %vm1308, %v1969
          %2004 = vst.msk [vmem:[%s1988 + $0x3c] sm:$0xf] %vm1308, %v1971
          %2005 = vrot.lane.b32.xlu0 %v1437, 32
          %v2006 = vpop.permute.xlu0 %2005
          %2007 = vrot.lane.b32.xlu0 %v1438, 32
          %v2008 = vpop.permute.xlu0 %2007
          %2009 = vrot.lane.b32.xlu0 %v1439, 32
          %v2010 = vpop.permute.xlu0 %2009
          %2011 = vrot.lane.b32.xlu0 %v1440, 32
          %v2012 = vpop.permute.xlu0 %2011
          %2013 = vrot.lane.b32.xlu0 %v1441, 32
          %v2014 = vpop.permute.xlu0 %2013
          %2015 = vrot.lane.b32.xlu0 %v1442, 32
          %v2016 = vpop.permute.xlu0 %2015
          %2017 = vrot.lane.b32.xlu0 %v1443, 32
          %v2018 = vpop.permute.xlu0 %2017
          %2019 = vrot.lane.b32.xlu0 %v1444, 32
          %v2020 = vpop.permute.xlu0 %2019
          %2021 = vrot.lane.b32.xlu0 %v1445, 32
          %v2022 = vpop.permute.xlu0 %2021
          %2023 = vrot.lane.b32.xlu0 %v1446, 32
          %v2024 = vpop.permute.xlu0 %2023
          %2025 = vrot.lane.b32.xlu0 %v1447, 32
          %v2026 = vpop.permute.xlu0 %2025
          %2027 = vrot.lane.b32.xlu0 %v1448, 32
          %v2028 = vpop.permute.xlu0 %2027
          %2029 = vrot.lane.b32.xlu0 %v1449, 32
          %v2030 = vpop.permute.xlu0 %2029
          %2031 = vrot.lane.b32.xlu0 %v1450, 32
          %v2032 = vpop.permute.xlu0 %2031
          %2033 = vrot.lane.b32.xlu0 %v1451, 32
          %v2034 = vpop.permute.xlu0 %2033
          %2035 = vrot.lane.b32.xlu0 %v1452, 32
          %v2036 = vpop.permute.xlu0 %2035
          %s2053 = scalar_lea.vmem [#allocation4], 192
          %2054 = vst.msk [vmem:[%s2053] sm:$0xf] %vm1308, %v2006
          %2055 = vst.msk [vmem:[%s2053 + $0x4] sm:$0xf] %vm1308, %v2008
          %2056 = vst.msk [vmem:[%s2053 + $0x8] sm:$0xf] %vm1308, %v2010
          %2057 = vst.msk [vmem:[%s2053 + $0xc] sm:$0xf] %vm1308, %v2012
          %2058 = vst.msk [vmem:[%s2053 + $0x10] sm:$0xf] %vm1308, %v2014
          %2059 = vst.msk [vmem:[%s2053 + $0x14] sm:$0xf] %vm1308, %v2016
          %2060 = vst.msk [vmem:[%s2053 + $0x18] sm:$0xf] %vm1308, %v2018
          %2061 = vst.msk [vmem:[%s2053 + $0x1c] sm:$0xf] %vm1308, %v2020
          %2062 = vst.msk [vmem:[%s2053 + $0x20] sm:$0xf] %vm1308, %v2022
          %2063 = vst.msk [vmem:[%s2053 + $0x24] sm:$0xf] %vm1308, %v2024
          %2064 = vst.msk [vmem:[%s2053 + $0x28] sm:$0xf] %vm1308, %v2026
          %2065 = vst.msk [vmem:[%s2053 + $0x2c] sm:$0xf] %vm1308, %v2028
          %2066 = vst.msk [vmem:[%s2053 + $0x30] sm:$0xf] %vm1308, %v2030
          %2067 = vst.msk [vmem:[%s2053 + $0x34] sm:$0xf] %vm1308, %v2032
          %2068 = vst.msk [vmem:[%s2053 + $0x38] sm:$0xf] %vm1308, %v2034
          %2069 = vst.msk [vmem:[%s2053 + $0x3c] sm:$0xf] %vm1308, %v2036
        $region104: #{tpu_custom_call.1} parent=71 // pred_fallthru
          _
        %s2070 = smul.u32 %s38, 64
        %s2071 = sshra.s32 %s2070, 3
        %s2072 = sand.u32 %s2070, 7
        %s2073 = smul.addr %s2071, 4
        %s2074 = scalar_lea.vmem [#allocation2], %s2073
        %v2075 = vld [vmem:[%s2074] sm:$0xf]
        %v2076 = vld [vmem:[%s2074 + $0x4] sm:$0xf]
        %v2077 = vld [vmem:[%s2074 + $0x8] sm:$0xf]
        %v2078 = vld [vmem:[%s2074 + $0xc] sm:$0xf]
        %v2079 = vld [vmem:[%s2074 + $0x10] sm:$0xf]
        %v2080 = vld [vmem:[%s2074 + $0x14] sm:$0xf]
        %v2081 = vld [vmem:[%s2074 + $0x18] sm:$0xf]
        %v2082 = vld [vmem:[%s2074 + $0x1c] sm:$0xf]
        %v2083 = vld [vmem:[%s2074 + $0x40] sm:$0xf]
        %v2084 = vld [vmem:[%s2074 + $0x44] sm:$0xf]
        %v2085 = vld [vmem:[%s2074 + $0x48] sm:$0xf]
        %v2086 = vld [vmem:[%s2074 + $0x4c] sm:$0xf]
        %v2087 = vld [vmem:[%s2074 + $0x50] sm:$0xf]
        %v2088 = vld [vmem:[%s2074 + $0x54] sm:$0xf]
        %v2089 = vld [vmem:[%s2074 + $0x58] sm:$0xf]
        %v2090 = vld [vmem:[%s2074 + $0x5c] sm:$0xf]
        %v2091 = vld [vmem:[%s2074 + $0x80] sm:$0xf]
        %v2092 = vld [vmem:[%s2074 + $0x84] sm:$0xf]
        %v2093 = vld [vmem:[%s2074 + $0x88] sm:$0xf]
        %v2094 = vld [vmem:[%s2074 + $0x8c] sm:$0xf]
        %v2095 = vld [vmem:[%s2074 + $0x90] sm:$0xf]
        %v2096 = vld [vmem:[%s2074 + $0x94] sm:$0xf]
        %v2097 = vld [vmem:[%s2074 + $0x98] sm:$0xf]
        %v2098 = vld [vmem:[%s2074 + $0x9c] sm:$0xf]
        %v2099 = vld [vmem:[%s2074 + $0xc0] sm:$0xf]
        %v2100 = vld [vmem:[%s2074 + $0xc4] sm:$0xf]
        %v2101 = vld [vmem:[%s2074 + $0xc8] sm:$0xf]
        %v2102 = vld [vmem:[%s2074 + $0xcc] sm:$0xf]
        %v2103 = vld [vmem:[%s2074 + $0xd0] sm:$0xf]
        %v2104 = vld [vmem:[%s2074 + $0xd4] sm:$0xf]
        %v2105 = vld [vmem:[%s2074 + $0xd8] sm:$0xf]
        %v2106 = vld [vmem:[%s2074 + $0xdc] sm:$0xf]
        %v2107 = vld [vmem:[#allocation3] sm:$0xf]
        %v2108 = vld [vmem:[#allocation3 + $0x4] sm:$0xf]
        %v2109 = vld [vmem:[#allocation3 + $0x8] sm:$0xf]
        %v2110 = vld [vmem:[#allocation3 + $0xc] sm:$0xf]
        %v2111 = vld [vmem:[#allocation3 + $0x10] sm:$0xf]
        %v2112 = vld [vmem:[#allocation3 + $0x14] sm:$0xf]
        %v2113 = vld [vmem:[#allocation3 + $0x18] sm:$0xf]
        %v2114 = vld [vmem:[#allocation3 + $0x1c] sm:$0xf]
        %v2115 = vld [vmem:[#allocation3 + $0x20] sm:$0xf]
        %v2116 = vld [vmem:[#allocation3 + $0x24] sm:$0xf]
        %v2117 = vld [vmem:[#allocation3 + $0x28] sm:$0xf]
        %v2118 = vld [vmem:[#allocation3 + $0x2c] sm:$0xf]
        %v2119 = vld [vmem:[#allocation3 + $0x30] sm:$0xf]
        %v2120 = vld [vmem:[#allocation3 + $0x34] sm:$0xf]
        %v2121 = vld [vmem:[#allocation3 + $0x38] sm:$0xf]
        %v2122 = vld [vmem:[#allocation3 + $0x3c] sm:$0xf]
        %v2123 = vld [vmem:[#allocation3 + $0x40] sm:$0xf]
        %v2124 = vld [vmem:[#allocation3 + $0x44] sm:$0xf]
        %v2125 = vld [vmem:[#allocation3 + $0x48] sm:$0xf]
        %v2126 = vld [vmem:[#allocation3 + $0x4c] sm:$0xf]
        %v2127 = vld [vmem:[#allocation3 + $0x50] sm:$0xf]
        %v2128 = vld [vmem:[#allocation3 + $0x54] sm:$0xf]
        %v2129 = vld [vmem:[#allocation3 + $0x58] sm:$0xf]
        %v2130 = vld [vmem:[#allocation3 + $0x5c] sm:$0xf]
        %v2131 = vld [vmem:[#allocation3 + $0x60] sm:$0xf]
        %v2132 = vld [vmem:[#allocation3 + $0x64] sm:$0xf]
        %v2133 = vld [vmem:[#allocation3 + $0x68] sm:$0xf]
        %v2134 = vld [vmem:[#allocation3 + $0x6c] sm:$0xf]
        %v2135 = vld [vmem:[#allocation3 + $0x70] sm:$0xf]
        %v2136 = vld [vmem:[#allocation3 + $0x74] sm:$0xf]
        %v2137 = vld [vmem:[#allocation3 + $0x78] sm:$0xf]
        %v2138 = vld [vmem:[#allocation3 + $0x7c] sm:$0xf]
        %v2139 = vld [vmem:[#allocation3 + $0x80] sm:$0xf]
        %v2140 = vld [vmem:[#allocation3 + $0x84] sm:$0xf]
        %v2141 = vld [vmem:[#allocation3 + $0x88] sm:$0xf]
        %v2142 = vld [vmem:[#allocation3 + $0x8c] sm:$0xf]
        %v2143 = vld [vmem:[#allocation3 + $0x90] sm:$0xf]
        %v2144 = vld [vmem:[#allocation3 + $0x94] sm:$0xf]
        %v2145 = vld [vmem:[#allocation3 + $0x98] sm:$0xf]
        %v2146 = vld [vmem:[#allocation3 + $0x9c] sm:$0xf]
        %v2147 = vld [vmem:[#allocation3 + $0xa0] sm:$0xf]
        %v2148 = vld [vmem:[#allocation3 + $0xa4] sm:$0xf]
        %v2149 = vld [vmem:[#allocation3 + $0xa8] sm:$0xf]
        %v2150 = vld [vmem:[#allocation3 + $0xac] sm:$0xf]
        %v2151 = vld [vmem:[#allocation3 + $0xb0] sm:$0xf]
        %v2152 = vld [vmem:[#allocation3 + $0xb4] sm:$0xf]
        %v2153 = vld [vmem:[#allocation3 + $0xb8] sm:$0xf]
        %v2154 = vld [vmem:[#allocation3 + $0xbc] sm:$0xf]
        %v2155 = vld [vmem:[#allocation3 + $0xc0] sm:$0xf]
        %v2156 = vld [vmem:[#allocation3 + $0xc4] sm:$0xf]
        %v2157 = vld [vmem:[#allocation3 + $0xc8] sm:$0xf]
        %v2158 = vld [vmem:[#allocation3 + $0xcc] sm:$0xf]
        %v2159 = vld [vmem:[#allocation3 + $0xd0] sm:$0xf]
        %v2160 = vld [vmem:[#allocation3 + $0xd4] sm:$0xf]
        %v2161 = vld [vmem:[#allocation3 + $0xd8] sm:$0xf]
        %v2162 = vld [vmem:[#allocation3 + $0xdc] sm:$0xf]
        %v2163 = vld [vmem:[#allocation3 + $0xe0] sm:$0xf]
        %v2164 = vld [vmem:[#allocation3 + $0xe4] sm:$0xf]
        %v2165 = vld [vmem:[#allocation3 + $0xe8] sm:$0xf]
        %v2166 = vld [vmem:[#allocation3 + $0xec] sm:$0xf]
        %v2167 = vld [vmem:[#allocation3 + $0xf0] sm:$0xf]
        %v2168 = vld [vmem:[#allocation3 + $0xf4] sm:$0xf]
        %v2169 = vld [vmem:[#allocation3 + $0xf8] sm:$0xf]
        %v2170 = vld [vmem:[#allocation3 + $0xfc] sm:$0xf]
        %v2179 = vunpack.c.l.b16 %v2075
        %v2180 = vunpack.c.l.b16 %v2076
        %v2181 = vunpack.c.l.b16 %v2077
        %v2182 = vunpack.c.l.b16 %v2078
        %v2183 = vunpack.c.l.b16 %v2079
        %v2184 = vunpack.c.l.b16 %v2080
        %v2185 = vunpack.c.l.b16 %v2081
        %v2186 = vunpack.c.l.b16 %v2082
        %v2187 = vpack.c.b16 %v2180, %v2179
        %v2188 = vpack.c.b16 %v2182, %v2181
        %v2189 = vpack.c.b16 %v2184, %v2183
        %v2190 = vpack.c.b16 %v2186, %v2185
        %v2207 = vunpack.c.l.b16 %v2107
        %v2208 = vunpack.c.l.b16 %v2108
        %v2209 = vunpack.c.l.b16 %v2109
        %v2210 = vunpack.c.l.b16 %v2110
        %v2211 = vunpack.c.l.b16 %v2111
        %v2212 = vunpack.c.l.b16 %v2112
        %v2213 = vunpack.c.l.b16 %v2113
        %v2214 = vunpack.c.l.b16 %v2114
        %v2215 = vunpack.c.l.b16 %v2115
        %v2216 = vunpack.c.l.b16 %v2116
        %v2217 = vunpack.c.l.b16 %v2117
        %v2218 = vunpack.c.l.b16 %v2118
        %v2219 = vunpack.c.l.b16 %v2119
        %v2220 = vunpack.c.l.b16 %v2120
        %v2221 = vunpack.c.l.b16 %v2121
        %v2222 = vunpack.c.l.b16 %v2122
        %v2223 = vpack.c.b16 %v2208, %v2207
        %v2224 = vpack.c.b16 %v2210, %v2209
        %v2225 = vpack.c.b16 %v2212, %v2211
        %v2226 = vpack.c.b16 %v2214, %v2213
        %v2227 = vpack.c.b16 %v2216, %v2215
        %v2228 = vpack.c.b16 %v2218, %v2217
        %v2229 = vpack.c.b16 %v2220, %v2219
        %v2230 = vpack.c.b16 %v2222, %v2221
        %vm2231 = vcmask 261120
        %v2233 = vsel %vm2231, %v2187, 0
        %v2236 = vsel %vm2231, %v2188, 0
        %v2239 = vsel %vm2231, %v2189, 0
        %v2242 = vsel %vm2231, %v2190, 0
        %v2245 = vsel %vm2231, %v2223, 0
        %v2248 = vsel %vm2231, %v2224, 0
        %v2251 = vsel %vm2231, %v2225, 0
        %v2254 = vsel %vm2231, %v2226, 0
        %v2257 = vsel %vm2231, %v2227, 0
        %v2260 = vsel %vm2231, %v2228, 0
        %v2263 = vsel %vm2231, %v2229, 0
        %v2266 = vsel %vm2231, %v2230, 0
        %2268 = vmatprep.subr.bf16.mxu0 0
        %2269 = vmatpush1.bf16.xpose.msra.mxu0 %v2266
        %2270 = vmatprep.subr.bf16.mxu0 0
        %2271 = vmatpush1.bf16.xpose.msra.mxu0 %v2263
        %2272 = vmatprep.subr.bf16.mxu0 0
        %2273 = vmatpush1.bf16.xpose.msra.mxu0 %v2260
        %2274 = vmatprep.subr.bf16.mxu0 0
        %2275 = vmatpush1.bf16.xpose.msra.mxu0 %v2257
        %2276 = vmatprep.subr.bf16.mxu0 0
        %2277 = vmatpush1.bf16.xpose.msra.mxu0 %v2254
        %2278 = vmatprep.subr.bf16.mxu0 0
        %2279 = vmatpush1.bf16.xpose.msra.mxu0 %v2251
        %2280 = vmatprep.subr.bf16.mxu0 0
        %2281 = vmatpush1.bf16.xpose.msra.mxu0 %v2248
        %2282 = vmatprep.subr.bf16.mxu0 0
        %2283 = vmatpush1.bf16.xpose.msra.mxu0 %v2245
        %2284 = vmatprep.subr.bf16.mxu0 0
        %2285 = vmatpush2.bf16.xpose.msra.mxu0 0
        %2286 = vmatprep.subr.bf16.mxu0 0
        %2287 = vmatpush2.bf16.xpose.msra.mxu0 0
        %2288 = vmatprep.subr.bf16.mxu0 0
        %2289 = vmatpush2.bf16.xpose.msra.mxu0 0
        %2290 = vmatprep.subr.bf16.mxu0 0
        %2291 = vmatpush2.bf16.xpose.msra.mxu0 0
        %2292 = vmatprep.subr.bf16.mxu0 0
        %2293 = vmatpush2.bf16.xpose.msra.mxu0 0
        %2294 = vmatprep.subr.bf16.mxu0 0
        %2295 = vmatpush2.bf16.xpose.msra.mxu0 0
        %2296 = vmatprep.subr.bf16.mxu0 0
        %2297 = vmatpush2.bf16.xpose.msra.mxu0 0
        %2298 = vmatprep.subr.bf16.mxu0 0
        %2299 = vmatpush2.bf16.xpose.msra.mxu0 0
        %2300 = vmatprep.mubr.bf16.mxu0 0
        %2301 = vmatmul.mubr.bf16.gmra.mxu0 %v2233
        %v2302 = vpop.f32.mrf.mxu0
        %v2303 = vadd.f32 0.0, %v2302
        %v2304 = vpop.f32.mrf.mxu0
        %v2305 = vpop.f32.mrf.mxu0
        %v2306 = vadd.f32 0.0, %v2305
        %v2307 = vpop.f32.mrf.mxu0
        %2308 = vmatprep.mubr.bf16.mxu0 0
        %2309 = vmatmul.mubr.bf16.gmra.mxu0 %v2236
        %v2310 = vpop.f32.mrf.mxu0
        %v2311 = vadd.f32 0.0, %v2310
        %v2312 = vpop.f32.mrf.mxu0
        %v2313 = vpop.f32.mrf.mxu0
        %v2314 = vadd.f32 0.0, %v2313
        %v2315 = vpop.f32.mrf.mxu0
        %2316 = vmatprep.mubr.bf16.mxu0 0
        %2317 = vmatmul.mubr.bf16.gmra.mxu0 %v2239
        %v2318 = vpop.f32.mrf.mxu0
        %v2319 = vadd.f32 0.0, %v2318
        %v2320 = vpop.f32.mrf.mxu0
        %v2321 = vpop.f32.mrf.mxu0
        %v2322 = vadd.f32 0.0, %v2321
        %v2323 = vpop.f32.mrf.mxu0
        %2324 = vmatprep.mubr.bf16.mxu0 0
        %2325 = vmatmul.mubr.bf16.gmra.mxu0 %v2242
        %v2326 = vpop.f32.mrf.mxu0
        %v2327 = vadd.f32 0.0, %v2326
        %v2328 = vpop.f32.mrf.mxu0
        %v2329 = vpop.f32.mrf.mxu0
        %v2330 = vadd.f32 0.0, %v2329
        %v2331 = vpop.f32.mrf.mxu0
        %2332 = vdwg.mxu0
        %v2341 = vunpack.c.l.b16 %v2083
        %v2342 = vunpack.c.l.b16 %v2084
        %v2343 = vunpack.c.l.b16 %v2085
        %v2344 = vunpack.c.l.b16 %v2086
        %v2345 = vunpack.c.l.b16 %v2087
        %v2346 = vunpack.c.l.b16 %v2088
        %v2347 = vunpack.c.l.b16 %v2089
        %v2348 = vunpack.c.l.b16 %v2090
        %v2349 = vpack.c.b16 %v2342, %v2341
        %v2350 = vpack.c.b16 %v2344, %v2343
        %v2351 = vpack.c.b16 %v2346, %v2345
        %v2352 = vpack.c.b16 %v2348, %v2347
        %v2369 = vunpack.c.l.b16 %v2123
        %v2370 = vunpack.c.l.b16 %v2124
        %v2371 = vunpack.c.l.b16 %v2125
        %v2372 = vunpack.c.l.b16 %v2126
        %v2373 = vunpack.c.l.b16 %v2127
        %v2374 = vunpack.c.l.b16 %v2128
        %v2375 = vunpack.c.l.b16 %v2129
        %v2376 = vunpack.c.l.b16 %v2130
        %v2377 = vunpack.c.l.b16 %v2131
        %v2378 = vunpack.c.l.b16 %v2132
        %v2379 = vunpack.c.l.b16 %v2133
        %v2380 = vunpack.c.l.b16 %v2134
        %v2381 = vunpack.c.l.b16 %v2135
        %v2382 = vunpack.c.l.b16 %v2136
        %v2383 = vunpack.c.l.b16 %v2137
        %v2384 = vunpack.c.l.b16 %v2138
        %v2385 = vpack.c.b16 %v2370, %v2369
        %v2386 = vpack.c.b16 %v2372, %v2371
        %v2387 = vpack.c.b16 %v2374, %v2373
        %v2388 = vpack.c.b16 %v2376, %v2375
        %v2389 = vpack.c.b16 %v2378, %v2377
        %v2390 = vpack.c.b16 %v2380, %v2379
        %v2391 = vpack.c.b16 %v2382, %v2381
        %v2392 = vpack.c.b16 %v2384, %v2383
        %v2394 = vsel %vm2231, %v2349, 0
        %v2397 = vsel %vm2231, %v2350, 0
        %v2400 = vsel %vm2231, %v2351, 0
        %v2403 = vsel %vm2231, %v2352, 0
        %v2406 = vsel %vm2231, %v2385, 0
        %v2409 = vsel %vm2231, %v2386, 0
        %v2412 = vsel %vm2231, %v2387, 0
        %v2415 = vsel %vm2231, %v2388, 0
        %v2418 = vsel %vm2231, %v2389, 0
        %v2421 = vsel %vm2231, %v2390, 0
        %v2424 = vsel %vm2231, %v2391, 0
        %v2427 = vsel %vm2231, %v2392, 0
        %2429 = vmatprep.subr.bf16.mxu0 0
        %2430 = vmatpush1.bf16.xpose.msra.mxu0 %v2427
        %2431 = vmatprep.subr.bf16.mxu0 0
        %2432 = vmatpush1.bf16.xpose.msra.mxu0 %v2424
        %2433 = vmatprep.subr.bf16.mxu0 0
        %2434 = vmatpush1.bf16.xpose.msra.mxu0 %v2421
        %2435 = vmatprep.subr.bf16.mxu0 0
        %2436 = vmatpush1.bf16.xpose.msra.mxu0 %v2418
        %2437 = vmatprep.subr.bf16.mxu0 0
        %2438 = vmatpush1.bf16.xpose.msra.mxu0 %v2415
        %2439 = vmatprep.subr.bf16.mxu0 0
        %2440 = vmatpush1.bf16.xpose.msra.mxu0 %v2412
        %2441 = vmatprep.subr.bf16.mxu0 0
        %2442 = vmatpush1.bf16.xpose.msra.mxu0 %v2409
        %2443 = vmatprep.subr.bf16.mxu0 0
        %2444 = vmatpush1.bf16.xpose.msra.mxu0 %v2406
        %2445 = vmatprep.subr.bf16.mxu0 0
        %2446 = vmatpush2.bf16.xpose.msra.mxu0 0
        %2447 = vmatprep.subr.bf16.mxu0 0
        %2448 = vmatpush2.bf16.xpose.msra.mxu0 0
        %2449 = vmatprep.subr.bf16.mxu0 0
        %2450 = vmatpush2.bf16.xpose.msra.mxu0 0
        %2451 = vmatprep.subr.bf16.mxu0 0
        %2452 = vmatpush2.bf16.xpose.msra.mxu0 0
        %2453 = vmatprep.subr.bf16.mxu0 0
        %2454 = vmatpush2.bf16.xpose.msra.mxu0 0
        %2455 = vmatprep.subr.bf16.mxu0 0
        %2456 = vmatpush2.bf16.xpose.msra.mxu0 0
        %2457 = vmatprep.subr.bf16.mxu0 0
        %2458 = vmatpush2.bf16.xpose.msra.mxu0 0
        %2459 = vmatprep.subr.bf16.mxu0 0
        %2460 = vmatpush2.bf16.xpose.msra.mxu0 0
        %2461 = vmatprep.mubr.bf16.mxu0 0
        %2462 = vmatmul.mubr.bf16.gmra.mxu0 %v2394
        %v2463 = vpop.f32.mrf.mxu0
        %v2464 = vadd.f32 0.0, %v2463
        %v2465 = vpop.f32.mrf.mxu0
        %v2466 = vpop.f32.mrf.mxu0
        %v2467 = vadd.f32 0.0, %v2466
        %v2468 = vpop.f32.mrf.mxu0
        %2469 = vmatprep.mubr.bf16.mxu0 0
        %2470 = vmatmul.mubr.bf16.gmra.mxu0 %v2397
        %v2471 = vpop.f32.mrf.mxu0
        %v2472 = vadd.f32 0.0, %v2471
        %v2473 = vpop.f32.mrf.mxu0
        %v2474 = vpop.f32.mrf.mxu0
        %v2475 = vadd.f32 0.0, %v2474
        %v2476 = vpop.f32.mrf.mxu0
        %2477 = vmatprep.mubr.bf16.mxu0 0
        %2478 = vmatmul.mubr.bf16.gmra.mxu0 %v2400
        %v2479 = vpop.f32.mrf.mxu0
        %v2480 = vadd.f32 0.0, %v2479
        %v2481 = vpop.f32.mrf.mxu0
        %v2482 = vpop.f32.mrf.mxu0
        %v2483 = vadd.f32 0.0, %v2482
        %v2484 = vpop.f32.mrf.mxu0
        %2485 = vmatprep.mubr.bf16.mxu0 0
        %2486 = vmatmul.mubr.bf16.gmra.mxu0 %v2403
        %v2487 = vpop.f32.mrf.mxu0
        %v2488 = vadd.f32 0.0, %v2487
        %v2489 = vpop.f32.mrf.mxu0
        %v2490 = vpop.f32.mrf.mxu0
        %v2491 = vadd.f32 0.0, %v2490
        %v2492 = vpop.f32.mrf.mxu0
        %2493 = vdwg.mxu0
        %v2502 = vunpack.c.l.b16 %v2091
        %v2503 = vunpack.c.l.b16 %v2092
        %v2504 = vunpack.c.l.b16 %v2093
        %v2505 = vunpack.c.l.b16 %v2094
        %v2506 = vunpack.c.l.b16 %v2095
        %v2507 = vunpack.c.l.b16 %v2096
        %v2508 = vunpack.c.l.b16 %v2097
        %v2509 = vunpack.c.l.b16 %v2098
        %v2510 = vpack.c.b16 %v2503, %v2502
        %v2511 = vpack.c.b16 %v2505, %v2504
        %v2512 = vpack.c.b16 %v2507, %v2506
        %v2513 = vpack.c.b16 %v2509, %v2508
        %v2530 = vunpack.c.l.b16 %v2139
        %v2531 = vunpack.c.l.b16 %v2140
        %v2532 = vunpack.c.l.b16 %v2141
        %v2533 = vunpack.c.l.b16 %v2142
        %v2534 = vunpack.c.l.b16 %v2143
        %v2535 = vunpack.c.l.b16 %v2144
        %v2536 = vunpack.c.l.b16 %v2145
        %v2537 = vunpack.c.l.b16 %v2146
        %v2538 = vunpack.c.l.b16 %v2147
        %v2539 = vunpack.c.l.b16 %v2148
        %v2540 = vunpack.c.l.b16 %v2149
        %v2541 = vunpack.c.l.b16 %v2150
        %v2542 = vunpack.c.l.b16 %v2151
        %v2543 = vunpack.c.l.b16 %v2152
        %v2544 = vunpack.c.l.b16 %v2153
        %v2545 = vunpack.c.l.b16 %v2154
        %v2546 = vpack.c.b16 %v2531, %v2530
        %v2547 = vpack.c.b16 %v2533, %v2532
        %v2548 = vpack.c.b16 %v2535, %v2534
        %v2549 = vpack.c.b16 %v2537, %v2536
        %v2550 = vpack.c.b16 %v2539, %v2538
        %v2551 = vpack.c.b16 %v2541, %v2540
        %v2552 = vpack.c.b16 %v2543, %v2542
        %v2553 = vpack.c.b16 %v2545, %v2544
        %v2555 = vsel %vm2231, %v2510, 0
        %v2558 = vsel %vm2231, %v2511, 0
        %v2561 = vsel %vm2231, %v2512, 0
        %v2564 = vsel %vm2231, %v2513, 0
        %v2567 = vsel %vm2231, %v2546, 0
        %v2570 = vsel %vm2231, %v2547, 0
        %v2573 = vsel %vm2231, %v2548, 0
        %v2576 = vsel %vm2231, %v2549, 0
        %v2579 = vsel %vm2231, %v2550, 0
        %v2582 = vsel %vm2231, %v2551, 0
        %v2585 = vsel %vm2231, %v2552, 0
        %v2588 = vsel %vm2231, %v2553, 0
        %2590 = vmatprep.subr.bf16.mxu0 0
        %2591 = vmatpush1.bf16.xpose.msra.mxu0 %v2588
        %2592 = vmatprep.subr.bf16.mxu0 0
        %2593 = vmatpush1.bf16.xpose.msra.mxu0 %v2585
        %2594 = vmatprep.subr.bf16.mxu0 0
        %2595 = vmatpush1.bf16.xpose.msra.mxu0 %v2582
        %2596 = vmatprep.subr.bf16.mxu0 0
        %2597 = vmatpush1.bf16.xpose.msra.mxu0 %v2579
        %2598 = vmatprep.subr.bf16.mxu0 0
        %2599 = vmatpush1.bf16.xpose.msra.mxu0 %v2576
        %2600 = vmatprep.subr.bf16.mxu0 0
        %2601 = vmatpush1.bf16.xpose.msra.mxu0 %v2573
        %2602 = vmatprep.subr.bf16.mxu0 0
        %2603 = vmatpush1.bf16.xpose.msra.mxu0 %v2570
        %2604 = vmatprep.subr.bf16.mxu0 0
        %2605 = vmatpush1.bf16.xpose.msra.mxu0 %v2567
        %2606 = vmatprep.subr.bf16.mxu0 0
        %2607 = vmatpush2.bf16.xpose.msra.mxu0 0
        %2608 = vmatprep.subr.bf16.mxu0 0
        %2609 = vmatpush2.bf16.xpose.msra.mxu0 0
        %2610 = vmatprep.subr.bf16.mxu0 0
        %2611 = vmatpush2.bf16.xpose.msra.mxu0 0
        %2612 = vmatprep.subr.bf16.mxu0 0
        %2613 = vmatpush2.bf16.xpose.msra.mxu0 0
        %2614 = vmatprep.subr.bf16.mxu0 0
        %2615 = vmatpush2.bf16.xpose.msra.mxu0 0
        %2616 = vmatprep.subr.bf16.mxu0 0
        %2617 = vmatpush2.bf16.xpose.msra.mxu0 0
        %2618 = vmatprep.subr.bf16.mxu0 0
        %2619 = vmatpush2.bf16.xpose.msra.mxu0 0
        %2620 = vmatprep.subr.bf16.mxu0 0
        %2621 = vmatpush2.bf16.xpose.msra.mxu0 0
        %2622 = vmatprep.mubr.bf16.mxu0 0
        %2623 = vmatmul.mubr.bf16.gmra.mxu0 %v2555
        %v2624 = vpop.f32.mrf.mxu0
        %v2625 = vadd.f32 0.0, %v2624
        %v2626 = vpop.f32.mrf.mxu0
        %v2627 = vpop.f32.mrf.mxu0
        %v2628 = vadd.f32 0.0, %v2627
        %v2629 = vpop.f32.mrf.mxu0
        %2630 = vmatprep.mubr.bf16.mxu0 0
        %2631 = vmatmul.mubr.bf16.gmra.mxu0 %v2558
        %v2632 = vpop.f32.mrf.mxu0
        %v2633 = vadd.f32 0.0, %v2632
        %v2634 = vpop.f32.mrf.mxu0
        %v2635 = vpop.f32.mrf.mxu0
        %v2636 = vadd.f32 0.0, %v2635
        %v2637 = vpop.f32.mrf.mxu0
        %2638 = vmatprep.mubr.bf16.mxu0 0
        %2639 = vmatmul.mubr.bf16.gmra.mxu0 %v2561
        %v2640 = vpop.f32.mrf.mxu0
        %v2641 = vadd.f32 0.0, %v2640
        %v2642 = vpop.f32.mrf.mxu0
        %v2643 = vpop.f32.mrf.mxu0
        %v2644 = vadd.f32 0.0, %v2643
        %v2645 = vpop.f32.mrf.mxu0
        %2646 = vmatprep.mubr.bf16.mxu0 0
        %2647 = vmatmul.mubr.bf16.gmra.mxu0 %v2564
        %v2648 = vpop.f32.mrf.mxu0
        %v2649 = vadd.f32 0.0, %v2648
        %v2650 = vpop.f32.mrf.mxu0
        %v2651 = vpop.f32.mrf.mxu0
        %v2652 = vadd.f32 0.0, %v2651
        %v2653 = vpop.f32.mrf.mxu0
        %2654 = vdwg.mxu0
        %v2663 = vunpack.c.l.b16 %v2099
        %v2664 = vunpack.c.l.b16 %v2100
        %v2665 = vunpack.c.l.b16 %v2101
        %v2666 = vunpack.c.l.b16 %v2102
        %v2667 = vunpack.c.l.b16 %v2103
        %v2668 = vunpack.c.l.b16 %v2104
        %v2669 = vunpack.c.l.b16 %v2105
        %v2670 = vunpack.c.l.b16 %v2106
        %v2671 = vpack.c.b16 %v2664, %v2663
        %v2672 = vpack.c.b16 %v2666, %v2665
        %v2673 = vpack.c.b16 %v2668, %v2667
        %v2674 = vpack.c.b16 %v2670, %v2669
        %v2691 = vunpack.c.l.b16 %v2155
        %v2692 = vunpack.c.l.b16 %v2156
        %v2693 = vunpack.c.l.b16 %v2157
        %v2694 = vunpack.c.l.b16 %v2158
        %v2695 = vunpack.c.l.b16 %v2159
        %v2696 = vunpack.c.l.b16 %v2160
        %v2697 = vunpack.c.l.b16 %v2161
        %v2698 = vunpack.c.l.b16 %v2162
        %v2699 = vunpack.c.l.b16 %v2163
        %v2700 = vunpack.c.l.b16 %v2164
        %v2701 = vunpack.c.l.b16 %v2165
        %v2702 = vunpack.c.l.b16 %v2166
        %v2703 = vunpack.c.l.b16 %v2167
        %v2704 = vunpack.c.l.b16 %v2168
        %v2705 = vunpack.c.l.b16 %v2169
        %v2706 = vunpack.c.l.b16 %v2170
        %v2707 = vpack.c.b16 %v2692, %v2691
        %v2708 = vpack.c.b16 %v2694, %v2693
        %v2709 = vpack.c.b16 %v2696, %v2695
        %v2710 = vpack.c.b16 %v2698, %v2697
        %v2711 = vpack.c.b16 %v2700, %v2699
        %v2712 = vpack.c.b16 %v2702, %v2701
        %v2713 = vpack.c.b16 %v2704, %v2703
        %v2714 = vpack.c.b16 %v2706, %v2705
        %v2716 = vsel %vm2231, %v2671, 0
        %v2719 = vsel %vm2231, %v2672, 0
        %v2722 = vsel %vm2231, %v2673, 0
        %v2725 = vsel %vm2231, %v2674, 0
        %v2728 = vsel %vm2231, %v2707, 0
        %v2731 = vsel %vm2231, %v2708, 0
        %v2734 = vsel %vm2231, %v2709, 0
        %v2737 = vsel %vm2231, %v2710, 0
        %v2740 = vsel %vm2231, %v2711, 0
        %v2743 = vsel %vm2231, %v2712, 0
        %v2746 = vsel %vm2231, %v2713, 0
        %v2749 = vsel %vm2231, %v2714, 0
        %2751 = vmatprep.subr.bf16.mxu0 0
        %2752 = vmatpush1.bf16.xpose.msra.mxu0 %v2749
        %2753 = vmatprep.subr.bf16.mxu0 0
        %2754 = vmatpush1.bf16.xpose.msra.mxu0 %v2746
        %2755 = vmatprep.subr.bf16.mxu0 0
        %2756 = vmatpush1.bf16.xpose.msra.mxu0 %v2743
        %2757 = vmatprep.subr.bf16.mxu0 0
        %2758 = vmatpush1.bf16.xpose.msra.mxu0 %v2740
        %2759 = vmatprep.subr.bf16.mxu0 0
        %2760 = vmatpush1.bf16.xpose.msra.mxu0 %v2737
        %2761 = vmatprep.subr.bf16.mxu0 0
        %2762 = vmatpush1.bf16.xpose.msra.mxu0 %v2734
        %2763 = vmatprep.subr.bf16.mxu0 0
        %2764 = vmatpush1.bf16.xpose.msra.mxu0 %v2731
        %2765 = vmatprep.subr.bf16.mxu0 0
        %2766 = vmatpush1.bf16.xpose.msra.mxu0 %v2728
        %2767 = vmatprep.subr.bf16.mxu0 0
        %2768 = vmatpush2.bf16.xpose.msra.mxu0 0
        %2769 = vmatprep.subr.bf16.mxu0 0
        %2770 = vmatpush2.bf16.xpose.msra.mxu0 0
        %2771 = vmatprep.subr.bf16.mxu0 0
        %2772 = vmatpush2.bf16.xpose.msra.mxu0 0
        %2773 = vmatprep.subr.bf16.mxu0 0
        %2774 = vmatpush2.bf16.xpose.msra.mxu0 0
        %2775 = vmatprep.subr.bf16.mxu0 0
        %2776 = vmatpush2.bf16.xpose.msra.mxu0 0
        %2777 = vmatprep.subr.bf16.mxu0 0
        %2778 = vmatpush2.bf16.xpose.msra.mxu0 0
        %2779 = vmatprep.subr.bf16.mxu0 0
        %2780 = vmatpush2.bf16.xpose.msra.mxu0 0
        %2781 = vmatprep.subr.bf16.mxu0 0
        %2782 = vmatpush2.bf16.xpose.msra.mxu0 0
        %2783 = vmatprep.mubr.bf16.mxu0 0
        %2784 = vmatmul.mubr.bf16.gmra.mxu0 %v2716
        %v2785 = vpop.f32.mrf.mxu0
        %v2786 = vadd.f32 0.0, %v2785
        %v2787 = vpop.f32.mrf.mxu0
        %v2788 = vpop.f32.mrf.mxu0
        %v2789 = vadd.f32 0.0, %v2788
        %v2790 = vpop.f32.mrf.mxu0
        %2791 = vmatprep.mubr.bf16.mxu0 0
        %2792 = vmatmul.mubr.bf16.gmra.mxu0 %v2719
        %v2793 = vpop.f32.mrf.mxu0
        %v2794 = vadd.f32 0.0, %v2793
        %v2795 = vpop.f32.mrf.mxu0
        %v2796 = vpop.f32.mrf.mxu0
        %v2797 = vadd.f32 0.0, %v2796
        %v2798 = vpop.f32.mrf.mxu0
        %2799 = vmatprep.mubr.bf16.mxu0 0
        %2800 = vmatmul.mubr.bf16.gmra.mxu0 %v2722
        %v2801 = vpop.f32.mrf.mxu0
        %v2802 = vadd.f32 0.0, %v2801
        %v2803 = vpop.f32.mrf.mxu0
        %v2804 = vpop.f32.mrf.mxu0
        %v2805 = vadd.f32 0.0, %v2804
        %v2806 = vpop.f32.mrf.mxu0
        %2807 = vmatprep.mubr.bf16.mxu0 0
        %2808 = vmatmul.mubr.bf16.gmra.mxu0 %v2725
        %v2809 = vpop.f32.mrf.mxu0
        %v2810 = vadd.f32 0.0, %v2809
        %v2811 = vpop.f32.mrf.mxu0
        %v2812 = vpop.f32.mrf.mxu0
        %v2813 = vadd.f32 0.0, %v2812
        %v2814 = vpop.f32.mrf.mxu0
        %2815 = vdwg.mxu0
        %v2816 = vlaneseq
        %v2817 = vshrl.u32 %v2816, 7
        %v2818 = vadd.s32 %v2817, 8
        %v2819 = vadd.s32 %v2817, 16
        %v2820 = vadd.s32 %v2817, 24
        %v2821 = vadd.s32 %v2817, 32
        %v2822 = vadd.s32 %v2817, 40
        %v2823 = vadd.s32 %v2817, 48
        %v2824 = vadd.s32 %v2817, 56
        %v2825 = vstv %s2070
        %v2826 = vadd.s32 %v2817, %v2825
        %v2827 = vadd.s32 %v2818, %v2825
        %v2828 = vadd.s32 %v2819, %v2825
        %v2829 = vadd.s32 %v2820, %v2825
        %v2830 = vadd.s32 %v2821, %v2825
        %v2831 = vadd.s32 %v2822, %v2825
        %v2832 = vadd.s32 %v2823, %v2825
        %v2833 = vadd.s32 %v2824, %v2825
        %v2834 = vlaneseq
        %v2835 = vand.u32 %v2834, 127
        %vm2836 = vcmp.ge.s32.totalorder %v2826, %v2835
        %vm2837 = vcmp.ge.s32.totalorder %v2827, %v2835
        %vm2838 = vcmp.ge.s32.totalorder %v2828, %v2835
        %vm2839 = vcmp.ge.s32.totalorder %v2829, %v2835
        %vm2840 = vcmp.ge.s32.totalorder %v2830, %v2835
        %vm2841 = vcmp.ge.s32.totalorder %v2831, %v2835
        %vm2842 = vcmp.ge.s32.totalorder %v2832, %v2835
        %vm2843 = vcmp.ge.s32.totalorder %v2833, %v2835
        %v2844 = vsel %vm2836, 1, 0
        %v2845 = vsel %vm2837, 1, 0
        %v2846 = vsel %vm2838, 1, 0
        %v2847 = vsel %vm2839, 1, 0
        %v2848 = vsel %vm2840, 1, 0
        %v2849 = vsel %vm2841, 1, 0
        %v2850 = vsel %vm2842, 1, 0
        %v2851 = vsel %vm2843, 1, 0
        %vm2852 = vcmp.eq.s32.totalorder %v2844, 1
        %vm2853 = vcmp.eq.s32.totalorder %v2845, 1
        %vm2854 = vcmp.eq.s32.totalorder %v2846, 1
        %vm2855 = vcmp.eq.s32.totalorder %v2847, 1
        %vm2856 = vcmp.eq.s32.totalorder %v2848, 1
        %vm2857 = vcmp.eq.s32.totalorder %v2849, 1
        %vm2858 = vcmp.eq.s32.totalorder %v2850, 1
        %vm2859 = vcmp.eq.s32.totalorder %v2851, 1
        %v2860 = vsel %vm2852, %v2303, -10000.0
        %v2861 = vsel %vm2853, %v2306, -10000.0
        %v2862 = vsel %vm2854, %v2311, -10000.0
        %v2863 = vsel %vm2855, %v2314, -10000.0
        %v2864 = vsel %vm2856, %v2319, -10000.0
        %v2865 = vsel %vm2857, %v2322, -10000.0
        %v2866 = vsel %vm2858, %v2327, -10000.0
        %v2867 = vsel %vm2859, %v2330, -10000.0
        %v2868 = vsel %vm2852, %v2464, -10000.0
        %v2869 = vsel %vm2853, %v2467, -10000.0
        %v2870 = vsel %vm2854, %v2472, -10000.0
        %v2871 = vsel %vm2855, %v2475, -10000.0
        %v2872 = vsel %vm2856, %v2480, -10000.0
        %v2873 = vsel %vm2857, %v2483, -10000.0
        %v2874 = vsel %vm2858, %v2488, -10000.0
        %v2875 = vsel %vm2859, %v2491, -10000.0
        %v2876 = vsel %vm2852, %v2625, -10000.0
        %v2877 = vsel %vm2853, %v2628, -10000.0
        %v2878 = vsel %vm2854, %v2633, -10000.0
        %v2879 = vsel %vm2855, %v2636, -10000.0
        %v2880 = vsel %vm2856, %v2641, -10000.0
        %v2881 = vsel %vm2857, %v2644, -10000.0
        %v2882 = vsel %vm2858, %v2649, -10000.0
        %v2883 = vsel %vm2859, %v2652, -10000.0
        %v2884 = vsel %vm2852, %v2786, -10000.0
        %v2885 = vsel %vm2853, %v2789, -10000.0
        %v2886 = vsel %vm2854, %v2794, -10000.0
        %v2887 = vsel %vm2855, %v2797, -10000.0
        %v2888 = vsel %vm2856, %v2802, -10000.0
        %v2889 = vsel %vm2857, %v2805, -10000.0
        %v2890 = vsel %vm2858, %v2810, -10000.0
        %v2891 = vsel %vm2859, %v2813, -10000.0
        %2892 = vmax.xlane.f32.xlu0 %v2860
        %v2893 = vpop.xlane.xlu0 %2892
        %2894 = vmax.xlane.f32.xlu0 %v2861
        %v2895 = vpop.xlane.xlu0 %2894
        %2896 = vmax.xlane.f32.xlu0 %v2862
        %v2897 = vpop.xlane.xlu0 %2896
        %2898 = vmax.xlane.f32.xlu0 %v2863
        %v2899 = vpop.xlane.xlu0 %2898
        %2900 = vmax.xlane.f32.xlu0 %v2864
        %v2901 = vpop.xlane.xlu0 %2900
        %2902 = vmax.xlane.f32.xlu0 %v2865
        %v2903 = vpop.xlane.xlu0 %2902
        %2904 = vmax.xlane.f32.xlu0 %v2866
        %v2905 = vpop.xlane.xlu0 %2904
        %2906 = vmax.xlane.f32.xlu0 %v2867
        %v2907 = vpop.xlane.xlu0 %2906
        %2908 = vmax.xlane.f32.xlu0 %v2868
        %v2909 = vpop.xlane.xlu0 %2908
        %2910 = vmax.xlane.f32.xlu0 %v2869
        %v2911 = vpop.xlane.xlu0 %2910
        %2912 = vmax.xlane.f32.xlu0 %v2870
        %v2913 = vpop.xlane.xlu0 %2912
        %2914 = vmax.xlane.f32.xlu0 %v2871
        %v2915 = vpop.xlane.xlu0 %2914
        %2916 = vmax.xlane.f32.xlu0 %v2872
        %v2917 = vpop.xlane.xlu0 %2916
        %2918 = vmax.xlane.f32.xlu0 %v2873
        %v2919 = vpop.xlane.xlu0 %2918
        %2920 = vmax.xlane.f32.xlu0 %v2874
        %v2921 = vpop.xlane.xlu0 %2920
        %2922 = vmax.xlane.f32.xlu0 %v2875
        %v2923 = vpop.xlane.xlu0 %2922
        %2924 = vmax.xlane.f32.xlu0 %v2876
        %v2925 = vpop.xlane.xlu0 %2924
        %2926 = vmax.xlane.f32.xlu0 %v2877
        %v2927 = vpop.xlane.xlu0 %2926
        %2928 = vmax.xlane.f32.xlu0 %v2878
        %v2929 = vpop.xlane.xlu0 %2928
        %2930 = vmax.xlane.f32.xlu0 %v2879
        %v2931 = vpop.xlane.xlu0 %2930
        %2932 = vmax.xlane.f32.xlu0 %v2880
        %v2933 = vpop.xlane.xlu0 %2932
        %2934 = vmax.xlane.f32.xlu0 %v2881
        %v2935 = vpop.xlane.xlu0 %2934
        %2936 = vmax.xlane.f32.xlu0 %v2882
        %v2937 = vpop.xlane.xlu0 %2936
        %2938 = vmax.xlane.f32.xlu0 %v2883
        %v2939 = vpop.xlane.xlu0 %2938
        %2940 = vmax.xlane.f32.xlu0 %v2884
        %v2941 = vpop.xlane.xlu0 %2940
        %2942 = vmax.xlane.f32.xlu0 %v2885
        %v2943 = vpop.xlane.xlu0 %2942
        %2944 = vmax.xlane.f32.xlu0 %v2886
        %v2945 = vpop.xlane.xlu0 %2944
        %2946 = vmax.xlane.f32.xlu0 %v2887
        %v2947 = vpop.xlane.xlu0 %2946
        %2948 = vmax.xlane.f32.xlu0 %v2888
        %v2949 = vpop.xlane.xlu0 %2948
        %2950 = vmax.xlane.f32.xlu0 %v2889
        %v2951 = vpop.xlane.xlu0 %2950
        %2952 = vmax.xlane.f32.xlu0 %v2890
        %v2953 = vpop.xlane.xlu0 %2952
        %2954 = vmax.xlane.f32.xlu0 %v2891
        %v2955 = vpop.xlane.xlu0 %2954
        %v2956 = vsub.f32 %v2860, %v2893
        %v2957 = vsub.f32 %v2861, %v2895
        %v2958 = vsub.f32 %v2862, %v2897
        %v2959 = vsub.f32 %v2863, %v2899
        %v2960 = vsub.f32 %v2864, %v2901
        %v2961 = vsub.f32 %v2865, %v2903
        %v2962 = vsub.f32 %v2866, %v2905
        %v2963 = vsub.f32 %v2867, %v2907
        %v2964 = vsub.f32 %v2868, %v2909
        %v2965 = vsub.f32 %v2869, %v2911
        %v2966 = vsub.f32 %v2870, %v2913
        %v2967 = vsub.f32 %v2871, %v2915
        %v2968 = vsub.f32 %v2872, %v2917
        %v2969 = vsub.f32 %v2873, %v2919
        %v2970 = vsub.f32 %v2874, %v2921
        %v2971 = vsub.f32 %v2875, %v2923
        %v2972 = vsub.f32 %v2876, %v2925
        %v2973 = vsub.f32 %v2877, %v2927
        %v2974 = vsub.f32 %v2878, %v2929
        %v2975 = vsub.f32 %v2879, %v2931
        %v2976 = vsub.f32 %v2880, %v2933
        %v2977 = vsub.f32 %v2881, %v2935
        %v2978 = vsub.f32 %v2882, %v2937
        %v2979 = vsub.f32 %v2883, %v2939
        %v2980 = vsub.f32 %v2884, %v2941
        %v2981 = vsub.f32 %v2885, %v2943
        %v2982 = vsub.f32 %v2886, %v2945
        %v2983 = vsub.f32 %v2887, %v2947
        %v2984 = vsub.f32 %v2888, %v2949
        %v2985 = vsub.f32 %v2889, %v2951
        %v2986 = vsub.f32 %v2890, %v2953
        %v2987 = vsub.f32 %v2891, %v2955
        %v2988 = vmul.f32 %v2956, 1.442695
        %v2989 = vpow.pop %v2988
        %v2990 = vmul.f32 %v2957, 1.442695
        %v2991 = vpow.pop %v2990
        %v2992 = vmul.f32 %v2958, 1.442695
        %v2993 = vpow.pop %v2992
        %v2994 = vmul.f32 %v2959, 1.442695
        %v2995 = vpow.pop %v2994
        %v2996 = vmul.f32 %v2960, 1.442695
        %v2997 = vpow.pop %v2996
        %v2998 = vmul.f32 %v2961, 1.442695
        %v2999 = vpow.pop %v2998
        %v3000 = vmul.f32 %v2962, 1.442695
        %v3001 = vpow.pop %v3000
        %v3002 = vmul.f32 %v2963, 1.442695
        %v3003 = vpow.pop %v3002
        %v3004 = vmul.f32 %v2964, 1.442695
        %v3005 = vpow.pop %v3004
        %v3006 = vmul.f32 %v2965, 1.442695
        %v3007 = vpow.pop %v3006
        %v3008 = vmul.f32 %v2966, 1.442695
        %v3009 = vpow.pop %v3008
        %v3010 = vmul.f32 %v2967, 1.442695
        %v3011 = vpow.pop %v3010
        %v3012 = vmul.f32 %v2968, 1.442695
        %v3013 = vpow.pop %v3012
        %v3014 = vmul.f32 %v2969, 1.442695
        %v3015 = vpow.pop %v3014
        %v3016 = vmul.f32 %v2970, 1.442695
        %v3017 = vpow.pop %v3016
        %v3018 = vmul.f32 %v2971, 1.442695
        %v3019 = vpow.pop %v3018
        %v3020 = vmul.f32 %v2972, 1.442695
        %v3021 = vpow.pop %v3020
        %v3022 = vmul.f32 %v2973, 1.442695
        %v3023 = vpow.pop %v3022
        %v3024 = vmul.f32 %v2974, 1.442695
        %v3025 = vpow.pop %v3024
        %v3026 = vmul.f32 %v2975, 1.442695
        %v3027 = vpow.pop %v3026
        %v3028 = vmul.f32 %v2976, 1.442695
        %v3029 = vpow.pop %v3028
        %v3030 = vmul.f32 %v2977, 1.442695
        %v3031 = vpow.pop %v3030
        %v3032 = vmul.f32 %v2978, 1.442695
        %v3033 = vpow.pop %v3032
        %v3034 = vmul.f32 %v2979, 1.442695
        %v3035 = vpow.pop %v3034
        %v3036 = vmul.f32 %v2980, 1.442695
        %v3037 = vpow.pop %v3036
        %v3038 = vmul.f32 %v2981, 1.442695
        %v3039 = vpow.pop %v3038
        %v3040 = vmul.f32 %v2982, 1.442695
        %v3041 = vpow.pop %v3040
        %v3042 = vmul.f32 %v2983, 1.442695
        %v3043 = vpow.pop %v3042
        %v3044 = vmul.f32 %v2984, 1.442695
        %v3045 = vpow.pop %v3044
        %v3046 = vmul.f32 %v2985, 1.442695
        %v3047 = vpow.pop %v3046
        %v3048 = vmul.f32 %v2986, 1.442695
        %v3049 = vpow.pop %v3048
        %v3050 = vmul.f32 %v2987, 1.442695
        %v3051 = vpow.pop %v3050
        %3052 = vadd.xlane.f32.xlu0 %v2989
        %v3053 = vpop.xlane.xlu0 %3052
        %3054 = vadd.xlane.f32.xlu0 %v2991
        %v3055 = vpop.xlane.xlu0 %3054
        %3056 = vadd.xlane.f32.xlu0 %v2993
        %v3057 = vpop.xlane.xlu0 %3056
        %3058 = vadd.xlane.f32.xlu0 %v2995
        %v3059 = vpop.xlane.xlu0 %3058
        %3060 = vadd.xlane.f32.xlu0 %v2997
        %v3061 = vpop.xlane.xlu0 %3060
        %3062 = vadd.xlane.f32.xlu0 %v2999
        %v3063 = vpop.xlane.xlu0 %3062
        %3064 = vadd.xlane.f32.xlu0 %v3001
        %v3065 = vpop.xlane.xlu0 %3064
        %3066 = vadd.xlane.f32.xlu0 %v3003
        %v3067 = vpop.xlane.xlu0 %3066
        %3068 = vadd.xlane.f32.xlu0 %v3005
        %v3069 = vpop.xlane.xlu0 %3068
        %3070 = vadd.xlane.f32.xlu0 %v3007
        %v3071 = vpop.xlane.xlu0 %3070
        %3072 = vadd.xlane.f32.xlu0 %v3009
        %v3073 = vpop.xlane.xlu0 %3072
        %3074 = vadd.xlane.f32.xlu0 %v3011
        %v3075 = vpop.xlane.xlu0 %3074
        %3076 = vadd.xlane.f32.xlu0 %v3013
        %v3077 = vpop.xlane.xlu0 %3076
        %3078 = vadd.xlane.f32.xlu0 %v3015
        %v3079 = vpop.xlane.xlu0 %3078
        %3080 = vadd.xlane.f32.xlu0 %v3017
        %v3081 = vpop.xlane.xlu0 %3080
        %3082 = vadd.xlane.f32.xlu0 %v3019
        %v3083 = vpop.xlane.xlu0 %3082
        %3084 = vadd.xlane.f32.xlu0 %v3021
        %v3085 = vpop.xlane.xlu0 %3084
        %3086 = vadd.xlane.f32.xlu0 %v3023
        %v3087 = vpop.xlane.xlu0 %3086
        %3088 = vadd.xlane.f32.xlu0 %v3025
        %v3089 = vpop.xlane.xlu0 %3088
        %3090 = vadd.xlane.f32.xlu0 %v3027
        %v3091 = vpop.xlane.xlu0 %3090
        %3092 = vadd.xlane.f32.xlu0 %v3029
        %v3093 = vpop.xlane.xlu0 %3092
        %3094 = vadd.xlane.f32.xlu0 %v3031
        %v3095 = vpop.xlane.xlu0 %3094
        %3096 = vadd.xlane.f32.xlu0 %v3033
        %v3097 = vpop.xlane.xlu0 %3096
        %3098 = vadd.xlane.f32.xlu0 %v3035
        %v3099 = vpop.xlane.xlu0 %3098
        %3100 = vadd.xlane.f32.xlu0 %v3037
        %v3101 = vpop.xlane.xlu0 %3100
        %3102 = vadd.xlane.f32.xlu0 %v3039
        %v3103 = vpop.xlane.xlu0 %3102
        %3104 = vadd.xlane.f32.xlu0 %v3041
        %v3105 = vpop.xlane.xlu0 %3104
        %3106 = vadd.xlane.f32.xlu0 %v3043
        %v3107 = vpop.xlane.xlu0 %3106
        %3108 = vadd.xlane.f32.xlu0 %v3045
        %v3109 = vpop.xlane.xlu0 %3108
        %3110 = vadd.xlane.f32.xlu0 %v3047
        %v3111 = vpop.xlane.xlu0 %3110
        %3112 = vadd.xlane.f32.xlu0 %v3049
        %v3113 = vpop.xlane.xlu0 %3112
        %3114 = vadd.xlane.f32.xlu0 %v3051
        %v3115 = vpop.xlane.xlu0 %3114
        %v3116 = vrcp.pop %v3053
        %v3117 = vrcp.pop %v3055
        %v3118 = vrcp.pop %v3057
        %v3119 = vrcp.pop %v3059
        %v3120 = vrcp.pop %v3061
        %v3121 = vrcp.pop %v3063
        %v3122 = vrcp.pop %v3065
        %v3123 = vrcp.pop %v3067
        %v3124 = vrcp.pop %v3069
        %v3125 = vrcp.pop %v3071
        %v3126 = vrcp.pop %v3073
        %v3127 = vrcp.pop %v3075
        %v3128 = vrcp.pop %v3077
        %v3129 = vrcp.pop %v3079
        %v3130 = vrcp.pop %v3081
        %v3131 = vrcp.pop %v3083
        %v3132 = vrcp.pop %v3085
        %v3133 = vrcp.pop %v3087
        %v3134 = vrcp.pop %v3089
        %v3135 = vrcp.pop %v3091
        %v3136 = vrcp.pop %v3093
        %v3137 = vrcp.pop %v3095
        %v3138 = vrcp.pop %v3097
        %v3139 = vrcp.pop %v3099
        %v3140 = vrcp.pop %v3101
        %v3141 = vrcp.pop %v3103
        %v3142 = vrcp.pop %v3105
        %v3143 = vrcp.pop %v3107
        %v3144 = vrcp.pop %v3109
        %v3145 = vrcp.pop %v3111
        %v3146 = vrcp.pop %v3113
        %v3147 = vrcp.pop %v3115
        %v3148 = vmul.f32 %v2989, %v3116
        %v3149 = vmul.f32 %v2991, %v3117
        %v3150 = vmul.f32 %v2993, %v3118
        %v3151 = vmul.f32 %v2995, %v3119
        %v3152 = vmul.f32 %v2997, %v3120
        %v3153 = vmul.f32 %v2999, %v3121
        %v3154 = vmul.f32 %v3001, %v3122
        %v3155 = vmul.f32 %v3003, %v3123
        %v3156 = vmul.f32 %v3005, %v3124
        %v3157 = vmul.f32 %v3007, %v3125
        %v3158 = vmul.f32 %v3009, %v3126
        %v3159 = vmul.f32 %v3011, %v3127
        %v3160 = vmul.f32 %v3013, %v3128
        %v3161 = vmul.f32 %v3015, %v3129
        %v3162 = vmul.f32 %v3017, %v3130
        %v3163 = vmul.f32 %v3019, %v3131
        %v3164 = vmul.f32 %v3021, %v3132
        %v3165 = vmul.f32 %v3023, %v3133
        %v3166 = vmul.f32 %v3025, %v3134
        %v3167 = vmul.f32 %v3027, %v3135
        %v3168 = vmul.f32 %v3029, %v3136
        %v3169 = vmul.f32 %v3031, %v3137
        %v3170 = vmul.f32 %v3033, %v3138
        %v3171 = vmul.f32 %v3035, %v3139
        %v3172 = vmul.f32 %v3037, %v3140
        %v3173 = vmul.f32 %v3039, %v3141
        %v3174 = vmul.f32 %v3041, %v3142
        %v3175 = vmul.f32 %v3043, %v3143
        %v3176 = vmul.f32 %v3045, %v3144
        %v3177 = vmul.f32 %v3047, %v3145
        %v3178 = vmul.f32 %v3049, %v3146
        %v3179 = vmul.f32 %v3051, %v3147
        %v3180 = vpack.c.bf16 %v3149, %v3148
        %v3181 = vpack.c.bf16 %v3151, %v3150
        %v3182 = vpack.c.bf16 %v3153, %v3152
        %v3183 = vpack.c.bf16 %v3155, %v3154
        %v3184 = vpack.c.bf16 %v3157, %v3156
        %v3185 = vpack.c.bf16 %v3159, %v3158
        %v3186 = vpack.c.bf16 %v3161, %v3160
        %v3187 = vpack.c.bf16 %v3163, %v3162
        %v3188 = vpack.c.bf16 %v3165, %v3164
        %v3189 = vpack.c.bf16 %v3167, %v3166
        %v3190 = vpack.c.bf16 %v3169, %v3168
        %v3191 = vpack.c.bf16 %v3171, %v3170
        %v3192 = vpack.c.bf16 %v3173, %v3172
        %v3193 = vpack.c.bf16 %v3175, %v3174
        %v3194 = vpack.c.bf16 %v3177, %v3176
        %v3195 = vpack.c.bf16 %v3179, %v3178
        %v3196 = vld [vmem:[#allocation4] sm:$0xf]
        %v3197 = vld [vmem:[#allocation4 + $0x4] sm:$0xf]
        %v3198 = vld [vmem:[#allocation4 + $0x8] sm:$0xf]
        %v3199 = vld [vmem:[#allocation4 + $0xc] sm:$0xf]
        %v3200 = vld [vmem:[#allocation4 + $0x10] sm:$0xf]
        %v3201 = vld [vmem:[#allocation4 + $0x14] sm:$0xf]
        %v3202 = vld [vmem:[#allocation4 + $0x18] sm:$0xf]
        %v3203 = vld [vmem:[#allocation4 + $0x1c] sm:$0xf]
        %v3204 = vld [vmem:[#allocation4 + $0x20] sm:$0xf]
        %v3205 = vld [vmem:[#allocation4 + $0x24] sm:$0xf]
        %v3206 = vld [vmem:[#allocation4 + $0x28] sm:$0xf]
        %v3207 = vld [vmem:[#allocation4 + $0x2c] sm:$0xf]
        %v3208 = vld [vmem:[#allocation4 + $0x30] sm:$0xf]
        %v3209 = vld [vmem:[#allocation4 + $0x34] sm:$0xf]
        %v3210 = vld [vmem:[#allocation4 + $0x38] sm:$0xf]
        %v3211 = vld [vmem:[#allocation4 + $0x3c] sm:$0xf]
        %v3212 = vld [vmem:[#allocation4 + $0x40] sm:$0xf]
        %v3213 = vld [vmem:[#allocation4 + $0x44] sm:$0xf]
        %v3214 = vld [vmem:[#allocation4 + $0x48] sm:$0xf]
        %v3215 = vld [vmem:[#allocation4 + $0x4c] sm:$0xf]
        %v3216 = vld [vmem:[#allocation4 + $0x50] sm:$0xf]
        %v3217 = vld [vmem:[#allocation4 + $0x54] sm:$0xf]
        %v3218 = vld [vmem:[#allocation4 + $0x58] sm:$0xf]
        %v3219 = vld [vmem:[#allocation4 + $0x5c] sm:$0xf]
        %v3220 = vld [vmem:[#allocation4 + $0x60] sm:$0xf]
        %v3221 = vld [vmem:[#allocation4 + $0x64] sm:$0xf]
        %v3222 = vld [vmem:[#allocation4 + $0x68] sm:$0xf]
        %v3223 = vld [vmem:[#allocation4 + $0x6c] sm:$0xf]
        %v3224 = vld [vmem:[#allocation4 + $0x70] sm:$0xf]
        %v3225 = vld [vmem:[#allocation4 + $0x74] sm:$0xf]
        %v3226 = vld [vmem:[#allocation4 + $0x78] sm:$0xf]
        %v3227 = vld [vmem:[#allocation4 + $0x7c] sm:$0xf]
        %v3228 = vld [vmem:[#allocation4 + $0x80] sm:$0xf]
        %v3229 = vld [vmem:[#allocation4 + $0x84] sm:$0xf]
        %v3230 = vld [vmem:[#allocation4 + $0x88] sm:$0xf]
        %v3231 = vld [vmem:[#allocation4 + $0x8c] sm:$0xf]
        %v3232 = vld [vmem:[#allocation4 + $0x90] sm:$0xf]
        %v3233 = vld [vmem:[#allocation4 + $0x94] sm:$0xf]
        %v3234 = vld [vmem:[#allocation4 + $0x98] sm:$0xf]
        %v3235 = vld [vmem:[#allocation4 + $0x9c] sm:$0xf]
        %v3236 = vld [vmem:[#allocation4 + $0xa0] sm:$0xf]
        %v3237 = vld [vmem:[#allocation4 + $0xa4] sm:$0xf]
        %v3238 = vld [vmem:[#allocation4 + $0xa8] sm:$0xf]
        %v3239 = vld [vmem:[#allocation4 + $0xac] sm:$0xf]
        %v3240 = vld [vmem:[#allocation4 + $0xb0] sm:$0xf]
        %v3241 = vld [vmem:[#allocation4 + $0xb4] sm:$0xf]
        %v3242 = vld [vmem:[#allocation4 + $0xb8] sm:$0xf]
        %v3243 = vld [vmem:[#allocation4 + $0xbc] sm:$0xf]
        %v3244 = vld [vmem:[#allocation4 + $0xc0] sm:$0xf]
        %v3245 = vld [vmem:[#allocation4 + $0xc4] sm:$0xf]
        %v3246 = vld [vmem:[#allocation4 + $0xc8] sm:$0xf]
        %v3247 = vld [vmem:[#allocation4 + $0xcc] sm:$0xf]
        %v3248 = vld [vmem:[#allocation4 + $0xd0] sm:$0xf]
        %v3249 = vld [vmem:[#allocation4 + $0xd4] sm:$0xf]
        %v3250 = vld [vmem:[#allocation4 + $0xd8] sm:$0xf]
        %v3251 = vld [vmem:[#allocation4 + $0xdc] sm:$0xf]
        %v3252 = vld [vmem:[#allocation4 + $0xe0] sm:$0xf]
        %v3253 = vld [vmem:[#allocation4 + $0xe4] sm:$0xf]
        %v3254 = vld [vmem:[#allocation4 + $0xe8] sm:$0xf]
        %v3255 = vld [vmem:[#allocation4 + $0xec] sm:$0xf]
        %v3256 = vld [vmem:[#allocation4 + $0xf0] sm:$0xf]
        %v3257 = vld [vmem:[#allocation4 + $0xf4] sm:$0xf]
        %v3258 = vld [vmem:[#allocation4 + $0xf8] sm:$0xf]
        %v3259 = vld [vmem:[#allocation4 + $0xfc] sm:$0xf]
        %v3276 = vunpack.c.l.b16 %v3196
        %v3277 = vunpack.c.l.b16 %v3197
        %v3278 = vunpack.c.l.b16 %v3198
        %v3279 = vunpack.c.l.b16 %v3199
        %v3280 = vunpack.c.l.b16 %v3200
        %v3281 = vunpack.c.l.b16 %v3201
        %v3282 = vunpack.c.l.b16 %v3202
        %v3283 = vunpack.c.l.b16 %v3203
        %v3284 = vunpack.c.l.b16 %v3204
        %v3285 = vunpack.c.l.b16 %v3205
        %v3286 = vunpack.c.l.b16 %v3206
        %v3287 = vunpack.c.l.b16 %v3207
        %v3288 = vunpack.c.l.b16 %v3208
        %v3289 = vunpack.c.l.b16 %v3209
        %v3290 = vunpack.c.l.b16 %v3210
        %v3291 = vunpack.c.l.b16 %v3211
        %v3292 = vpack.c.b16 %v3277, %v3276
        %v3293 = vpack.c.b16 %v3279, %v3278
        %v3294 = vpack.c.b16 %v3281, %v3280
        %v3295 = vpack.c.b16 %v3283, %v3282
        %v3296 = vpack.c.b16 %v3285, %v3284
        %v3297 = vpack.c.b16 %v3287, %v3286
        %v3298 = vpack.c.b16 %v3289, %v3288
        %v3299 = vpack.c.b16 %v3291, %v3290
        %3308 = vmatprep.subr.bf16.mxu0 0
        %3309 = vmatpush1.bf16.msra.mxu0 %v3299
        %3310 = vmatprep.subr.bf16.mxu0 0
        %3311 = vmatpush1.bf16.msra.mxu0 %v3298
        %3312 = vmatprep.subr.bf16.mxu0 0
        %3313 = vmatpush1.bf16.msra.mxu0 %v3297
        %3314 = vmatprep.subr.bf16.mxu0 0
        %3315 = vmatpush1.bf16.msra.mxu0 %v3296
        %3316 = vmatprep.subr.bf16.mxu0 0
        %3317 = vmatpush1.bf16.msra.mxu0 %v3295
        %3318 = vmatprep.subr.bf16.mxu0 0
        %3319 = vmatpush1.bf16.msra.mxu0 %v3294
        %3320 = vmatprep.subr.bf16.mxu0 0
        %3321 = vmatpush1.bf16.msra.mxu0 %v3293
        %3322 = vmatprep.subr.bf16.mxu0 0
        %3323 = vmatpush1.bf16.msra.mxu0 %v3292
        %3324 = vmatprep.subr.bf16.mxu0 0
        %3325 = vmatpush2.bf16.msra.mxu0 0
        %3326 = vmatprep.subr.bf16.mxu0 0
        %3327 = vmatpush2.bf16.msra.mxu0 0
        %3328 = vmatprep.subr.bf16.mxu0 0
        %3329 = vmatpush2.bf16.msra.mxu0 0
        %3330 = vmatprep.subr.bf16.mxu0 0
        %3331 = vmatpush2.bf16.msra.mxu0 0
        %3332 = vmatprep.subr.bf16.mxu0 0
        %3333 = vmatpush2.bf16.msra.mxu0 0
        %3334 = vmatprep.subr.bf16.mxu0 0
        %3335 = vmatpush2.bf16.msra.mxu0 0
        %3336 = vmatprep.subr.bf16.mxu0 0
        %3337 = vmatpush2.bf16.msra.mxu0 0
        %3338 = vmatprep.subr.bf16.mxu0 0
        %3339 = vmatpush2.bf16.msra.mxu0 0
        %3340 = vmatprep.mubr.bf16.mxu0 0
        %3341 = vmatmul.mubr.bf16.gmra.mxu0 %v3180
        %v3342 = vpop.f32.mrf.mxu0
        %v3343 = vadd.f32 0.0, %v3342
        %v3344 = vpop.f32.mrf.mxu0
        %v3345 = vpop.f32.mrf.mxu0
        %v3346 = vadd.f32 0.0, %v3345
        %v3347 = vpop.f32.mrf.mxu0
        %3348 = vmatprep.mubr.bf16.mxu0 0
        %3349 = vmatmul.mubr.bf16.gmra.mxu0 %v3181
        %v3350 = vpop.f32.mrf.mxu0
        %v3351 = vadd.f32 0.0, %v3350
        %v3352 = vpop.f32.mrf.mxu0
        %v3353 = vpop.f32.mrf.mxu0
        %v3354 = vadd.f32 0.0, %v3353
        %v3355 = vpop.f32.mrf.mxu0
        %3356 = vmatprep.mubr.bf16.mxu0 0
        %3357 = vmatmul.mubr.bf16.gmra.mxu0 %v3182
        %v3358 = vpop.f32.mrf.mxu0
        %v3359 = vadd.f32 0.0, %v3358
        %v3360 = vpop.f32.mrf.mxu0
        %v3361 = vpop.f32.mrf.mxu0
        %v3362 = vadd.f32 0.0, %v3361
        %v3363 = vpop.f32.mrf.mxu0
        %3364 = vmatprep.mubr.bf16.mxu0 0
        %3365 = vmatmul.mubr.bf16.gmra.mxu0 %v3183
        %v3366 = vpop.f32.mrf.mxu0
        %v3367 = vadd.f32 0.0, %v3366
        %v3368 = vpop.f32.mrf.mxu0
        %v3369 = vpop.f32.mrf.mxu0
        %v3370 = vadd.f32 0.0, %v3369
        %v3371 = vpop.f32.mrf.mxu0
        %3372 = vdwg.mxu0
        %v3389 = vunpack.c.l.b16 %v3212
        %v3390 = vunpack.c.l.b16 %v3213
        %v3391 = vunpack.c.l.b16 %v3214
        %v3392 = vunpack.c.l.b16 %v3215
        %v3393 = vunpack.c.l.b16 %v3216
        %v3394 = vunpack.c.l.b16 %v3217
        %v3395 = vunpack.c.l.b16 %v3218
        %v3396 = vunpack.c.l.b16 %v3219
        %v3397 = vunpack.c.l.b16 %v3220
        %v3398 = vunpack.c.l.b16 %v3221
        %v3399 = vunpack.c.l.b16 %v3222
        %v3400 = vunpack.c.l.b16 %v3223
        %v3401 = vunpack.c.l.b16 %v3224
        %v3402 = vunpack.c.l.b16 %v3225
        %v3403 = vunpack.c.l.b16 %v3226
        %v3404 = vunpack.c.l.b16 %v3227
        %v3405 = vpack.c.b16 %v3390, %v3389
        %v3406 = vpack.c.b16 %v3392, %v3391
        %v3407 = vpack.c.b16 %v3394, %v3393
        %v3408 = vpack.c.b16 %v3396, %v3395
        %v3409 = vpack.c.b16 %v3398, %v3397
        %v3410 = vpack.c.b16 %v3400, %v3399
        %v3411 = vpack.c.b16 %v3402, %v3401
        %v3412 = vpack.c.b16 %v3404, %v3403
        %3421 = vmatprep.subr.bf16.mxu0 0
        %3422 = vmatpush1.bf16.msra.mxu0 %v3412
        %3423 = vmatprep.subr.bf16.mxu0 0
        %3424 = vmatpush1.bf16.msra.mxu0 %v3411
        %3425 = vmatprep.subr.bf16.mxu0 0
        %3426 = vmatpush1.bf16.msra.mxu0 %v3410
        %3427 = vmatprep.subr.bf16.mxu0 0
        %3428 = vmatpush1.bf16.msra.mxu0 %v3409
        %3429 = vmatprep.subr.bf16.mxu0 0
        %3430 = vmatpush1.bf16.msra.mxu0 %v3408
        %3431 = vmatprep.subr.bf16.mxu0 0
        %3432 = vmatpush1.bf16.msra.mxu0 %v3407
        %3433 = vmatprep.subr.bf16.mxu0 0
        %3434 = vmatpush1.bf16.msra.mxu0 %v3406
        %3435 = vmatprep.subr.bf16.mxu0 0
        %3436 = vmatpush1.bf16.msra.mxu0 %v3405
        %3437 = vmatprep.subr.bf16.mxu0 0
        %3438 = vmatpush2.bf16.msra.mxu0 0
        %3439 = vmatprep.subr.bf16.mxu0 0
        %3440 = vmatpush2.bf16.msra.mxu0 0
        %3441 = vmatprep.subr.bf16.mxu0 0
        %3442 = vmatpush2.bf16.msra.mxu0 0
        %3443 = vmatprep.subr.bf16.mxu0 0
        %3444 = vmatpush2.bf16.msra.mxu0 0
        %3445 = vmatprep.subr.bf16.mxu0 0
        %3446 = vmatpush2.bf16.msra.mxu0 0
        %3447 = vmatprep.subr.bf16.mxu0 0
        %3448 = vmatpush2.bf16.msra.mxu0 0
        %3449 = vmatprep.subr.bf16.mxu0 0
        %3450 = vmatpush2.bf16.msra.mxu0 0
        %3451 = vmatprep.subr.bf16.mxu0 0
        %3452 = vmatpush2.bf16.msra.mxu0 0
        %3453 = vmatprep.mubr.bf16.mxu0 0
        %3454 = vmatmul.mubr.bf16.gmra.mxu0 %v3184
        %v3455 = vpop.f32.mrf.mxu0
        %v3456 = vadd.f32 0.0, %v3455
        %v3457 = vpop.f32.mrf.mxu0
        %v3458 = vpop.f32.mrf.mxu0
        %v3459 = vadd.f32 0.0, %v3458
        %v3460 = vpop.f32.mrf.mxu0
        %3461 = vmatprep.mubr.bf16.mxu0 0
        %3462 = vmatmul.mubr.bf16.gmra.mxu0 %v3185
        %v3463 = vpop.f32.mrf.mxu0
        %v3464 = vadd.f32 0.0, %v3463
        %v3465 = vpop.f32.mrf.mxu0
        %v3466 = vpop.f32.mrf.mxu0
        %v3467 = vadd.f32 0.0, %v3466
        %v3468 = vpop.f32.mrf.mxu0
        %3469 = vmatprep.mubr.bf16.mxu0 0
        %3470 = vmatmul.mubr.bf16.gmra.mxu0 %v3186
        %v3471 = vpop.f32.mrf.mxu0
        %v3472 = vadd.f32 0.0, %v3471
        %v3473 = vpop.f32.mrf.mxu0
        %v3474 = vpop.f32.mrf.mxu0
        %v3475 = vadd.f32 0.0, %v3474
        %v3476 = vpop.f32.mrf.mxu0
        %3477 = vmatprep.mubr.bf16.mxu0 0
        %3478 = vmatmul.mubr.bf16.gmra.mxu0 %v3187
        %v3479 = vpop.f32.mrf.mxu0
        %v3480 = vadd.f32 0.0, %v3479
        %v3481 = vpop.f32.mrf.mxu0
        %v3482 = vpop.f32.mrf.mxu0
        %v3483 = vadd.f32 0.0, %v3482
        %v3484 = vpop.f32.mrf.mxu0
        %3485 = vdwg.mxu0
        %v3502 = vunpack.c.l.b16 %v3228
        %v3503 = vunpack.c.l.b16 %v3229
        %v3504 = vunpack.c.l.b16 %v3230
        %v3505 = vunpack.c.l.b16 %v3231
        %v3506 = vunpack.c.l.b16 %v3232
        %v3507 = vunpack.c.l.b16 %v3233
        %v3508 = vunpack.c.l.b16 %v3234
        %v3509 = vunpack.c.l.b16 %v3235
        %v3510 = vunpack.c.l.b16 %v3236
        %v3511 = vunpack.c.l.b16 %v3237
        %v3512 = vunpack.c.l.b16 %v3238
        %v3513 = vunpack.c.l.b16 %v3239
        %v3514 = vunpack.c.l.b16 %v3240
        %v3515 = vunpack.c.l.b16 %v3241
        %v3516 = vunpack.c.l.b16 %v3242
        %v3517 = vunpack.c.l.b16 %v3243
        %v3518 = vpack.c.b16 %v3503, %v3502
        %v3519 = vpack.c.b16 %v3505, %v3504
        %v3520 = vpack.c.b16 %v3507, %v3506
        %v3521 = vpack.c.b16 %v3509, %v3508
        %v3522 = vpack.c.b16 %v3511, %v3510
        %v3523 = vpack.c.b16 %v3513, %v3512
        %v3524 = vpack.c.b16 %v3515, %v3514
        %v3525 = vpack.c.b16 %v3517, %v3516
        %3534 = vmatprep.subr.bf16.mxu0 0
        %3535 = vmatpush1.bf16.msra.mxu0 %v3525
        %3536 = vmatprep.subr.bf16.mxu0 0
        %3537 = vmatpush1.bf16.msra.mxu0 %v3524
        %3538 = vmatprep.subr.bf16.mxu0 0
        %3539 = vmatpush1.bf16.msra.mxu0 %v3523
        %3540 = vmatprep.subr.bf16.mxu0 0
        %3541 = vmatpush1.bf16.msra.mxu0 %v3522
        %3542 = vmatprep.subr.bf16.mxu0 0
        %3543 = vmatpush1.bf16.msra.mxu0 %v3521
        %3544 = vmatprep.subr.bf16.mxu0 0
        %3545 = vmatpush1.bf16.msra.mxu0 %v3520
        %3546 = vmatprep.subr.bf16.mxu0 0
        %3547 = vmatpush1.bf16.msra.mxu0 %v3519
        %3548 = vmatprep.subr.bf16.mxu0 0
        %3549 = vmatpush1.bf16.msra.mxu0 %v3518
        %3550 = vmatprep.subr.bf16.mxu0 0
        %3551 = vmatpush2.bf16.msra.mxu0 0
        %3552 = vmatprep.subr.bf16.mxu0 0
        %3553 = vmatpush2.bf16.msra.mxu0 0
        %3554 = vmatprep.subr.bf16.mxu0 0
        %3555 = vmatpush2.bf16.msra.mxu0 0
        %3556 = vmatprep.subr.bf16.mxu0 0
        %3557 = vmatpush2.bf16.msra.mxu0 0
        %3558 = vmatprep.subr.bf16.mxu0 0
        %3559 = vmatpush2.bf16.msra.mxu0 0
        %3560 = vmatprep.subr.bf16.mxu0 0
        %3561 = vmatpush2.bf16.msra.mxu0 0
        %3562 = vmatprep.subr.bf16.mxu0 0
        %3563 = vmatpush2.bf16.msra.mxu0 0
        %3564 = vmatprep.subr.bf16.mxu0 0
        %3565 = vmatpush2.bf16.msra.mxu0 0
        %3566 = vmatprep.mubr.bf16.mxu0 0
        %3567 = vmatmul.mubr.bf16.gmra.mxu0 %v3188
        %v3568 = vpop.f32.mrf.mxu0
        %v3569 = vadd.f32 0.0, %v3568
        %v3570 = vpop.f32.mrf.mxu0
        %v3571 = vpop.f32.mrf.mxu0
        %v3572 = vadd.f32 0.0, %v3571
        %v3573 = vpop.f32.mrf.mxu0
        %3574 = vmatprep.mubr.bf16.mxu0 0
        %3575 = vmatmul.mubr.bf16.gmra.mxu0 %v3189
        %v3576 = vpop.f32.mrf.mxu0
        %v3577 = vadd.f32 0.0, %v3576
        %v3578 = vpop.f32.mrf.mxu0
        %v3579 = vpop.f32.mrf.mxu0
        %v3580 = vadd.f32 0.0, %v3579
        %v3581 = vpop.f32.mrf.mxu0
        %3582 = vmatprep.mubr.bf16.mxu0 0
        %3583 = vmatmul.mubr.bf16.gmra.mxu0 %v3190
        %v3584 = vpop.f32.mrf.mxu0
        %v3585 = vadd.f32 0.0, %v3584
        %v3586 = vpop.f32.mrf.mxu0
        %v3587 = vpop.f32.mrf.mxu0
        %v3588 = vadd.f32 0.0, %v3587
        %v3589 = vpop.f32.mrf.mxu0
        %3590 = vmatprep.mubr.bf16.mxu0 0
        %3591 = vmatmul.mubr.bf16.gmra.mxu0 %v3191
        %v3592 = vpop.f32.mrf.mxu0
        %v3593 = vadd.f32 0.0, %v3592
        %v3594 = vpop.f32.mrf.mxu0
        %v3595 = vpop.f32.mrf.mxu0
        %v3596 = vadd.f32 0.0, %v3595
        %v3597 = vpop.f32.mrf.mxu0
        %3598 = vdwg.mxu0
        %v3615 = vunpack.c.l.b16 %v3244
        %v3616 = vunpack.c.l.b16 %v3245
        %v3617 = vunpack.c.l.b16 %v3246
        %v3618 = vunpack.c.l.b16 %v3247
        %v3619 = vunpack.c.l.b16 %v3248
        %v3620 = vunpack.c.l.b16 %v3249
        %v3621 = vunpack.c.l.b16 %v3250
        %v3622 = vunpack.c.l.b16 %v3251
        %v3623 = vunpack.c.l.b16 %v3252
        %v3624 = vunpack.c.l.b16 %v3253
        %v3625 = vunpack.c.l.b16 %v3254
        %v3626 = vunpack.c.l.b16 %v3255
        %v3627 = vunpack.c.l.b16 %v3256
        %v3628 = vunpack.c.l.b16 %v3257
        %v3629 = vunpack.c.l.b16 %v3258
        %v3630 = vunpack.c.l.b16 %v3259
        %v3631 = vpack.c.b16 %v3616, %v3615
        %v3632 = vpack.c.b16 %v3618, %v3617
        %v3633 = vpack.c.b16 %v3620, %v3619
        %v3634 = vpack.c.b16 %v3622, %v3621
        %v3635 = vpack.c.b16 %v3624, %v3623
        %v3636 = vpack.c.b16 %v3626, %v3625
        %v3637 = vpack.c.b16 %v3628, %v3627
        %v3638 = vpack.c.b16 %v3630, %v3629
        %3647 = vmatprep.subr.bf16.mxu0 0
        %3648 = vmatpush1.bf16.msra.mxu0 %v3638
        %3649 = vmatprep.subr.bf16.mxu0 0
        %3650 = vmatpush1.bf16.msra.mxu0 %v3637
        %3651 = vmatprep.subr.bf16.mxu0 0
        %3652 = vmatpush1.bf16.msra.mxu0 %v3636
        %3653 = vmatprep.subr.bf16.mxu0 0
        %3654 = vmatpush1.bf16.msra.mxu0 %v3635
        %3655 = vmatprep.subr.bf16.mxu0 0
        %3656 = vmatpush1.bf16.msra.mxu0 %v3634
        %3657 = vmatprep.subr.bf16.mxu0 0
        %3658 = vmatpush1.bf16.msra.mxu0 %v3633
        %3659 = vmatprep.subr.bf16.mxu0 0
        %3660 = vmatpush1.bf16.msra.mxu0 %v3632
        %3661 = vmatprep.subr.bf16.mxu0 0
        %3662 = vmatpush1.bf16.msra.mxu0 %v3631
        %3663 = vmatprep.subr.bf16.mxu0 0
        %3664 = vmatpush2.bf16.msra.mxu0 0
        %3665 = vmatprep.subr.bf16.mxu0 0
        %3666 = vmatpush2.bf16.msra.mxu0 0
        %3667 = vmatprep.subr.bf16.mxu0 0
        %3668 = vmatpush2.bf16.msra.mxu0 0
        %3669 = vmatprep.subr.bf16.mxu0 0
        %3670 = vmatpush2.bf16.msra.mxu0 0
        %3671 = vmatprep.subr.bf16.mxu0 0
        %3672 = vmatpush2.bf16.msra.mxu0 0
        %3673 = vmatprep.subr.bf16.mxu0 0
        %3674 = vmatpush2.bf16.msra.mxu0 0
        %3675 = vmatprep.subr.bf16.mxu0 0
        %3676 = vmatpush2.bf16.msra.mxu0 0
        %3677 = vmatprep.subr.bf16.mxu0 0
        %3678 = vmatpush2.bf16.msra.mxu0 0
        %3679 = vmatprep.mubr.bf16.mxu0 0
        %3680 = vmatmul.mubr.bf16.gmra.mxu0 %v3192
        %v3681 = vpop.f32.mrf.mxu0
        %v3682 = vadd.f32 0.0, %v3681
        %v3683 = vpop.f32.mrf.mxu0
        %v3684 = vpop.f32.mrf.mxu0
        %v3685 = vadd.f32 0.0, %v3684
        %v3686 = vpop.f32.mrf.mxu0
        %3687 = vmatprep.mubr.bf16.mxu0 0
        %3688 = vmatmul.mubr.bf16.gmra.mxu0 %v3193
        %v3689 = vpop.f32.mrf.mxu0
        %v3690 = vadd.f32 0.0, %v3689
        %v3691 = vpop.f32.mrf.mxu0
        %v3692 = vpop.f32.mrf.mxu0
        %v3693 = vadd.f32 0.0, %v3692
        %v3694 = vpop.f32.mrf.mxu0
        %3695 = vmatprep.mubr.bf16.mxu0 0
        %3696 = vmatmul.mubr.bf16.gmra.mxu0 %v3194
        %v3697 = vpop.f32.mrf.mxu0
        %v3698 = vadd.f32 0.0, %v3697
        %v3699 = vpop.f32.mrf.mxu0
        %v3700 = vpop.f32.mrf.mxu0
        %v3701 = vadd.f32 0.0, %v3700
        %v3702 = vpop.f32.mrf.mxu0
        %3703 = vmatprep.mubr.bf16.mxu0 0
        %3704 = vmatmul.mubr.bf16.gmra.mxu0 %v3195
        %v3705 = vpop.f32.mrf.mxu0
        %v3706 = vadd.f32 0.0, %v3705
        %v3707 = vpop.f32.mrf.mxu0
        %v3708 = vpop.f32.mrf.mxu0
        %v3709 = vadd.f32 0.0, %v3708
        %v3710 = vpop.f32.mrf.mxu0
        %3711 = vdwg.mxu0
        %v3712 = vpack.c.bf16 %v3346, %v3343
        %v3713 = vpack.c.bf16 %v3354, %v3351
        %v3714 = vpack.c.bf16 %v3362, %v3359
        %v3715 = vpack.c.bf16 %v3370, %v3367
        %v3720 = vunpack.c.l.b16 %v3712
        %v3721 = vunpack.c.h.b16 %v3712
        %v3722 = vunpack.c.l.b16 %v3713
        %v3723 = vunpack.c.h.b16 %v3713
        %v3724 = vunpack.c.l.b16 %v3714
        %v3725 = vunpack.c.h.b16 %v3714
        %v3726 = vunpack.c.l.b16 %v3715
        %v3727 = vunpack.c.h.b16 %v3715
        %v3728 = vpack.c.b16 %v3720, %v3720
        %v3729 = vpack.c.b16 %v3721, %v3721
        %v3730 = vpack.c.b16 %v3722, %v3722
        %v3731 = vpack.c.b16 %v3723, %v3723
        %v3732 = vpack.c.b16 %v3724, %v3724
        %v3733 = vpack.c.b16 %v3725, %v3725
        %v3734 = vpack.c.b16 %v3726, %v3726
        %v3735 = vpack.c.b16 %v3727, %v3727
        %vm3744 = vcmask 257024
        %3745 = vst.msk [vmem:[#allocation5] sm:$0xf] %vm3744, %v3728
        %3746 = vst.msk [vmem:[#allocation5 + $0x4] sm:$0xf] %vm3744, %v3729
        %3747 = vst.msk [vmem:[#allocation5 + $0x8] sm:$0xf] %vm3744, %v3730
        %3748 = vst.msk [vmem:[#allocation5 + $0xc] sm:$0xf] %vm3744, %v3731
        %3749 = vst.msk [vmem:[#allocation5 + $0x10] sm:$0xf] %vm3744, %v3732
        %3750 = vst.msk [vmem:[#allocation5 + $0x14] sm:$0xf] %vm3744, %v3733
        %3751 = vst.msk [vmem:[#allocation5 + $0x18] sm:$0xf] %vm3744, %v3734
        %3752 = vst.msk [vmem:[#allocation5 + $0x1c] sm:$0xf] %vm3744, %v3735
        %v3753 = vpack.c.bf16 %v3459, %v3456
        %v3754 = vpack.c.bf16 %v3467, %v3464
        %v3755 = vpack.c.bf16 %v3475, %v3472
        %v3756 = vpack.c.bf16 %v3483, %v3480
        %v3761 = vunpack.c.l.b16 %v3753
        %v3762 = vunpack.c.h.b16 %v3753
        %v3763 = vunpack.c.l.b16 %v3754
        %v3764 = vunpack.c.h.b16 %v3754
        %v3765 = vunpack.c.l.b16 %v3755
        %v3766 = vunpack.c.h.b16 %v3755
        %v3767 = vunpack.c.l.b16 %v3756
        %v3768 = vunpack.c.h.b16 %v3756
        %v3769 = vpack.c.b16 %v3761, %v3761
        %v3770 = vpack.c.b16 %v3762, %v3762
        %v3771 = vpack.c.b16 %v3763, %v3763
        %v3772 = vpack.c.b16 %v3764, %v3764
        %v3773 = vpack.c.b16 %v3765, %v3765
        %v3774 = vpack.c.b16 %v3766, %v3766
        %v3775 = vpack.c.b16 %v3767, %v3767
        %v3776 = vpack.c.b16 %v3768, %v3768
        %3777 = vrot.lane.b32.xlu0 %v3769, 32
        %v3778 = vpop.permute.xlu0 %3777
        %3779 = vrot.lane.b32.xlu0 %v3770, 32
        %v3780 = vpop.permute.xlu0 %3779
        %3781 = vrot.lane.b32.xlu0 %v3771, 32
        %v3782 = vpop.permute.xlu0 %3781
        %3783 = vrot.lane.b32.xlu0 %v3772, 32
        %v3784 = vpop.permute.xlu0 %3783
        %3785 = vrot.lane.b32.xlu0 %v3773, 32
        %v3786 = vpop.permute.xlu0 %3785
        %3787 = vrot.lane.b32.xlu0 %v3774, 32
        %v3788 = vpop.permute.xlu0 %3787
        %3789 = vrot.lane.b32.xlu0 %v3775, 32
        %v3790 = vpop.permute.xlu0 %3789
        %3791 = vrot.lane.b32.xlu0 %v3776, 32
        %v3792 = vpop.permute.xlu0 %3791
        %vm3801 = vcmask 519424
        %3802 = vst.msk [vmem:[#allocation5] sm:$0xf] %vm3801, %v3778
        %3803 = vst.msk [vmem:[#allocation5 + $0x4] sm:$0xf] %vm3801, %v3780
        %3804 = vst.msk [vmem:[#allocation5 + $0x8] sm:$0xf] %vm3801, %v3782
        %3805 = vst.msk [vmem:[#allocation5 + $0xc] sm:$0xf] %vm3801, %v3784
        %3806 = vst.msk [vmem:[#allocation5 + $0x10] sm:$0xf] %vm3801, %v3786
        %3807 = vst.msk [vmem:[#allocation5 + $0x14] sm:$0xf] %vm3801, %v3788
        %3808 = vst.msk [vmem:[#allocation5 + $0x18] sm:$0xf] %vm3801, %v3790
        %3809 = vst.msk [vmem:[#allocation5 + $0x1c] sm:$0xf] %vm3801, %v3792
        %v3810 = vpack.c.bf16 %v3572, %v3569
        %v3811 = vpack.c.bf16 %v3580, %v3577
        %v3812 = vpack.c.bf16 %v3588, %v3585
        %v3813 = vpack.c.bf16 %v3596, %v3593
        %v3818 = vunpack.c.l.b16 %v3810
        %v3819 = vunpack.c.h.b16 %v3810
        %v3820 = vunpack.c.l.b16 %v3811
        %v3821 = vunpack.c.h.b16 %v3811
        %v3822 = vunpack.c.l.b16 %v3812
        %v3823 = vunpack.c.h.b16 %v3812
        %v3824 = vunpack.c.l.b16 %v3813
        %v3825 = vunpack.c.h.b16 %v3813
        %v3826 = vpack.c.b16 %v3818, %v3818
        %v3827 = vpack.c.b16 %v3819, %v3819
        %v3828 = vpack.c.b16 %v3820, %v3820
        %v3829 = vpack.c.b16 %v3821, %v3821
        %v3830 = vpack.c.b16 %v3822, %v3822
        %v3831 = vpack.c.b16 %v3823, %v3823
        %v3832 = vpack.c.b16 %v3824, %v3824
        %v3833 = vpack.c.b16 %v3825, %v3825
        %3834 = vrot.lane.b32.xlu0 %v3826, 64
        %v3835 = vpop.permute.xlu0 %3834
        %3836 = vrot.lane.b32.xlu0 %v3827, 64
        %v3837 = vpop.permute.xlu0 %3836
        %3838 = vrot.lane.b32.xlu0 %v3828, 64
        %v3839 = vpop.permute.xlu0 %3838
        %3840 = vrot.lane.b32.xlu0 %v3829, 64
        %v3841 = vpop.permute.xlu0 %3840
        %3842 = vrot.lane.b32.xlu0 %v3830, 64
        %v3843 = vpop.permute.xlu0 %3842
        %3844 = vrot.lane.b32.xlu0 %v3831, 64
        %v3845 = vpop.permute.xlu0 %3844
        %3846 = vrot.lane.b32.xlu0 %v3832, 64
        %v3847 = vpop.permute.xlu0 %3846
        %3848 = vrot.lane.b32.xlu0 %v3833, 64
        %v3849 = vpop.permute.xlu0 %3848
        %vm3858 = vcmask 781824
        %3859 = vst.msk [vmem:[#allocation5] sm:$0xf] %vm3858, %v3835
        %3860 = vst.msk [vmem:[#allocation5 + $0x4] sm:$0xf] %vm3858, %v3837
        %3861 = vst.msk [vmem:[#allocation5 + $0x8] sm:$0xf] %vm3858, %v3839
        %3862 = vst.msk [vmem:[#allocation5 + $0xc] sm:$0xf] %vm3858, %v3841
        %3863 = vst.msk [vmem:[#allocation5 + $0x10] sm:$0xf] %vm3858, %v3843
        %3864 = vst.msk [vmem:[#allocation5 + $0x14] sm:$0xf] %vm3858, %v3845
        %3865 = vst.msk [vmem:[#allocation5 + $0x18] sm:$0xf] %vm3858, %v3847
        %3866 = vst.msk [vmem:[#allocation5 + $0x1c] sm:$0xf] %vm3858, %v3849
        %v3867 = vpack.c.bf16 %v3685, %v3682
        %v3868 = vpack.c.bf16 %v3693, %v3690
        %v3869 = vpack.c.bf16 %v3701, %v3698
        %v3870 = vpack.c.bf16 %v3709, %v3706
        %v3875 = vunpack.c.l.b16 %v3867
        %v3876 = vunpack.c.h.b16 %v3867
        %v3877 = vunpack.c.l.b16 %v3868
        %v3878 = vunpack.c.h.b16 %v3868
        %v3879 = vunpack.c.l.b16 %v3869
        %v3880 = vunpack.c.h.b16 %v3869
        %v3881 = vunpack.c.l.b16 %v3870
        %v3882 = vunpack.c.h.b16 %v3870
        %v3883 = vpack.c.b16 %v3875, %v3875
        %v3884 = vpack.c.b16 %v3876, %v3876
        %v3885 = vpack.c.b16 %v3877, %v3877
        %v3886 = vpack.c.b16 %v3878, %v3878
        %v3887 = vpack.c.b16 %v3879, %v3879
        %v3888 = vpack.c.b16 %v3880, %v3880
        %v3889 = vpack.c.b16 %v3881, %v3881
        %v3890 = vpack.c.b16 %v3882, %v3882
        %3891 = vrot.lane.b32.xlu0 %v3883, 96
        %v3892 = vpop.permute.xlu0 %3891
        %3893 = vrot.lane.b32.xlu0 %v3884, 96
        %v3894 = vpop.permute.xlu0 %3893
        %3895 = vrot.lane.b32.xlu0 %v3885, 96
        %v3896 = vpop.permute.xlu0 %3895
        %3897 = vrot.lane.b32.xlu0 %v3886, 96
        %v3898 = vpop.permute.xlu0 %3897
        %3899 = vrot.lane.b32.xlu0 %v3887, 96
        %v3900 = vpop.permute.xlu0 %3899
        %3901 = vrot.lane.b32.xlu0 %v3888, 96
        %v3902 = vpop.permute.xlu0 %3901
        %3903 = vrot.lane.b32.xlu0 %v3889, 96
        %v3904 = vpop.permute.xlu0 %3903
        %3905 = vrot.lane.b32.xlu0 %v3890, 96
        %v3906 = vpop.permute.xlu0 %3905
        %vm3915 = vcmask 1044224
        %3916 = vst.msk [vmem:[#allocation5] sm:$0xf] %vm3915, %v3892
        %3917 = vst.msk [vmem:[#allocation5 + $0x4] sm:$0xf] %vm3915, %v3894
        %3918 = vst.msk [vmem:[#allocation5 + $0x8] sm:$0xf] %vm3915, %v3896
        %3919 = vst.msk [vmem:[#allocation5 + $0xc] sm:$0xf] %vm3915, %v3898
        %3920 = vst.msk [vmem:[#allocation5 + $0x10] sm:$0xf] %vm3915, %v3900
        %3921 = vst.msk [vmem:[#allocation5 + $0x14] sm:$0xf] %vm3915, %v3902
        %3922 = vst.msk [vmem:[#allocation5 + $0x18] sm:$0xf] %vm3915, %v3904
        %3923 = vst.msk [vmem:[#allocation5 + $0x1c] sm:$0xf] %vm3915, %v3906
        %v3924 = vld [vmem:[#allocation5] sm:$0xf]
        %v3925 = vld [vmem:[#allocation5 + $0x4] sm:$0xf]
        %v3926 = vld [vmem:[#allocation5 + $0x8] sm:$0xf]
        %v3927 = vld [vmem:[#allocation5 + $0xc] sm:$0xf]
        %v3928 = vld [vmem:[#allocation5 + $0x10] sm:$0xf]
        %v3929 = vld [vmem:[#allocation5 + $0x14] sm:$0xf]
        %v3930 = vld [vmem:[#allocation5 + $0x18] sm:$0xf]
        %v3931 = vld [vmem:[#allocation5 + $0x1c] sm:$0xf]
        %v3932 = vld [vmem:[#allocation14] sm:$0xf]
        %v3933 = vld [vmem:[#allocation14 + $0x4] sm:$0xf]
        %v3934 = vld [vmem:[#allocation14 + $0x8] sm:$0xf]
        %v3935 = vld [vmem:[#allocation14 + $0xc] sm:$0xf]
        %v3936 = vld [vmem:[#allocation14 + $0x10] sm:$0xf]
        %v3937 = vld [vmem:[#allocation14 + $0x14] sm:$0xf]
        %v3938 = vld [vmem:[#allocation14 + $0x18] sm:$0xf]
        %v3939 = vld [vmem:[#allocation14 + $0x1c] sm:$0xf]
        %v3940 = vld [vmem:[#allocation14 + $0x20] sm:$0xf]
        %v3941 = vld [vmem:[#allocation14 + $0x24] sm:$0xf]
        %v3942 = vld [vmem:[#allocation14 + $0x28] sm:$0xf]
        %v3943 = vld [vmem:[#allocation14 + $0x2c] sm:$0xf]
        %v3944 = vld [vmem:[#allocation14 + $0x30] sm:$0xf]
        %v3945 = vld [vmem:[#allocation14 + $0x34] sm:$0xf]
        %v3946 = vld [vmem:[#allocation14 + $0x38] sm:$0xf]
        %v3947 = vld [vmem:[#allocation14 + $0x3c] sm:$0xf]
        %v3948 = vld [vmem:[%s6] sm:$0x1]
        %v3950 = vlaneseq
        %v3951 = vshrl.u32 %v3950, 7
        %v3952 = vsub.s32 0, %v3951
        %v3953 = vrot.slane %v3948, %v3952
        %v3963 = vunpack.c.l.b16 %v3924
        %v3964 = vunpack.c.l.b16 %v3925
        %v3965 = vunpack.c.l.b16 %v3926
        %v3966 = vunpack.c.l.b16 %v3927
        %v3967 = vunpack.c.l.b16 %v3928
        %v3968 = vunpack.c.l.b16 %v3929
        %v3969 = vunpack.c.l.b16 %v3930
        %v3970 = vunpack.c.l.b16 %v3931
        %v3971 = vpack.c.b16 %v3964, %v3963
        %v3972 = vpack.c.b16 %v3966, %v3965
        %v3973 = vpack.c.b16 %v3968, %v3967
        %v3974 = vpack.c.b16 %v3970, %v3969
        %v3995 = vunpack.c.l.b16 %v3932
        %v3996 = vunpack.c.l.b16 %v3933
        %v3997 = vunpack.c.l.b16 %v3934
        %v3998 = vunpack.c.l.b16 %v3935
        %v3999 = vunpack.c.l.b16 %v3936
        %v4000 = vunpack.c.l.b16 %v3937
        %v4001 = vunpack.c.l.b16 %v3938
        %v4002 = vunpack.c.l.b16 %v3939
        %v4003 = vunpack.c.l.b16 %v3940
        %v4004 = vunpack.c.l.b16 %v3941
        %v4005 = vunpack.c.l.b16 %v3942
        %v4006 = vunpack.c.l.b16 %v3943
        %v4007 = vunpack.c.l.b16 %v3944
        %v4008 = vunpack.c.l.b16 %v3945
        %v4009 = vunpack.c.l.b16 %v3946
        %v4010 = vunpack.c.l.b16 %v3947
        %v4011 = vpack.c.b16 %v3996, %v3995
        %v4012 = vpack.c.b16 %v3998, %v3997
        %v4013 = vpack.c.b16 %v4000, %v3999
        %v4014 = vpack.c.b16 %v4002, %v4001
        %v4015 = vpack.c.b16 %v4004, %v4003
        %v4016 = vpack.c.b16 %v4006, %v4005
        %v4017 = vpack.c.b16 %v4008, %v4007
        %v4018 = vpack.c.b16 %v4010, %v4009
        %4027 = vmatprep.subr.bf16.mxu0 0
        %4028 = vmatpush1.bf16.msra.mxu0 %v4018
        %4029 = vmatprep.subr.bf16.mxu0 0
        %4030 = vmatpush1.bf16.msra.mxu0 %v4017
        %4031 = vmatprep.subr.bf16.mxu0 0
        %4032 = vmatpush1.bf16.msra.mxu0 %v4016
        %4033 = vmatprep.subr.bf16.mxu0 0
        %4034 = vmatpush1.bf16.msra.mxu0 %v4015
        %4035 = vmatprep.subr.bf16.mxu0 0
        %4036 = vmatpush1.bf16.msra.mxu0 %v4014
        %4037 = vmatprep.subr.bf16.mxu0 0
        %4038 = vmatpush1.bf16.msra.mxu0 %v4013
        %4039 = vmatprep.subr.bf16.mxu0 0
        %4040 = vmatpush1.bf16.msra.mxu0 %v4012
        %4041 = vmatprep.subr.bf16.mxu0 0
        %4042 = vmatpush1.bf16.msra.mxu0 %v4011
        %4043 = vmatprep.subr.bf16.mxu0 0
        %4044 = vmatpush2.bf16.msra.mxu0 0
        %4045 = vmatprep.subr.bf16.mxu0 0
        %4046 = vmatpush2.bf16.msra.mxu0 0
        %4047 = vmatprep.subr.bf16.mxu0 0
        %4048 = vmatpush2.bf16.msra.mxu0 0
        %4049 = vmatprep.subr.bf16.mxu0 0
        %4050 = vmatpush2.bf16.msra.mxu0 0
        %4051 = vmatprep.subr.bf16.mxu0 0
        %4052 = vmatpush2.bf16.msra.mxu0 0
        %4053 = vmatprep.subr.bf16.mxu0 0
        %4054 = vmatpush2.bf16.msra.mxu0 0
        %4055 = vmatprep.subr.bf16.mxu0 0
        %4056 = vmatpush2.bf16.msra.mxu0 0
        %4057 = vmatprep.subr.bf16.mxu0 0
        %4058 = vmatpush2.bf16.msra.mxu0 0
        %4059 = vmatprep.mubr.bf16.mxu0 0
        %4060 = vmatmul.mubr.bf16.gmra.mxu0 %v3971
        %v4061 = vpop.f32.mrf.mxu0
        %v4062 = vadd.f32 %v3953, %v4061
        %v4063 = vpop.f32.mrf.mxu0
        %v4064 = vpop.f32.mrf.mxu0
        %v4065 = vadd.f32 %v3953, %v4064
        %v4066 = vpop.f32.mrf.mxu0
        %4067 = vmatprep.mubr.bf16.mxu0 0
        %4068 = vmatmul.mubr.bf16.gmra.mxu0 %v3972
        %v4069 = vpop.f32.mrf.mxu0
        %v4070 = vadd.f32 %v3953, %v4069
        %v4071 = vpop.f32.mrf.mxu0
        %v4072 = vpop.f32.mrf.mxu0
        %v4073 = vadd.f32 %v3953, %v4072
        %v4074 = vpop.f32.mrf.mxu0
        %4075 = vmatprep.mubr.bf16.mxu0 0
        %4076 = vmatmul.mubr.bf16.gmra.mxu0 %v3973
        %v4077 = vpop.f32.mrf.mxu0
        %v4078 = vadd.f32 %v3953, %v4077
        %v4079 = vpop.f32.mrf.mxu0
        %v4080 = vpop.f32.mrf.mxu0
        %v4081 = vadd.f32 %v3953, %v4080
        %v4082 = vpop.f32.mrf.mxu0
        %4083 = vmatprep.mubr.bf16.mxu0 0
        %4084 = vmatmul.mubr.bf16.gmra.mxu0 %v3974
        %v4085 = vpop.f32.mrf.mxu0
        %v4086 = vadd.f32 %v3953, %v4085
        %v4087 = vpop.f32.mrf.mxu0
        %v4088 = vpop.f32.mrf.mxu0
        %v4089 = vadd.f32 %v3953, %v4088
        %v4090 = vpop.f32.mrf.mxu0
        %4091 = vdwg.mxu0
        %s4092 = scalar_lea.vmem %s489, %s2070 [#allocation6]
        %v4093 = vld [vmem:[%s4092] sm:$0xff]
        %v4094 = vld [vmem:[%s4092 + $0x8] sm:$0xff]
        %v4095 = vld [vmem:[%s4092 + $0x10] sm:$0xff]
        %v4096 = vld [vmem:[%s4092 + $0x18] sm:$0xff]
        %v4097 = vld [vmem:[%s4092 + $0x20] sm:$0xff]
        %v4098 = vld [vmem:[%s4092 + $0x28] sm:$0xff]
        %v4099 = vld [vmem:[%s4092 + $0x30] sm:$0xff]
        %v4100 = vld [vmem:[%s4092 + $0x38] sm:$0xff]
        %v4101 = vadd.f32 %v4093, %v4062
        %v4102 = vadd.f32 %v4094, %v4065
        %v4103 = vadd.f32 %v4095, %v4070
        %v4104 = vadd.f32 %v4096, %v4073
        %v4105 = vadd.f32 %v4097, %v4078
        %v4106 = vadd.f32 %v4098, %v4081
        %v4107 = vadd.f32 %v4099, %v4086
        %v4108 = vadd.f32 %v4100, %v4089
        %v4109 = vld [vmem:[%s7] sm:$0x1]
        %v4110 = vld [vmem:[%s8] sm:$0x1]
        %4111 = vadd.xlane.f32.xlu0 %v4101
        %v4112 = vpop.xlane.xlu0 %4111
        %4113 = vadd.xlane.f32.xlu0 %v4102
        %v4114 = vpop.xlane.xlu0 %4113
        %4115 = vadd.xlane.f32.xlu0 %v4103
        %v4116 = vpop.xlane.xlu0 %4115
        %4117 = vadd.xlane.f32.xlu0 %v4104
        %v4118 = vpop.xlane.xlu0 %4117
        %4119 = vadd.xlane.f32.xlu0 %v4105
        %v4120 = vpop.xlane.xlu0 %4119
        %4121 = vadd.xlane.f32.xlu0 %v4106
        %v4122 = vpop.xlane.xlu0 %4121
        %4123 = vadd.xlane.f32.xlu0 %v4107
        %v4124 = vpop.xlane.xlu0 %4123
        %4125 = vadd.xlane.f32.xlu0 %v4108
        %v4126 = vpop.xlane.xlu0 %4125
        %v4127 = vrcp.pop 128.0
        %v4128 = vmul.f32 %v4112, %v4127
        %v4129 = vmul.f32 %v4114, %v4127
        %v4130 = vmul.f32 %v4116, %v4127
        %v4131 = vmul.f32 %v4118, %v4127
        %v4132 = vmul.f32 %v4120, %v4127
        %v4133 = vmul.f32 %v4122, %v4127
        %v4134 = vmul.f32 %v4124, %v4127
        %v4135 = vmul.f32 %v4126, %v4127
        %v4136 = vmul.f32 %v4101, %v4101
        %v4137 = vmul.f32 %v4102, %v4102
        %v4138 = vmul.f32 %v4103, %v4103
        %v4139 = vmul.f32 %v4104, %v4104
        %v4140 = vmul.f32 %v4105, %v4105
        %v4141 = vmul.f32 %v4106, %v4106
        %v4142 = vmul.f32 %v4107, %v4107
        %v4143 = vmul.f32 %v4108, %v4108
        %4144 = vadd.xlane.f32.xlu0 %v4136
        %v4145 = vpop.xlane.xlu0 %4144
        %4146 = vadd.xlane.f32.xlu0 %v4137
        %v4147 = vpop.xlane.xlu0 %4146
        %4148 = vadd.xlane.f32.xlu0 %v4138
        %v4149 = vpop.xlane.xlu0 %4148
        %4150 = vadd.xlane.f32.xlu0 %v4139
        %v4151 = vpop.xlane.xlu0 %4150
        %4152 = vadd.xlane.f32.xlu0 %v4140
        %v4153 = vpop.xlane.xlu0 %4152
        %4154 = vadd.xlane.f32.xlu0 %v4141
        %v4155 = vpop.xlane.xlu0 %4154
        %4156 = vadd.xlane.f32.xlu0 %v4142
        %v4157 = vpop.xlane.xlu0 %4156
        %4158 = vadd.xlane.f32.xlu0 %v4143
        %v4159 = vpop.xlane.xlu0 %4158
        %v4160 = vmul.f32 %v4145, %v4127
        %v4161 = vmul.f32 %v4147, %v4127
        %v4162 = vmul.f32 %v4149, %v4127
        %v4163 = vmul.f32 %v4151, %v4127
        %v4164 = vmul.f32 %v4153, %v4127
        %v4165 = vmul.f32 %v4155, %v4127
        %v4166 = vmul.f32 %v4157, %v4127
        %v4167 = vmul.f32 %v4159, %v4127
        %v4168 = vmul.f32 %v4128, %v4128
        %v4169 = vmul.f32 %v4129, %v4129
        %v4170 = vmul.f32 %v4130, %v4130
        %v4171 = vmul.f32 %v4131, %v4131
        %v4172 = vmul.f32 %v4132, %v4132
        %v4173 = vmul.f32 %v4133, %v4133
        %v4174 = vmul.f32 %v4134, %v4134
        %v4175 = vmul.f32 %v4135, %v4135
        %v4176 = vsub.f32 %v4160, %v4168
        %v4177 = vsub.f32 %v4161, %v4169
        %v4178 = vsub.f32 %v4162, %v4170
        %v4179 = vsub.f32 %v4163, %v4171
        %v4180 = vsub.f32 %v4164, %v4172
        %v4181 = vsub.f32 %v4165, %v4173
        %v4182 = vsub.f32 %v4166, %v4174
        %v4183 = vsub.f32 %v4167, %v4175
        %v4184 = vsub.f32 %v4101, %v4128
        %v4185 = vsub.f32 %v4102, %v4129
        %v4186 = vsub.f32 %v4103, %v4130
        %v4187 = vsub.f32 %v4104, %v4131
        %v4188 = vsub.f32 %v4105, %v4132
        %v4189 = vsub.f32 %v4106, %v4133
        %v4190 = vsub.f32 %v4107, %v4134
        %v4191 = vsub.f32 %v4108, %v4135
        %v4192 = vadd.f32 %v4176, 1e-05
        %v4193 = vadd.f32 %v4177, 1e-05
        %v4194 = vadd.f32 %v4178, 1e-05
        %v4195 = vadd.f32 %v4179, 1e-05
        %v4196 = vadd.f32 %v4180, 1e-05
        %v4197 = vadd.f32 %v4181, 1e-05
        %v4198 = vadd.f32 %v4182, 1e-05
        %v4199 = vadd.f32 %v4183, 1e-05
        %v4200 = vrsqrt.pop %v4192
        %v4201 = vrsqrt.pop %v4193
        %v4202 = vrsqrt.pop %v4194
        %v4203 = vrsqrt.pop %v4195
        %v4204 = vrsqrt.pop %v4196
        %v4205 = vrsqrt.pop %v4197
        %v4206 = vrsqrt.pop %v4198
        %v4207 = vrsqrt.pop %v4199
        %v4208 = vmul.f32 %v4184, %v4200
        %v4209 = vmul.f32 %v4185, %v4201
        %v4210 = vmul.f32 %v4186, %v4202
        %v4211 = vmul.f32 %v4187, %v4203
        %v4212 = vmul.f32 %v4188, %v4204
        %v4213 = vmul.f32 %v4189, %v4205
        %v4214 = vmul.f32 %v4190, %v4206
        %v4215 = vmul.f32 %v4191, %v4207
        %v4217 = vlaneseq
        %v4218 = vshrl.u32 %v4217, 7
        %v4219 = vsub.s32 0, %v4218
        %v4220 = vrot.slane %v4109, %v4219
        %v4222 = vmul.f32 %v4208, %v4220
        %v4223 = vmul.f32 %v4209, %v4220
        %v4224 = vmul.f32 %v4210, %v4220
        %v4225 = vmul.f32 %v4211, %v4220
        %v4226 = vmul.f32 %v4212, %v4220
        %v4227 = vmul.f32 %v4213, %v4220
        %v4228 = vmul.f32 %v4214, %v4220
        %v4229 = vmul.f32 %v4215, %v4220
        %v4231 = vlaneseq
        %v4232 = vshrl.u32 %v4231, 7
        %v4233 = vsub.s32 0, %v4232
        %v4234 = vrot.slane %v4110, %v4233
        %v4236 = vadd.f32 %v4222, %v4234
        %v4237 = vadd.f32 %v4223, %v4234
        %v4238 = vadd.f32 %v4224, %v4234
        %v4239 = vadd.f32 %v4225, %v4234
        %v4240 = vadd.f32 %v4226, %v4234
        %v4241 = vadd.f32 %v4227, %v4234
        %v4242 = vadd.f32 %v4228, %v4234
        %v4243 = vadd.f32 %v4229, %v4234
        %v4244 = vpack.c.bf16 %v4237, %v4236
        %v4245 = vpack.c.bf16 %v4239, %v4238
        %v4246 = vpack.c.bf16 %v4241, %v4240
        %v4247 = vpack.c.bf16 %v4243, %v4242
        %v4248 = vld [vmem:[#allocation15] sm:$0xff]
        %v4249 = vld [vmem:[#allocation15 + $0x8] sm:$0xff]
        %v4250 = vld [vmem:[#allocation15 + $0x10] sm:$0xff]
        %v4251 = vld [vmem:[#allocation15 + $0x18] sm:$0xff]
        %v4252 = vld [vmem:[#allocation15 + $0x20] sm:$0xff]
        %v4253 = vld [vmem:[#allocation15 + $0x28] sm:$0xff]
        %v4254 = vld [vmem:[#allocation15 + $0x30] sm:$0xff]
        %v4255 = vld [vmem:[#allocation15 + $0x38] sm:$0xff]
        %v4256 = vld [vmem:[#allocation15 + $0x40] sm:$0xff]
        %v4257 = vld [vmem:[#allocation15 + $0x48] sm:$0xff]
        %v4258 = vld [vmem:[#allocation15 + $0x50] sm:$0xff]
        %v4259 = vld [vmem:[#allocation15 + $0x58] sm:$0xff]
        %v4260 = vld [vmem:[#allocation15 + $0x60] sm:$0xff]
        %v4261 = vld [vmem:[#allocation15 + $0x68] sm:$0xff]
        %v4262 = vld [vmem:[#allocation15 + $0x70] sm:$0xff]
        %v4263 = vld [vmem:[#allocation15 + $0x78] sm:$0xff]
        %v4264 = vld [vmem:[#allocation15 + $0x80] sm:$0xff]
        %v4265 = vld [vmem:[#allocation15 + $0x88] sm:$0xff]
        %v4266 = vld [vmem:[#allocation15 + $0x90] sm:$0xff]
        %v4267 = vld [vmem:[#allocation15 + $0x98] sm:$0xff]
        %v4268 = vld [vmem:[#allocation15 + $0xa0] sm:$0xff]
        %v4269 = vld [vmem:[#allocation15 + $0xa8] sm:$0xff]
        %v4270 = vld [vmem:[#allocation15 + $0xb0] sm:$0xff]
        %v4271 = vld [vmem:[#allocation15 + $0xb8] sm:$0xff]
        %v4272 = vld [vmem:[#allocation15 + $0xc0] sm:$0xff]
        %v4273 = vld [vmem:[#allocation15 + $0xc8] sm:$0xff]
        %v4274 = vld [vmem:[#allocation15 + $0xd0] sm:$0xff]
        %v4275 = vld [vmem:[#allocation15 + $0xd8] sm:$0xff]
        %v4276 = vld [vmem:[#allocation15 + $0xe0] sm:$0xff]
        %v4277 = vld [vmem:[#allocation15 + $0xe8] sm:$0xff]
        %v4278 = vld [vmem:[#allocation15 + $0xf0] sm:$0xff]
        %v4279 = vld [vmem:[#allocation15 + $0xf8] sm:$0xff]
        %v4280 = vld [vmem:[%s10] sm:$0xf]
        %v4282 = vlaneseq
        %v4283 = vshrl.u32 %v4282, 7
        %v4284 = vsub.s32 0, %v4283
        %v4285 = vrot.slane %v4280, %v4284
        %v4286 = vlaneseq
        %v4287 = vshrl.u32 %v4286, 7
        %v4288 = vsub.s32 1, %v4287
        %v4289 = vrot.slane %v4280, %v4288
        %v4290 = vlaneseq
        %v4291 = vshrl.u32 %v4290, 7
        %v4292 = vsub.s32 2, %v4291
        %v4293 = vrot.slane %v4280, %v4292
        %v4294 = vlaneseq
        %v4295 = vshrl.u32 %v4294, 7
        %v4296 = vsub.s32 3, %v4295
        %v4297 = vrot.slane %v4280, %v4296
        %v4334 = vunpack.c.l.b16 %v4248
        %v4335 = vunpack.c.h.b16 %v4248
        %v4336 = vunpack.c.l.b16 %v4249
        %v4337 = vunpack.c.h.b16 %v4249
        %v4338 = vunpack.c.l.b16 %v4250
        %v4339 = vunpack.c.h.b16 %v4250
        %v4340 = vunpack.c.l.b16 %v4251
        %v4341 = vunpack.c.h.b16 %v4251
        %v4342 = vunpack.c.l.b16 %v4252
        %v4343 = vunpack.c.h.b16 %v4252
        %v4344 = vunpack.c.l.b16 %v4253
        %v4345 = vunpack.c.h.b16 %v4253
        %v4346 = vunpack.c.l.b16 %v4254
        %v4347 = vunpack.c.h.b16 %v4254
        %v4348 = vunpack.c.l.b16 %v4255
        %v4349 = vunpack.c.h.b16 %v4255
        %v4350 = vunpack.c.l.b16 %v4256
        %v4351 = vunpack.c.h.b16 %v4256
        %v4352 = vunpack.c.l.b16 %v4257
        %v4353 = vunpack.c.h.b16 %v4257
        %v4354 = vunpack.c.l.b16 %v4258
        %v4355 = vunpack.c.h.b16 %v4258
        %v4356 = vunpack.c.l.b16 %v4259
        %v4357 = vunpack.c.h.b16 %v4259
        %v4358 = vunpack.c.l.b16 %v4260
        %v4359 = vunpack.c.h.b16 %v4260
        %v4360 = vunpack.c.l.b16 %v4261
        %v4361 = vunpack.c.h.b16 %v4261
        %v4362 = vunpack.c.l.b16 %v4262
        %v4363 = vunpack.c.h.b16 %v4262
        %v4364 = vunpack.c.l.b16 %v4263
        %v4365 = vunpack.c.h.b16 %v4263
        %v4366 = vunpack.c.l.b16 %v4264
        %v4367 = vunpack.c.h.b16 %v4264
        %v4368 = vunpack.c.l.b16 %v4265
        %v4369 = vunpack.c.h.b16 %v4265
        %v4370 = vunpack.c.l.b16 %v4266
        %v4371 = vunpack.c.h.b16 %v4266
        %v4372 = vunpack.c.l.b16 %v4267
        %v4373 = vunpack.c.h.b16 %v4267
        %v4374 = vunpack.c.l.b16 %v4268
        %v4375 = vunpack.c.h.b16 %v4268
        %v4376 = vunpack.c.l.b16 %v4269
        %v4377 = vunpack.c.h.b16 %v4269
        %v4378 = vunpack.c.l.b16 %v4270
        %v4379 = vunpack.c.h.b16 %v4270
        %v4380 = vunpack.c.l.b16 %v4271
        %v4381 = vunpack.c.h.b16 %v4271
        %v4382 = vunpack.c.l.b16 %v4272
        %v4383 = vunpack.c.h.b16 %v4272
        %v4384 = vunpack.c.l.b16 %v4273
        %v4385 = vunpack.c.h.b16 %v4273
        %v4386 = vunpack.c.l.b16 %v4274
        %v4387 = vunpack.c.h.b16 %v4274
        %v4388 = vunpack.c.l.b16 %v4275
        %v4389 = vunpack.c.h.b16 %v4275
        %v4390 = vunpack.c.l.b16 %v4276
        %v4391 = vunpack.c.h.b16 %v4276
        %v4392 = vunpack.c.l.b16 %v4277
        %v4393 = vunpack.c.h.b16 %v4277
        %v4394 = vunpack.c.l.b16 %v4278
        %v4395 = vunpack.c.h.b16 %v4278
        %v4396 = vunpack.c.l.b16 %v4279
        %v4397 = vunpack.c.h.b16 %v4279
        %v4398 = vpack.c.b16 %v4338, %v4334
        %v4399 = vpack.c.b16 %v4339, %v4335
        %v4400 = vpack.c.b16 %v4340, %v4336
        %v4401 = vpack.c.b16 %v4341, %v4337
        %v4402 = vpack.c.b16 %v4346, %v4342
        %v4403 = vpack.c.b16 %v4347, %v4343
        %v4404 = vpack.c.b16 %v4348, %v4344
        %v4405 = vpack.c.b16 %v4349, %v4345
        %v4406 = vpack.c.b16 %v4354, %v4350
        %v4407 = vpack.c.b16 %v4355, %v4351
        %v4408 = vpack.c.b16 %v4356, %v4352
        %v4409 = vpack.c.b16 %v4357, %v4353
        %v4410 = vpack.c.b16 %v4362, %v4358
        %v4411 = vpack.c.b16 %v4363, %v4359
        %v4412 = vpack.c.b16 %v4364, %v4360
        %v4413 = vpack.c.b16 %v4365, %v4361
        %v4414 = vpack.c.b16 %v4370, %v4366
        %v4415 = vpack.c.b16 %v4371, %v4367
        %v4416 = vpack.c.b16 %v4372, %v4368
        %v4417 = vpack.c.b16 %v4373, %v4369
        %v4418 = vpack.c.b16 %v4378, %v4374
        %v4419 = vpack.c.b16 %v4379, %v4375
        %v4420 = vpack.c.b16 %v4380, %v4376
        %v4421 = vpack.c.b16 %v4381, %v4377
        %v4422 = vpack.c.b16 %v4386, %v4382
        %v4423 = vpack.c.b16 %v4387, %v4383
        %v4424 = vpack.c.b16 %v4388, %v4384
        %v4425 = vpack.c.b16 %v4389, %v4385
        %v4426 = vpack.c.b16 %v4394, %v4390
        %v4427 = vpack.c.b16 %v4395, %v4391
        %v4428 = vpack.c.b16 %v4396, %v4392
        %v4429 = vpack.c.b16 %v4397, %v4393
        %4462 = vmatprep.subr.bf16.mxu0 %v4427
        %4463 = vmatpush1.bf16.msra.mxu0 %v4426
        %4464 = vmatprep.subr.bf16.mxu0 %v4423
        %4465 = vmatpush1.bf16.msra.mxu0 %v4422
        %4466 = vmatprep.subr.bf16.mxu0 %v4419
        %4467 = vmatpush1.bf16.msra.mxu0 %v4418
        %4468 = vmatprep.subr.bf16.mxu0 %v4415
        %4469 = vmatpush1.bf16.msra.mxu0 %v4414
        %4470 = vmatprep.subr.bf16.mxu0 %v4411
        %4471 = vmatpush1.bf16.msra.mxu0 %v4410
        %4472 = vmatprep.subr.bf16.mxu0 %v4407
        %4473 = vmatpush1.bf16.msra.mxu0 %v4406
        %4474 = vmatprep.subr.bf16.mxu0 %v4403
        %4475 = vmatpush1.bf16.msra.mxu0 %v4402
        %4476 = vmatprep.subr.bf16.mxu0 %v4399
        %4477 = vmatpush1.bf16.msra.mxu0 %v4398
        %4478 = vmatprep.subr.bf16.mxu0 0
        %4479 = vmatpush2.bf16.msra.mxu0 0
        %4480 = vmatprep.subr.bf16.mxu0 0
        %4481 = vmatpush2.bf16.msra.mxu0 0
        %4482 = vmatprep.subr.bf16.mxu0 0
        %4483 = vmatpush2.bf16.msra.mxu0 0
        %4484 = vmatprep.subr.bf16.mxu0 0
        %4485 = vmatpush2.bf16.msra.mxu0 0
        %4486 = vmatprep.subr.bf16.mxu0 0
        %4487 = vmatpush2.bf16.msra.mxu0 0
        %4488 = vmatprep.subr.bf16.mxu0 0
        %4489 = vmatpush2.bf16.msra.mxu0 0
        %4490 = vmatprep.subr.bf16.mxu0 0
        %4491 = vmatpush2.bf16.msra.mxu0 0
        %4492 = vmatprep.subr.bf16.mxu0 0
        %4493 = vmatpush2.bf16.msra.mxu0 0
        %4494 = vmatprep.mubr.bf16.mxu0 0
        %4495 = vmatmul.mubr.bf16.gmra.mxu0 %v4244
        %v4496 = vpop.f32.mrf.mxu0
        %v4497 = vadd.f32 %v4285, %v4496
        %v4498 = vpop.f32.mrf.mxu0
        %v4499 = vadd.f32 %v4289, %v4498
        %v4500 = vpop.f32.mrf.mxu0
        %v4501 = vadd.f32 %v4285, %v4500
        %v4502 = vpop.f32.mrf.mxu0
        %v4503 = vadd.f32 %v4289, %v4502
        %4504 = vmatprep.mubr.bf16.mxu0 0
        %4505 = vmatmul.mubr.bf16.gmra.mxu0 %v4245
        %v4506 = vpop.f32.mrf.mxu0
        %v4507 = vadd.f32 %v4285, %v4506
        %v4508 = vpop.f32.mrf.mxu0
        %v4509 = vadd.f32 %v4289, %v4508
        %v4510 = vpop.f32.mrf.mxu0
        %v4511 = vadd.f32 %v4285, %v4510
        %v4512 = vpop.f32.mrf.mxu0
        %v4513 = vadd.f32 %v4289, %v4512
        %4514 = vmatprep.mubr.bf16.mxu0 0
        %4515 = vmatmul.mubr.bf16.gmra.mxu0 %v4246
        %v4516 = vpop.f32.mrf.mxu0
        %v4517 = vadd.f32 %v4285, %v4516
        %v4518 = vpop.f32.mrf.mxu0
        %v4519 = vadd.f32 %v4289, %v4518
        %v4520 = vpop.f32.mrf.mxu0
        %v4521 = vadd.f32 %v4285, %v4520
        %v4522 = vpop.f32.mrf.mxu0
        %v4523 = vadd.f32 %v4289, %v4522
        %4524 = vmatprep.mubr.bf16.mxu0 0
        %4525 = vmatmul.mubr.bf16.gmra.mxu0 %v4247
        %v4526 = vpop.f32.mrf.mxu0
        %v4527 = vadd.f32 %v4285, %v4526
        %v4528 = vpop.f32.mrf.mxu0
        %v4529 = vadd.f32 %v4289, %v4528
        %v4530 = vpop.f32.mrf.mxu0
        %v4531 = vadd.f32 %v4285, %v4530
        %v4532 = vpop.f32.mrf.mxu0
        %v4533 = vadd.f32 %v4289, %v4532
        %4534 = vdwg.mxu0
        %4535 = vmatprep.subr.bf16.mxu0 %v4429
        %4536 = vmatpush1.bf16.msra.mxu0 %v4428
        %4537 = vmatprep.subr.bf16.mxu0 %v4425
        %4538 = vmatpush1.bf16.msra.mxu0 %v4424
        %4539 = vmatprep.subr.bf16.mxu0 %v4421
        %4540 = vmatpush1.bf16.msra.mxu0 %v4420
        %4541 = vmatprep.subr.bf16.mxu0 %v4417
        %4542 = vmatpush1.bf16.msra.mxu0 %v4416
        %4543 = vmatprep.subr.bf16.mxu0 %v4413
        %4544 = vmatpush1.bf16.msra.mxu0 %v4412
        %4545 = vmatprep.subr.bf16.mxu0 %v4409
        %4546 = vmatpush1.bf16.msra.mxu0 %v4408
        %4547 = vmatprep.subr.bf16.mxu0 %v4405
        %4548 = vmatpush1.bf16.msra.mxu0 %v4404
        %4549 = vmatprep.subr.bf16.mxu0 %v4401
        %4550 = vmatpush1.bf16.msra.mxu0 %v4400
        %4551 = vmatprep.subr.bf16.mxu0 0
        %4552 = vmatpush2.bf16.msra.mxu0 0
        %4553 = vmatprep.subr.bf16.mxu0 0
        %4554 = vmatpush2.bf16.msra.mxu0 0
        %4555 = vmatprep.subr.bf16.mxu0 0
        %4556 = vmatpush2.bf16.msra.mxu0 0
        %4557 = vmatprep.subr.bf16.mxu0 0
        %4558 = vmatpush2.bf16.msra.mxu0 0
        %4559 = vmatprep.subr.bf16.mxu0 0
        %4560 = vmatpush2.bf16.msra.mxu0 0
        %4561 = vmatprep.subr.bf16.mxu0 0
        %4562 = vmatpush2.bf16.msra.mxu0 0
        %4563 = vmatprep.subr.bf16.mxu0 0
        %4564 = vmatpush2.bf16.msra.mxu0 0
        %4565 = vmatprep.subr.bf16.mxu0 0
        %4566 = vmatpush2.bf16.msra.mxu0 0
        %4567 = vmatprep.mubr.bf16.mxu0 0
        %4568 = vmatmul.mubr.bf16.gmra.mxu0 %v4244
        %v4569 = vpop.f32.mrf.mxu0
        %v4570 = vadd.f32 %v4293, %v4569
        %v4571 = vpop.f32.mrf.mxu0
        %v4572 = vadd.f32 %v4297, %v4571
        %v4573 = vpop.f32.mrf.mxu0
        %v4574 = vadd.f32 %v4293, %v4573
        %v4575 = vpop.f32.mrf.mxu0
        %v4576 = vadd.f32 %v4297, %v4575
        %4577 = vmatprep.mubr.bf16.mxu0 0
        %4578 = vmatmul.mubr.bf16.gmra.mxu0 %v4245
        %v4579 = vpop.f32.mrf.mxu0
        %v4580 = vadd.f32 %v4293, %v4579
        %v4581 = vpop.f32.mrf.mxu0
        %v4582 = vadd.f32 %v4297, %v4581
        %v4583 = vpop.f32.mrf.mxu0
        %v4584 = vadd.f32 %v4293, %v4583
        %v4585 = vpop.f32.mrf.mxu0
        %v4586 = vadd.f32 %v4297, %v4585
        %4587 = vmatprep.mubr.bf16.mxu0 0
        %4588 = vmatmul.mubr.bf16.gmra.mxu0 %v4246
        %v4589 = vpop.f32.mrf.mxu0
        %v4590 = vadd.f32 %v4293, %v4589
        %v4591 = vpop.f32.mrf.mxu0
        %v4592 = vadd.f32 %v4297, %v4591
        %v4593 = vpop.f32.mrf.mxu0
        %v4594 = vadd.f32 %v4293, %v4593
        %v4595 = vpop.f32.mrf.mxu0
        %v4596 = vadd.f32 %v4297, %v4595
        %4597 = vmatprep.mubr.bf16.mxu0 0
        %4598 = vmatmul.mubr.bf16.gmra.mxu0 %v4247
        %v4599 = vpop.f32.mrf.mxu0
        %v4600 = vadd.f32 %v4293, %v4599
        %v4601 = vpop.f32.mrf.mxu0
        %v4602 = vadd.f32 %v4297, %v4601
        %v4603 = vpop.f32.mrf.mxu0
        %v4604 = vadd.f32 %v4293, %v4603
        %v4605 = vpop.f32.mrf.mxu0
        %v4606 = vadd.f32 %v4297, %v4605
        %4607 = vdwg.mxu0
        %v4608 = vmul.f32 %v4497, 0.5
        %v4609 = vmul.f32 %v4499, 0.5
        %v4610 = vmul.f32 %v4570, 0.5
        %v4611 = vmul.f32 %v4572, 0.5
        %v4612 = vmul.f32 %v4501, 0.5
        %v4613 = vmul.f32 %v4503, 0.5
        %v4614 = vmul.f32 %v4574, 0.5
        %v4615 = vmul.f32 %v4576, 0.5
        %v4616 = vmul.f32 %v4507, 0.5
        %v4617 = vmul.f32 %v4509, 0.5
        %v4618 = vmul.f32 %v4580, 0.5
        %v4619 = vmul.f32 %v4582, 0.5
        %v4620 = vmul.f32 %v4511, 0.5
        %v4621 = vmul.f32 %v4513, 0.5
        %v4622 = vmul.f32 %v4584, 0.5
        %v4623 = vmul.f32 %v4586, 0.5
        %v4624 = vmul.f32 %v4517, 0.5
        %v4625 = vmul.f32 %v4519, 0.5
        %v4626 = vmul.f32 %v4590, 0.5
        %v4627 = vmul.f32 %v4592, 0.5
        %v4628 = vmul.f32 %v4521, 0.5
        %v4629 = vmul.f32 %v4523, 0.5
        %v4630 = vmul.f32 %v4594, 0.5
        %v4631 = vmul.f32 %v4596, 0.5
        %v4632 = vmul.f32 %v4527, 0.5
        %v4633 = vmul.f32 %v4529, 0.5
        %v4634 = vmul.f32 %v4600, 0.5
        %v4635 = vmul.f32 %v4602, 0.5
        %v4636 = vmul.f32 %v4531, 0.5
        %v4637 = vmul.f32 %v4533, 0.5
        %v4638 = vmul.f32 %v4604, 0.5
        %v4639 = vmul.f32 %v4606, 0.5
        %v4640 = vmul.f32 %v4497, %v4497
        %v4641 = vmul.f32 %v4499, %v4499
        %v4642 = vmul.f32 %v4570, %v4570
        %v4643 = vmul.f32 %v4572, %v4572
        %v4644 = vmul.f32 %v4501, %v4501
        %v4645 = vmul.f32 %v4503, %v4503
        %v4646 = vmul.f32 %v4574, %v4574
        %v4647 = vmul.f32 %v4576, %v4576
        %v4648 = vmul.f32 %v4507, %v4507
        %v4649 = vmul.f32 %v4509, %v4509
        %v4650 = vmul.f32 %v4580, %v4580
        %v4651 = vmul.f32 %v4582, %v4582
        %v4652 = vmul.f32 %v4511, %v4511
        %v4653 = vmul.f32 %v4513, %v4513
        %v4654 = vmul.f32 %v4584, %v4584
        %v4655 = vmul.f32 %v4586, %v4586
        %v4656 = vmul.f32 %v4517, %v4517
        %v4657 = vmul.f32 %v4519, %v4519
        %v4658 = vmul.f32 %v4590, %v4590
        %v4659 = vmul.f32 %v4592, %v4592
        %v4660 = vmul.f32 %v4521, %v4521
        %v4661 = vmul.f32 %v4523, %v4523
        %v4662 = vmul.f32 %v4594, %v4594
        %v4663 = vmul.f32 %v4596, %v4596
        %v4664 = vmul.f32 %v4527, %v4527
        %v4665 = vmul.f32 %v4529, %v4529
        %v4666 = vmul.f32 %v4600, %v4600
        %v4667 = vmul.f32 %v4602, %v4602
        %v4668 = vmul.f32 %v4531, %v4531
        %v4669 = vmul.f32 %v4533, %v4533
        %v4670 = vmul.f32 %v4604, %v4604
        %v4671 = vmul.f32 %v4606, %v4606
        %v4672 = vmul.f32 %v4640, %v4497
        %v4673 = vmul.f32 %v4641, %v4499
        %v4674 = vmul.f32 %v4642, %v4570
        %v4675 = vmul.f32 %v4643, %v4572
        %v4676 = vmul.f32 %v4644, %v4501
        %v4677 = vmul.f32 %v4645, %v4503
        %v4678 = vmul.f32 %v4646, %v4574
        %v4679 = vmul.f32 %v4647, %v4576
        %v4680 = vmul.f32 %v4648, %v4507
        %v4681 = vmul.f32 %v4649, %v4509
        %v4682 = vmul.f32 %v4650, %v4580
        %v4683 = vmul.f32 %v4651, %v4582
        %v4684 = vmul.f32 %v4652, %v4511
        %v4685 = vmul.f32 %v4653, %v4513
        %v4686 = vmul.f32 %v4654, %v4584
        %v4687 = vmul.f32 %v4655, %v4586
        %v4688 = vmul.f32 %v4656, %v4517
        %v4689 = vmul.f32 %v4657, %v4519
        %v4690 = vmul.f32 %v4658, %v4590
        %v4691 = vmul.f32 %v4659, %v4592
        %v4692 = vmul.f32 %v4660, %v4521
        %v4693 = vmul.f32 %v4661, %v4523
        %v4694 = vmul.f32 %v4662, %v4594
        %v4695 = vmul.f32 %v4663, %v4596
        %v4696 = vmul.f32 %v4664, %v4527
        %v4697 = vmul.f32 %v4665, %v4529
        %v4698 = vmul.f32 %v4666, %v4600
        %v4699 = vmul.f32 %v4667, %v4602
        %v4700 = vmul.f32 %v4668, %v4531
        %v4701 = vmul.f32 %v4669, %v4533
        %v4702 = vmul.f32 %v4670, %v4604
        %v4703 = vmul.f32 %v4671, %v4606
        %v4704 = vmul.f32 %v4672, 0.044715
        %v4705 = vmul.f32 %v4673, 0.044715
        %v4706 = vmul.f32 %v4674, 0.044715
        %v4707 = vmul.f32 %v4675, 0.044715
        %v4708 = vmul.f32 %v4676, 0.044715
        %v4709 = vmul.f32 %v4677, 0.044715
        %v4710 = vmul.f32 %v4678, 0.044715
        %v4711 = vmul.f32 %v4679, 0.044715
        %v4712 = vmul.f32 %v4680, 0.044715
        %v4713 = vmul.f32 %v4681, 0.044715
        %v4714 = vmul.f32 %v4682, 0.044715
        %v4715 = vmul.f32 %v4683, 0.044715
        %v4716 = vmul.f32 %v4684, 0.044715
        %v4717 = vmul.f32 %v4685, 0.044715
        %v4718 = vmul.f32 %v4686, 0.044715
        %v4719 = vmul.f32 %v4687, 0.044715
        %v4720 = vmul.f32 %v4688, 0.044715
        %v4721 = vmul.f32 %v4689, 0.044715
        %v4722 = vmul.f32 %v4690, 0.044715
        %v4723 = vmul.f32 %v4691, 0.044715
        %v4724 = vmul.f32 %v4692, 0.044715
        %v4725 = vmul.f32 %v4693, 0.044715
        %v4726 = vmul.f32 %v4694, 0.044715
        %v4727 = vmul.f32 %v4695, 0.044715
        %v4728 = vmul.f32 %v4696, 0.044715
        %v4729 = vmul.f32 %v4697, 0.044715
        %v4730 = vmul.f32 %v4698, 0.044715
        %v4731 = vmul.f32 %v4699, 0.044715
        %v4732 = vmul.f32 %v4700, 0.044715
        %v4733 = vmul.f32 %v4701, 0.044715
        %v4734 = vmul.f32 %v4702, 0.044715
        %v4735 = vmul.f32 %v4703, 0.044715
        %v4736 = vadd.f32 %v4497, %v4704
        %v4737 = vadd.f32 %v4499, %v4705
        %v4738 = vadd.f32 %v4570, %v4706
        %v4739 = vadd.f32 %v4572, %v4707
        %v4740 = vadd.f32 %v4501, %v4708
        %v4741 = vadd.f32 %v4503, %v4709
        %v4742 = vadd.f32 %v4574, %v4710
        %v4743 = vadd.f32 %v4576, %v4711
        %v4744 = vadd.f32 %v4507, %v4712
        %v4745 = vadd.f32 %v4509, %v4713
        %v4746 = vadd.f32 %v4580, %v4714
        %v4747 = vadd.f32 %v4582, %v4715
        %v4748 = vadd.f32 %v4511, %v4716
        %v4749 = vadd.f32 %v4513, %v4717
        %v4750 = vadd.f32 %v4584, %v4718
        %v4751 = vadd.f32 %v4586, %v4719
        %v4752 = vadd.f32 %v4517, %v4720
        %v4753 = vadd.f32 %v4519, %v4721
        %v4754 = vadd.f32 %v4590, %v4722
        %v4755 = vadd.f32 %v4592, %v4723
        %v4756 = vadd.f32 %v4521, %v4724
        %v4757 = vadd.f32 %v4523, %v4725
        %v4758 = vadd.f32 %v4594, %v4726
        %v4759 = vadd.f32 %v4596, %v4727
        %v4760 = vadd.f32 %v4527, %v4728
        %v4761 = vadd.f32 %v4529, %v4729
        %v4762 = vadd.f32 %v4600, %v4730
        %v4763 = vadd.f32 %v4602, %v4731
        %v4764 = vadd.f32 %v4531, %v4732
        %v4765 = vadd.f32 %v4533, %v4733
        %v4766 = vadd.f32 %v4604, %v4734
        %v4767 = vadd.f32 %v4606, %v4735
        %v4768 = vmul.f32 %v4736, 0.7978846
        %v4769 = vmul.f32 %v4737, 0.7978846
        %v4770 = vmul.f32 %v4738, 0.7978846
        %v4771 = vmul.f32 %v4739, 0.7978846
        %v4772 = vmul.f32 %v4740, 0.7978846
        %v4773 = vmul.f32 %v4741, 0.7978846
        %v4774 = vmul.f32 %v4742, 0.7978846
        %v4775 = vmul.f32 %v4743, 0.7978846
        %v4776 = vmul.f32 %v4744, 0.7978846
        %v4777 = vmul.f32 %v4745, 0.7978846
        %v4778 = vmul.f32 %v4746, 0.7978846
        %v4779 = vmul.f32 %v4747, 0.7978846
        %v4780 = vmul.f32 %v4748, 0.7978846
        %v4781 = vmul.f32 %v4749, 0.7978846
        %v4782 = vmul.f32 %v4750, 0.7978846
        %v4783 = vmul.f32 %v4751, 0.7978846
        %v4784 = vmul.f32 %v4752, 0.7978846
        %v4785 = vmul.f32 %v4753, 0.7978846
        %v4786 = vmul.f32 %v4754, 0.7978846
        %v4787 = vmul.f32 %v4755, 0.7978846
        %v4788 = vmul.f32 %v4756, 0.7978846
        %v4789 = vmul.f32 %v4757, 0.7978846
        %v4790 = vmul.f32 %v4758, 0.7978846
        %v4791 = vmul.f32 %v4759, 0.7978846
        %v4792 = vmul.f32 %v4760, 0.7978846
        %v4793 = vmul.f32 %v4761, 0.7978846
        %v4794 = vmul.f32 %v4762, 0.7978846
        %v4795 = vmul.f32 %v4763, 0.7978846
        %v4796 = vmul.f32 %v4764, 0.7978846
        %v4797 = vmul.f32 %v4765, 0.7978846
        %v4798 = vmul.f32 %v4766, 0.7978846
        %v4799 = vmul.f32 %v4767, 0.7978846
        %v4800 = vtanh.pop %v4768
        %v4801 = vtanh.pop %v4769
        %v4802 = vtanh.pop %v4770
        %v4803 = vtanh.pop %v4771
        %v4804 = vtanh.pop %v4772
        %v4805 = vtanh.pop %v4773
        %v4806 = vtanh.pop %v4774
        %v4807 = vtanh.pop %v4775
        %v4808 = vtanh.pop %v4776
        %v4809 = vtanh.pop %v4777
        %v4810 = vtanh.pop %v4778
        %v4811 = vtanh.pop %v4779
        %v4812 = vtanh.pop %v4780
        %v4813 = vtanh.pop %v4781
        %v4814 = vtanh.pop %v4782
        %v4815 = vtanh.pop %v4783
        %v4816 = vtanh.pop %v4784
        %v4817 = vtanh.pop %v4785
        %v4818 = vtanh.pop %v4786
        %v4819 = vtanh.pop %v4787
        %v4820 = vtanh.pop %v4788
        %v4821 = vtanh.pop %v4789
        %v4822 = vtanh.pop %v4790
        %v4823 = vtanh.pop %v4791
        %v4824 = vtanh.pop %v4792
        %v4825 = vtanh.pop %v4793
        %v4826 = vtanh.pop %v4794
        %v4827 = vtanh.pop %v4795
        %v4828 = vtanh.pop %v4796
        %v4829 = vtanh.pop %v4797
        %v4830 = vtanh.pop %v4798
        %v4831 = vtanh.pop %v4799
        %v4832 = vadd.f32 %v4800, 1.0
        %v4833 = vadd.f32 %v4801, 1.0
        %v4834 = vadd.f32 %v4802, 1.0
        %v4835 = vadd.f32 %v4803, 1.0
        %v4836 = vadd.f32 %v4804, 1.0
        %v4837 = vadd.f32 %v4805, 1.0
        %v4838 = vadd.f32 %v4806, 1.0
        %v4839 = vadd.f32 %v4807, 1.0
        %v4840 = vadd.f32 %v4808, 1.0
        %v4841 = vadd.f32 %v4809, 1.0
        %v4842 = vadd.f32 %v4810, 1.0
        %v4843 = vadd.f32 %v4811, 1.0
        %v4844 = vadd.f32 %v4812, 1.0
        %v4845 = vadd.f32 %v4813, 1.0
        %v4846 = vadd.f32 %v4814, 1.0
        %v4847 = vadd.f32 %v4815, 1.0
        %v4848 = vadd.f32 %v4816, 1.0
        %v4849 = vadd.f32 %v4817, 1.0
        %v4850 = vadd.f32 %v4818, 1.0
        %v4851 = vadd.f32 %v4819, 1.0
        %v4852 = vadd.f32 %v4820, 1.0
        %v4853 = vadd.f32 %v4821, 1.0
        %v4854 = vadd.f32 %v4822, 1.0
        %v4855 = vadd.f32 %v4823, 1.0
        %v4856 = vadd.f32 %v4824, 1.0
        %v4857 = vadd.f32 %v4825, 1.0
        %v4858 = vadd.f32 %v4826, 1.0
        %v4859 = vadd.f32 %v4827, 1.0
        %v4860 = vadd.f32 %v4828, 1.0
        %v4861 = vadd.f32 %v4829, 1.0
        %v4862 = vadd.f32 %v4830, 1.0
        %v4863 = vadd.f32 %v4831, 1.0
        %v4864 = vmul.f32 %v4608, %v4832
        %v4865 = vmul.f32 %v4609, %v4833
        %v4866 = vmul.f32 %v4610, %v4834
        %v4867 = vmul.f32 %v4611, %v4835
        %v4868 = vmul.f32 %v4612, %v4836
        %v4869 = vmul.f32 %v4613, %v4837
        %v4870 = vmul.f32 %v4614, %v4838
        %v4871 = vmul.f32 %v4615, %v4839
        %v4872 = vmul.f32 %v4616, %v4840
        %v4873 = vmul.f32 %v4617, %v4841
        %v4874 = vmul.f32 %v4618, %v4842
        %v4875 = vmul.f32 %v4619, %v4843
        %v4876 = vmul.f32 %v4620, %v4844
        %v4877 = vmul.f32 %v4621, %v4845
        %v4878 = vmul.f32 %v4622, %v4846
        %v4879 = vmul.f32 %v4623, %v4847
        %v4880 = vmul.f32 %v4624, %v4848
        %v4881 = vmul.f32 %v4625, %v4849
        %v4882 = vmul.f32 %v4626, %v4850
        %v4883 = vmul.f32 %v4627, %v4851
        %v4884 = vmul.f32 %v4628, %v4852
        %v4885 = vmul.f32 %v4629, %v4853
        %v4886 = vmul.f32 %v4630, %v4854
        %v4887 = vmul.f32 %v4631, %v4855
        %v4888 = vmul.f32 %v4632, %v4856
        %v4889 = vmul.f32 %v4633, %v4857
        %v4890 = vmul.f32 %v4634, %v4858
        %v4891 = vmul.f32 %v4635, %v4859
        %v4892 = vmul.f32 %v4636, %v4860
        %v4893 = vmul.f32 %v4637, %v4861
        %v4894 = vmul.f32 %v4638, %v4862
        %v4895 = vmul.f32 %v4639, %v4863
        %v4896 = vpack.c.bf16 %v4868, %v4864
        %v4897 = vpack.c.bf16 %v4869, %v4865
        %v4898 = vpack.c.bf16 %v4870, %v4866
        %v4899 = vpack.c.bf16 %v4871, %v4867
        %v4900 = vpack.c.bf16 %v4876, %v4872
        %v4901 = vpack.c.bf16 %v4877, %v4873
        %v4902 = vpack.c.bf16 %v4878, %v4874
        %v4903 = vpack.c.bf16 %v4879, %v4875
        %v4904 = vpack.c.bf16 %v4884, %v4880
        %v4905 = vpack.c.bf16 %v4885, %v4881
        %v4906 = vpack.c.bf16 %v4886, %v4882
        %v4907 = vpack.c.bf16 %v4887, %v4883
        %v4908 = vpack.c.bf16 %v4892, %v4888
        %v4909 = vpack.c.bf16 %v4893, %v4889
        %v4910 = vpack.c.bf16 %v4894, %v4890
        %v4911 = vpack.c.bf16 %v4895, %v4891
        %v4912 = vld [vmem:[#allocation17] sm:$0xf]
        %v4913 = vld [vmem:[#allocation17 + $0x4] sm:$0xf]
        %v4914 = vld [vmem:[#allocation17 + $0x8] sm:$0xf]
        %v4915 = vld [vmem:[#allocation17 + $0xc] sm:$0xf]
        %v4916 = vld [vmem:[#allocation17 + $0x10] sm:$0xf]
        %v4917 = vld [vmem:[#allocation17 + $0x14] sm:$0xf]
        %v4918 = vld [vmem:[#allocation17 + $0x18] sm:$0xf]
        %v4919 = vld [vmem:[#allocation17 + $0x1c] sm:$0xf]
        %v4920 = vld [vmem:[#allocation17 + $0x20] sm:$0xf]
        %v4921 = vld [vmem:[#allocation17 + $0x24] sm:$0xf]
        %v4922 = vld [vmem:[#allocation17 + $0x28] sm:$0xf]
        %v4923 = vld [vmem:[#allocation17 + $0x2c] sm:$0xf]
        %v4924 = vld [vmem:[#allocation17 + $0x30] sm:$0xf]
        %v4925 = vld [vmem:[#allocation17 + $0x34] sm:$0xf]
        %v4926 = vld [vmem:[#allocation17 + $0x38] sm:$0xf]
        %v4927 = vld [vmem:[#allocation17 + $0x3c] sm:$0xf]
        %v4928 = vld [vmem:[#allocation17 + $0x40] sm:$0xf]
        %v4929 = vld [vmem:[#allocation17 + $0x44] sm:$0xf]
        %v4930 = vld [vmem:[#allocation17 + $0x48] sm:$0xf]
        %v4931 = vld [vmem:[#allocation17 + $0x4c] sm:$0xf]
        %v4932 = vld [vmem:[#allocation17 + $0x50] sm:$0xf]
        %v4933 = vld [vmem:[#allocation17 + $0x54] sm:$0xf]
        %v4934 = vld [vmem:[#allocation17 + $0x58] sm:$0xf]
        %v4935 = vld [vmem:[#allocation17 + $0x5c] sm:$0xf]
        %v4936 = vld [vmem:[#allocation17 + $0x60] sm:$0xf]
        %v4937 = vld [vmem:[#allocation17 + $0x64] sm:$0xf]
        %v4938 = vld [vmem:[#allocation17 + $0x68] sm:$0xf]
        %v4939 = vld [vmem:[#allocation17 + $0x6c] sm:$0xf]
        %v4940 = vld [vmem:[#allocation17 + $0x70] sm:$0xf]
        %v4941 = vld [vmem:[#allocation17 + $0x74] sm:$0xf]
        %v4942 = vld [vmem:[#allocation17 + $0x78] sm:$0xf]
        %v4943 = vld [vmem:[#allocation17 + $0x7c] sm:$0xf]
        %v4944 = vld [vmem:[#allocation17 + $0x80] sm:$0xf]
        %v4945 = vld [vmem:[#allocation17 + $0x84] sm:$0xf]
        %v4946 = vld [vmem:[#allocation17 + $0x88] sm:$0xf]
        %v4947 = vld [vmem:[#allocation17 + $0x8c] sm:$0xf]
        %v4948 = vld [vmem:[#allocation17 + $0x90] sm:$0xf]
        %v4949 = vld [vmem:[#allocation17 + $0x94] sm:$0xf]
        %v4950 = vld [vmem:[#allocation17 + $0x98] sm:$0xf]
        %v4951 = vld [vmem:[#allocation17 + $0x9c] sm:$0xf]
        %v4952 = vld [vmem:[#allocation17 + $0xa0] sm:$0xf]
        %v4953 = vld [vmem:[#allocation17 + $0xa4] sm:$0xf]
        %v4954 = vld [vmem:[#allocation17 + $0xa8] sm:$0xf]
        %v4955 = vld [vmem:[#allocation17 + $0xac] sm:$0xf]
        %v4956 = vld [vmem:[#allocation17 + $0xb0] sm:$0xf]
        %v4957 = vld [vmem:[#allocation17 + $0xb4] sm:$0xf]
        %v4958 = vld [vmem:[#allocation17 + $0xb8] sm:$0xf]
        %v4959 = vld [vmem:[#allocation17 + $0xbc] sm:$0xf]
        %v4960 = vld [vmem:[#allocation17 + $0xc0] sm:$0xf]
        %v4961 = vld [vmem:[#allocation17 + $0xc4] sm:$0xf]
        %v4962 = vld [vmem:[#allocation17 + $0xc8] sm:$0xf]
        %v4963 = vld [vmem:[#allocation17 + $0xcc] sm:$0xf]
        %v4964 = vld [vmem:[#allocation17 + $0xd0] sm:$0xf]
        %v4965 = vld [vmem:[#allocation17 + $0xd4] sm:$0xf]
        %v4966 = vld [vmem:[#allocation17 + $0xd8] sm:$0xf]
        %v4967 = vld [vmem:[#allocation17 + $0xdc] sm:$0xf]
        %v4968 = vld [vmem:[#allocation17 + $0xe0] sm:$0xf]
        %v4969 = vld [vmem:[#allocation17 + $0xe4] sm:$0xf]
        %v4970 = vld [vmem:[#allocation17 + $0xe8] sm:$0xf]
        %v4971 = vld [vmem:[#allocation17 + $0xec] sm:$0xf]
        %v4972 = vld [vmem:[#allocation17 + $0xf0] sm:$0xf]
        %v4973 = vld [vmem:[#allocation17 + $0xf4] sm:$0xf]
        %v4974 = vld [vmem:[#allocation17 + $0xf8] sm:$0xf]
        %v4975 = vld [vmem:[#allocation17 + $0xfc] sm:$0xf]
        %v4976 = vld [vmem:[%s12] sm:$0x1]
        %v4978 = vlaneseq
        %v4979 = vshrl.u32 %v4978, 7
        %v4980 = vsub.s32 0, %v4979
        %v4981 = vrot.slane %v4976, %v4980
        %v5047 = vunpack.c.l.b16 %v4912
        %v5048 = vunpack.c.l.b16 %v4913
        %v5049 = vunpack.c.l.b16 %v4914
        %v5050 = vunpack.c.l.b16 %v4915
        %v5051 = vunpack.c.l.b16 %v4916
        %v5052 = vunpack.c.l.b16 %v4917
        %v5053 = vunpack.c.l.b16 %v4918
        %v5054 = vunpack.c.l.b16 %v4919
        %v5055 = vunpack.c.l.b16 %v4920
        %v5056 = vunpack.c.l.b16 %v4921
        %v5057 = vunpack.c.l.b16 %v4922
        %v5058 = vunpack.c.l.b16 %v4923
        %v5059 = vunpack.c.l.b16 %v4924
        %v5060 = vunpack.c.l.b16 %v4925
        %v5061 = vunpack.c.l.b16 %v4926
        %v5062 = vunpack.c.l.b16 %v4927
        %v5063 = vunpack.c.l.b16 %v4928
        %v5064 = vunpack.c.l.b16 %v4929
        %v5065 = vunpack.c.l.b16 %v4930
        %v5066 = vunpack.c.l.b16 %v4931
        %v5067 = vunpack.c.l.b16 %v4932
        %v5068 = vunpack.c.l.b16 %v4933
        %v5069 = vunpack.c.l.b16 %v4934
        %v5070 = vunpack.c.l.b16 %v4935
        %v5071 = vunpack.c.l.b16 %v4936
        %v5072 = vunpack.c.l.b16 %v4937
        %v5073 = vunpack.c.l.b16 %v4938
        %v5074 = vunpack.c.l.b16 %v4939
        %v5075 = vunpack.c.l.b16 %v4940
        %v5076 = vunpack.c.l.b16 %v4941
        %v5077 = vunpack.c.l.b16 %v4942
        %v5078 = vunpack.c.l.b16 %v4943
        %v5079 = vunpack.c.l.b16 %v4944
        %v5080 = vunpack.c.l.b16 %v4945
        %v5081 = vunpack.c.l.b16 %v4946
        %v5082 = vunpack.c.l.b16 %v4947
        %v5083 = vunpack.c.l.b16 %v4948
        %v5084 = vunpack.c.l.b16 %v4949
        %v5085 = vunpack.c.l.b16 %v4950
        %v5086 = vunpack.c.l.b16 %v4951
        %v5087 = vunpack.c.l.b16 %v4952
        %v5088 = vunpack.c.l.b16 %v4953
        %v5089 = vunpack.c.l.b16 %v4954
        %v5090 = vunpack.c.l.b16 %v4955
        %v5091 = vunpack.c.l.b16 %v4956
        %v5092 = vunpack.c.l.b16 %v4957
        %v5093 = vunpack.c.l.b16 %v4958
        %v5094 = vunpack.c.l.b16 %v4959
        %v5095 = vunpack.c.l.b16 %v4960
        %v5096 = vunpack.c.l.b16 %v4961
        %v5097 = vunpack.c.l.b16 %v4962
        %v5098 = vunpack.c.l.b16 %v4963
        %v5099 = vunpack.c.l.b16 %v4964
        %v5100 = vunpack.c.l.b16 %v4965
        %v5101 = vunpack.c.l.b16 %v4966
        %v5102 = vunpack.c.l.b16 %v4967
        %v5103 = vunpack.c.l.b16 %v4968
        %v5104 = vunpack.c.l.b16 %v4969
        %v5105 = vunpack.c.l.b16 %v4970
        %v5106 = vunpack.c.l.b16 %v4971
        %v5107 = vunpack.c.l.b16 %v4972
        %v5108 = vunpack.c.l.b16 %v4973
        %v5109 = vunpack.c.l.b16 %v4974
        %v5110 = vunpack.c.l.b16 %v4975
        %v5111 = vpack.c.b16 %v5048, %v5047
        %v5112 = vpack.c.b16 %v5050, %v5049
        %v5113 = vpack.c.b16 %v5052, %v5051
        %v5114 = vpack.c.b16 %v5054, %v5053
        %v5115 = vpack.c.b16 %v5056, %v5055
        %v5116 = vpack.c.b16 %v5058, %v5057
        %v5117 = vpack.c.b16 %v5060, %v5059
        %v5118 = vpack.c.b16 %v5062, %v5061
        %v5119 = vpack.c.b16 %v5064, %v5063
        %v5120 = vpack.c.b16 %v5066, %v5065
        %v5121 = vpack.c.b16 %v5068, %v5067
        %v5122 = vpack.c.b16 %v5070, %v5069
        %v5123 = vpack.c.b16 %v5072, %v5071
        %v5124 = vpack.c.b16 %v5074, %v5073
        %v5125 = vpack.c.b16 %v5076, %v5075
        %v5126 = vpack.c.b16 %v5078, %v5077
        %v5127 = vpack.c.b16 %v5080, %v5079
        %v5128 = vpack.c.b16 %v5082, %v5081
        %v5129 = vpack.c.b16 %v5084, %v5083
        %v5130 = vpack.c.b16 %v5086, %v5085
        %v5131 = vpack.c.b16 %v5088, %v5087
        %v5132 = vpack.c.b16 %v5090, %v5089
        %v5133 = vpack.c.b16 %v5092, %v5091
        %v5134 = vpack.c.b16 %v5094, %v5093
        %v5135 = vpack.c.b16 %v5096, %v5095
        %v5136 = vpack.c.b16 %v5098, %v5097
        %v5137 = vpack.c.b16 %v5100, %v5099
        %v5138 = vpack.c.b16 %v5102, %v5101
        %v5139 = vpack.c.b16 %v5104, %v5103
        %v5140 = vpack.c.b16 %v5106, %v5105
        %v5141 = vpack.c.b16 %v5108, %v5107
        %v5142 = vpack.c.b16 %v5110, %v5109
        %5175 = vmatprep.subr.bf16.mxu0 0
        %5176 = vmatpush1.bf16.msra.mxu0 %v5118
        %5177 = vmatprep.subr.bf16.mxu0 0
        %5178 = vmatpush1.bf16.msra.mxu0 %v5117
        %5179 = vmatprep.subr.bf16.mxu0 0
        %5180 = vmatpush1.bf16.msra.mxu0 %v5116
        %5181 = vmatprep.subr.bf16.mxu0 0
        %5182 = vmatpush1.bf16.msra.mxu0 %v5115
        %5183 = vmatprep.subr.bf16.mxu0 0
        %5184 = vmatpush1.bf16.msra.mxu0 %v5114
        %5185 = vmatprep.subr.bf16.mxu0 0
        %5186 = vmatpush1.bf16.msra.mxu0 %v5113
        %5187 = vmatprep.subr.bf16.mxu0 0
        %5188 = vmatpush1.bf16.msra.mxu0 %v5112
        %5189 = vmatprep.subr.bf16.mxu0 0
        %5190 = vmatpush1.bf16.msra.mxu0 %v5111
        %5191 = vmatprep.subr.bf16.mxu0 0
        %5192 = vmatpush2.bf16.msra.mxu0 %v5126
        %5193 = vmatprep.subr.bf16.mxu0 0
        %5194 = vmatpush2.bf16.msra.mxu0 %v5125
        %5195 = vmatprep.subr.bf16.mxu0 0
        %5196 = vmatpush2.bf16.msra.mxu0 %v5124
        %5197 = vmatprep.subr.bf16.mxu0 0
        %5198 = vmatpush2.bf16.msra.mxu0 %v5123
        %5199 = vmatprep.subr.bf16.mxu0 0
        %5200 = vmatpush2.bf16.msra.mxu0 %v5122
        %5201 = vmatprep.subr.bf16.mxu0 0
        %5202 = vmatpush2.bf16.msra.mxu0 %v5121
        %5203 = vmatprep.subr.bf16.mxu0 0
        %5204 = vmatpush2.bf16.msra.mxu0 %v5120
        %5205 = vmatprep.subr.bf16.mxu0 0
        %5206 = vmatpush2.bf16.msra.mxu0 %v5119
        %5207 = vmatprep.mubr.bf16.mxu0 %v4897
        %5208 = vmatmul.mubr.bf16.gmra.mxu0 %v4896
        %v5209 = vpop.f32.mrf.mxu0
        %v5210 = vadd.f32 %v4981, %v5209
        %v5211 = vpop.f32.mrf.mxu0
        %v5212 = vpop.f32.mrf.mxu0
        %v5213 = vadd.f32 %v4981, %v5212
        %v5214 = vpop.f32.mrf.mxu0
        %5215 = vmatprep.mubr.bf16.mxu0 %v4901
        %5216 = vmatmul.mubr.bf16.gmra.mxu0 %v4900
        %v5217 = vpop.f32.mrf.mxu0
        %v5218 = vadd.f32 %v4981, %v5217
        %v5219 = vpop.f32.mrf.mxu0
        %v5220 = vpop.f32.mrf.mxu0
        %v5221 = vadd.f32 %v4981, %v5220
        %v5222 = vpop.f32.mrf.mxu0
        %5223 = vmatprep.mubr.bf16.mxu0 %v4905
        %5224 = vmatmul.mubr.bf16.gmra.mxu0 %v4904
        %v5225 = vpop.f32.mrf.mxu0
        %v5226 = vadd.f32 %v4981, %v5225
        %v5227 = vpop.f32.mrf.mxu0
        %v5228 = vpop.f32.mrf.mxu0
        %v5229 = vadd.f32 %v4981, %v5228
        %v5230 = vpop.f32.mrf.mxu0
        %5231 = vmatprep.mubr.bf16.mxu0 %v4909
        %5232 = vmatmul.mubr.bf16.gmra.mxu0 %v4908
        %v5233 = vpop.f32.mrf.mxu0
        %v5234 = vadd.f32 %v4981, %v5233
        %v5235 = vpop.f32.mrf.mxu0
        %v5236 = vpop.f32.mrf.mxu0
        %v5237 = vadd.f32 %v4981, %v5236
        %v5238 = vpop.f32.mrf.mxu0
        %5239 = vdwg.mxu0
        %5240 = vmatprep.subr.bf16.mxu0 0
        %5241 = vmatpush1.bf16.msra.mxu0 %v5134
        %5242 = vmatprep.subr.bf16.mxu0 0
        %5243 = vmatpush1.bf16.msra.mxu0 %v5133
        %5244 = vmatprep.subr.bf16.mxu0 0
        %5245 = vmatpush1.bf16.msra.mxu0 %v5132
        %5246 = vmatprep.subr.bf16.mxu0 0
        %5247 = vmatpush1.bf16.msra.mxu0 %v5131
        %5248 = vmatprep.subr.bf16.mxu0 0
        %5249 = vmatpush1.bf16.msra.mxu0 %v5130
        %5250 = vmatprep.subr.bf16.mxu0 0
        %5251 = vmatpush1.bf16.msra.mxu0 %v5129
        %5252 = vmatprep.subr.bf16.mxu0 0
        %5253 = vmatpush1.bf16.msra.mxu0 %v5128
        %5254 = vmatprep.subr.bf16.mxu0 0
        %5255 = vmatpush1.bf16.msra.mxu0 %v5127
        %5256 = vmatprep.subr.bf16.mxu0 0
        %5257 = vmatpush2.bf16.msra.mxu0 %v5142
        %5258 = vmatprep.subr.bf16.mxu0 0
        %5259 = vmatpush2.bf16.msra.mxu0 %v5141
        %5260 = vmatprep.subr.bf16.mxu0 0
        %5261 = vmatpush2.bf16.msra.mxu0 %v5140
        %5262 = vmatprep.subr.bf16.mxu0 0
        %5263 = vmatpush2.bf16.msra.mxu0 %v5139
        %5264 = vmatprep.subr.bf16.mxu0 0
        %5265 = vmatpush2.bf16.msra.mxu0 %v5138
        %5266 = vmatprep.subr.bf16.mxu0 0
        %5267 = vmatpush2.bf16.msra.mxu0 %v5137
        %5268 = vmatprep.subr.bf16.mxu0 0
        %5269 = vmatpush2.bf16.msra.mxu0 %v5136
        %5270 = vmatprep.subr.bf16.mxu0 0
        %5271 = vmatpush2.bf16.msra.mxu0 %v5135
        %5272 = vmatprep.mubr.bf16.mxu0 %v4899
        %5273 = vmatmul.mubr.bf16.gmra.mxu0 %v4898
        %v5274 = vpop.f32.mrf.mxu0
        %v5275 = vadd.f32 %v5210, %v5274
        %v5276 = vpop.f32.mrf.mxu0
        %v5277 = vpop.f32.mrf.mxu0
        %v5278 = vadd.f32 %v5213, %v5277
        %v5279 = vpop.f32.mrf.mxu0
        %5280 = vmatprep.mubr.bf16.mxu0 %v4903
        %5281 = vmatmul.mubr.bf16.gmra.mxu0 %v4902
        %v5282 = vpop.f32.mrf.mxu0
        %v5283 = vadd.f32 %v5218, %v5282
        %v5284 = vpop.f32.mrf.mxu0
        %v5285 = vpop.f32.mrf.mxu0
        %v5286 = vadd.f32 %v5221, %v5285
        %v5287 = vpop.f32.mrf.mxu0
        %5288 = vmatprep.mubr.bf16.mxu0 %v4907
        %5289 = vmatmul.mubr.bf16.gmra.mxu0 %v4906
        %v5290 = vpop.f32.mrf.mxu0
        %v5291 = vadd.f32 %v5226, %v5290
        %v5292 = vpop.f32.mrf.mxu0
        %v5293 = vpop.f32.mrf.mxu0
        %v5294 = vadd.f32 %v5229, %v5293
        %v5295 = vpop.f32.mrf.mxu0
        %5296 = vmatprep.mubr.bf16.mxu0 %v4911
        %5297 = vmatmul.mubr.bf16.gmra.mxu0 %v4910
        %v5298 = vpop.f32.mrf.mxu0
        %v5299 = vadd.f32 %v5234, %v5298
        %v5300 = vpop.f32.mrf.mxu0
        %v5301 = vpop.f32.mrf.mxu0
        %v5302 = vadd.f32 %v5237, %v5301
        %v5303 = vpop.f32.mrf.mxu0
        %5304 = vdwg.mxu0
        %v5305 = vadd.f32 %v4101, %v5275
        %v5306 = vadd.f32 %v4102, %v5278
        %v5307 = vadd.f32 %v4103, %v5283
        %v5308 = vadd.f32 %v4104, %v5286
        %v5309 = vadd.f32 %v4105, %v5291
        %v5310 = vadd.f32 %v4106, %v5294
        %v5311 = vadd.f32 %v4107, %v5299
        %v5312 = vadd.f32 %v4108, %v5302
        %5313 = vst [vmem:[%s555] sm:$0xff] %v5305
        %5314 = vst [vmem:[%s555 + $0x8] sm:$0xff] %v5306
        %5315 = vst [vmem:[%s555 + $0x10] sm:$0xff] %v5307
        %5316 = vst [vmem:[%s555 + $0x18] sm:$0xff] %v5308
        %5317 = vst [vmem:[%s555 + $0x20] sm:$0xff] %v5309
        %5318 = vst [vmem:[%s555 + $0x28] sm:$0xff] %v5310
        %5319 = vst [vmem:[%s555 + $0x30] sm:$0xff] %v5311
        %5320 = vst [vmem:[%s555 + $0x38] sm:$0xff] %v5312
        %s5321 = sand.u32 %s333, 1
        %s5322 = scalar_lea.sflag [#allocation8], %s5321
        %s5323 = sand.u32 %s333, 1
        %s5324 = smul.addr %s5323, 64
        %s5325 = scalar_lea.vmem [#allocation18], %s5324
        // Predicated region
        $region105: #{tpu_custom_call.1} parent=71 // pred_check
          %p5326 = pneg %p343
        $region106: #{tpu_custom_call.1} parent=71 // pred_check_branch
          %5328 = sbr.rel (%p5326) target = $region108
        $region107: #{tpu_custom_call.1} parent=71 // pred_region
          %s5329 = smul.u32 8, %s38
          %s5331 = ssub.s32 1024, 1024
          %5332 = vsyncadd %s5322, %s5331
          %s5333 = smul.addr %s37, 16
          %s5334 = sadd.s32 %s5329, %s5333
          %s5335 = smul.addr %s5334, 128
          %s5336 = scalar_lea.hbm %s13, %s5335
          %s5337 = sshll.u32 %s5325, 4
          %s5338 = int_to_ptr.vmem [resolvable:$true] %s5337
          %5343 = dma.vmem_to_hbm [thread:$0]  %s5338, 1024, %s5336, %s5322, 128, 128, 8
        $region108: #{tpu_custom_call.1} parent=71 // pred_fallthru
          _
      $region72: #{tpu_custom_call.1} parent=5 // pred_fallthru
        _
      %p5344 = scmp.le.s32.totalorder 2, %s28
      // Predicated region
      $region109: #{tpu_custom_call.1} parent=5 // pred_check
        %p5345 = pneg %p5344
      $region110: #{tpu_custom_call.1} parent=5 // pred_check_branch
        %5347 = sbr.rel (%p5345) target = $region112
      $region111: #{tpu_custom_call.1} parent=5 // pred_region
        %s5348 = ssub.s32 %s28, 2
        // Predicated region
        $region113: #{tpu_custom_call.1} parent=111 // pred_check
          %p5349 = pneg %p349
        $region114: #{tpu_custom_call.1} parent=111 // pred_check_branch
          %5351 = sbr.rel (%p5349) target = $region116
        $region115: #{tpu_custom_call.1} parent=111 // pred_region
          %s5352 = sand.u32 %s334, 1
          %s5353 = scalar_lea.sflag [#allocation8], %s5352
          %s5354 = sand.u32 %s334, 1
          %s5355 = smul.addr %s5354, 64
          %s5356 = scalar_lea.vmem [#allocation18], %s5355
          %5357 = dma.done %s5353, 1024
        $region116: #{tpu_custom_call.1} parent=111 // pred_fallthru
          _
      $region112: #{tpu_custom_call.1} parent=5 // pred_fallthru
        _
    $region6: #{tpu_custom_call.1} parent=1 // loop_footer
      %s32 = sadd.s32 1, %s28
    $region7: #{tpu_custom_call.1} parent=1 // loop_footer_branch
      %27 = sbr.rel target = $region3
    $region8: #{tpu_custom_call.1} parent=1 // loop_exit
      _
    %5358 = vsyncpa [#allocation7], 1
    %s5359 = scalar_lea.sflag [#allocation7], 1
    %5360 = vsyncpa %s5359, 1
    %5361 = vsyncpa [#allocation10], 1
    %5362 = vsyncpa [#allocation13], 1
    %5363 = vsyncpa [#allocation16], 1
    %5364 = vsyncpa [#allocation8], 1
    %s5365 = scalar_lea.sflag [#allocation8], 1
    %5366 = vsyncpa %s5365, 1

</llo_original>
